<compile_context>
chip_gen: v5e
topology: v5e:2x2
jax: 0.10.0
libtpu: 0.0.40
codegen_flags: <defaults>
</compile_context>

<pallas_src>
import functools

import jax
import jax.numpy as jnp
import numpy as np
from jax.experimental import pallas as pl
from jax.experimental.pallas import tpu as pltpu

BN_EPS = 1e-5  # PyTorch BatchNorm2d default eps


def _conv_elu_stats_kernel(x_ref, w1_ref, b1_ref, mask_ref, h_ref, stats_ref, *, Wp):
    """Pass 1: 5x5 conv (as 25 shifted FMAs) + bias + ELU + per-tile BN partial sums.

    x_ref:    (Cin, Lh)    row-flattened padded block, pixels on the lane axis
    w1_ref:   (Chid*Cin*25,) f32 in SMEM, flattened in (o, c, dy, dx) order
    b1_ref:   (Chid,)      f32 in SMEM
    mask_ref: (1, Lout)    1.0 on valid output pixels, 0.0 on padded garbage columns
    h_ref:    (Chid, Lout) post-ELU activations (lane-dense)
    stats_ref:(Chid, 2)    col 0 = masked sum, col 1 = masked sum of squares
    """
    Cin = x_ref.shape[0]
    Chid, Lout = h_ref.shape

    accs = [jnp.zeros((1, Lout), dtype=jnp.float32) for _ in range(Chid)]
    for dy in range(5):
        for dx in range(5):
            base = dy * Wp + dx
            xs = x_ref[:, pl.ds(base, Lout)]               # (Cin, Lout) shifted slice
            for c in range(Cin):
                xc = xs[c:c + 1, :]                        # (1, Lout)
                for o in range(Chid):
                    w = w1_ref[(o * Cin + c) * 25 + dy * 5 + dx]   # SMEM scalar
                    accs[o] = accs[o] + w * xc

    for o in range(Chid):
        a = accs[o] + b1_ref[o]                            # bias (scalar broadcast)
        a = jnp.where(a > 0.0, a, jnp.exp(a) - 1.0)        # ELU (alpha=1.0)
        h_ref[o:o + 1, :] = a                              # lane-dense row store

    hm = h_ref[...] * mask_ref[...]                        # (Chid, Lout), masked
    stats_ref[:, 0:1] = jnp.sum(hm, axis=1, keepdims=True)
    stats_ref[:, 1:2] = jnp.sum(hm * hm, axis=1, keepdims=True)


def _bn_conv2_kernel(h_ref, w2_ref, b2_ref, o_ref):
    """Pass 2: folded BatchNorm affine + 1x1 conv as VPU scalar-vector FMAs.

    h_ref:  (Chid, Lout)           w2_ref: (Cout*Chid,) f32 SMEM (folded weights)
    b2_ref: (Cout,) f32 SMEM       o_ref:  (Cout, Lout)
    """
    Chid, Lout = h_ref.shape
    Cout = o_ref.shape[0]
    for o in range(Cout):
        acc = jnp.zeros((1, Lout), dtype=jnp.float32) + b2_ref[o]
        for c in range(Chid):
            acc = acc + w2_ref[o * Chid + c] * h_ref[c:c + 1, :]
        o_ref[o:o + 1, :] = acc                            # lane-dense output store


def _auto_tile_h(H, W, Cin, Chid, budget_bytes=8 << 20):
    """Largest row-tile dividing H whose double-buffered working set fits the budget
    (conservative for v7x's 64 MiB physical / 32 MiB default scoped VMEM)."""
    Wp = W + 4
    for th in sorted([d for d in range(1, H + 1) if H % d == 0], reverse=True):
        lh = (th + 4) * Wp + 4
        lout = th * Wp
        per_block = 4 * (Cin * lh + (Chid + 1) * lout + 2 * Chid + lout)
        if 2 * per_block <= budget_bytes:
            return th
    return 1


def output_transition_pallas(x_nchw, w1, b1, gamma, beta, w2, b2, tile_h=None):
    """x_nchw: (N, Cin, H, W) f32.  w1: (Chid, Cin, 5, 5) OIHW, w2: (Cout, Chid, 1, 1)."""
    N, Cin, H, W = x_nchw.shape
    Chid = w1.shape[0]
    Cout = w2.shape[0]
    if tile_h is None:
        tile_h = _auto_tile_h(H, W, Cin, Chid)
    assert H % tile_h == 0, "tile_h must divide H"
    T = H // tile_h
    NB = N * T
    Wp = W + 4
    Lout = tile_h * Wp
    Lh = (tile_h + 4) * Wp + 4       # +4 so the max tap shift (4*Wp + 4) stays in bounds

    # ---- glue (data movement only): pad, cut haloed row-tiles, flatten rows ----
    xp = jnp.pad(x_nchw.astype(jnp.float32), ((0, 0), (0, 0), (2, 2), (2, 2)))
    blocks = jnp.stack(
        [xp[:, :, t * tile_h: t * tile_h + tile_h + 4, :] for t in range(T)], axis=1)
    xflat = blocks.reshape(NB, Cin, (tile_h + 4) * Wp)
    xflat = jnp.pad(xflat, ((0, 0), (0, 0), (0, 4)))        # (NB, Cin, Lh)

    mask = jnp.asarray((np.arange(Lout) % Wp < W).astype(np.float32).reshape(1, Lout))
    w1_flat = w1.astype(jnp.float32).reshape(-1)            # (Chid*Cin*25,)
    b1_f = b1.astype(jnp.float32)

    cparams = pltpu.CompilerParams(
        dimension_semantics=("parallel",), vmem_limit_bytes=32 * 1024 * 1024)

    # ---- pass 1: conv5x5 + ELU + per-tile BN partial sums ----
    h_all, stats = pl.pallas_call(
        functools.partial(_conv_elu_stats_kernel, Wp=Wp),
        grid=(NB,),
        in_specs=[
            pl.BlockSpec((None, Cin, Lh), lambda b: (b, 0, 0)),
            pl.BlockSpec(memory_space=pltpu.MemorySpace.SMEM),
            pl.BlockSpec(memory_space=pltpu.MemorySpace.SMEM),
            pl.BlockSpec((1, Lout), lambda b: (0, 0)),
        ],
        out_specs=(
            pl.BlockSpec((None, Chid, Lout), lambda b: (b, 0, 0)),
            pl.BlockSpec((None, Chid, 2), lambda b: (b, 0, 0)),
        ),
        out_shape=(
            jax.ShapeDtypeStruct((NB, Chid, Lout), jnp.float32),
            jax.ShapeDtypeStruct((NB, Chid, 2), jnp.float32),
        ),
        compiler_params=cparams,
    )(xflat, w1_flat, b1_f, mask)

    # ---- tiny cross-tile reduction + fold BN affine and 1x1 conv (pure JAX, O(Chid)) ----
    count = jnp.float32(N * H * W)
    total = jnp.sum(stats, axis=0)                          # (Chid, 2)
    mean = total[:, 0] / count
    var = jnp.maximum(total[:, 1] / count - mean * mean, 0.0)  # biased var (train-mode BN)
    scale = gamma.astype(jnp.float32) * jax.lax.rsqrt(var + BN_EPS)
    shift = beta.astype(jnp.float32) - mean * scale
    w2m = w2.astype(jnp.float32).reshape(Cout, Chid)
    w2_eff = (w2m * scale[None, :]).reshape(-1)             # (Cout*Chid,)
    b2_eff = b2.astype(jnp.float32) + w2m @ shift           # (Cout,)

    # ---- pass 2: normalize + 1x1 conv (folded) ----
    outT = pl.pallas_call(
        _bn_conv2_kernel,
        grid=(NB,),
        in_specs=[
            pl.BlockSpec((None, Chid, Lout), lambda b: (b, 0, 0)),
            pl.BlockSpec(memory_space=pltpu.MemorySpace.SMEM),
            pl.BlockSpec(memory_space=pltpu.MemorySpace.SMEM),
        ],
        out_specs=pl.BlockSpec((None, Cout, Lout), lambda b: (b, 0, 0)),
        out_shape=jax.ShapeDtypeStruct((NB, Cout, Lout), jnp.float32),
        compiler_params=cparams,
    )(h_all, w2_eff, b2_eff)

    # strip padded garbage columns, reassemble rows, back to NCHW
    out = outT.reshape(N, T, Cout, tile_h, Wp)[:, :, :, :, :W]
    return jnp.transpose(out, (0, 2, 1, 3, 4)).reshape(N, Cout, H, W)


def output_transition_reference(x, w1, b1, gamma, beta, w2, b2):
    """Pure-JAX reference mirroring the PyTorch forward (training-mode BN)."""
    y = jax.lax.conv_general_dilated(
        x, w1, (1, 1), ((2, 2), (2, 2)),
        dimension_numbers=('NCHW', 'OIHW', 'NCHW')) + b1[None, :, None, None]
    y = jnp.where(y > 0, y, jnp.exp(y) - 1.0)                     # ELU
    mean = jnp.mean(y, axis=(0, 2, 3), keepdims=True)
    var = jnp.mean((y - mean) ** 2, axis=(0, 2, 3), keepdims=True)
    y = (y - mean) / jnp.sqrt(var + BN_EPS)
    y = y * gamma[None, :, None, None] + beta[None, :, None, None]
    y = jax.lax.conv_general_dilated(
        y, w2, (1, 1), ((0, 0), (0, 0)),
        dimension_numbers=('NCHW', 'OIHW', 'NCHW')) + b2[None, :, None, None]
    return y


if __name__ == "__main__":
    # OutputTransition(inChans=4, outChans=1, hidChans=2, activ=True, norm='bn')
    N, Cin, H, W = 2, 4, 16, 16
    Chid, Cout = 2, 1

    key = jax.random.PRNGKey(0)
    kx, k1, k2, k3, k4, k5, k6 = jax.random.split(key, 7)
    x = jax.random.normal(kx, (N, Cin, H, W), dtype=jnp.float32)

    w1 = jax.random.normal(k1, (Chid, Cin, 5, 5), dtype=jnp.float32) * 0.1
    b1 = jax.random.normal(k2, (Chid,), dtype=jnp.float32) * 0.1
    gamma = 1.0 + 0.1 * jax.random.normal(k3, (Chid,), dtype=jnp.float32)
    beta = 0.1 * jax.random.normal(k4, (Chid,), dtype=jnp.float32)
    w2 = jax.random.normal(k5, (Cout, Chid, 1, 1), dtype=jnp.float32) * 0.1
    b2 = jax.random.normal(k6, (Cout,), dtype=jnp.float32) * 0.1

    # tile_h=8 -> 4 row-tile blocks (2 per image), exercising the cross-tile (two-pass) BN path.
    out = output_transition_pallas(x, w1, b1, gamma, beta, w2, b2, tile_h=8)
    out = jax.block_until_ready(out)

    ref = jax.block_until_ready(
        output_transition_reference(x, w1, b1, gamma, beta, w2, b2))

    np.testing.assert_allclose(np.asarray(out), np.asarray(ref),
                               rtol=1e-4, atol=1e-4)
    print("KERNEL_OK")
</pallas_src>

<mosaic_0001>
module attributes {stable_mosaic.version = 11 : i64} {
  func.func @_conv_elu_stats_kernel(%arg0: i32, %arg1: memref<1x4x244xf32, #tpu.memory_space<vmem>>, %arg2: memref<200xf32, #tpu.memory_space<smem>>, %arg3: memref<2xf32, #tpu.memory_space<smem>>, %arg4: memref<1x160xf32, #tpu.memory_space<vmem>>, %arg5: memref<1x2x160xf32, #tpu.memory_space<vmem>>, %arg6: memref<1x2x2xf32, #tpu.memory_space<vmem>>) attributes {dimension_semantics = [#tpu.dimension_semantics<parallel>], iteration_bounds = array<i64: 4>, scalar_prefetch = 0 : i64, scratch_operands = 0 : i64, tpu.core_type = #tpu.core_type<tc>, window_params = [{transform_indices = @transform_0, window_bounds = array<i64: 1, 4, 244>}, {transform_indices = @transform_1, window_bounds = array<i64: 200>}, {transform_indices = @transform_2, window_bounds = array<i64: 2>}, {pipeline_mode = #tpu.pipeline_mode<synchronous>, transform_indices = @transform_3, window_bounds = array<i64: 1, 160>}, {transform_indices = @transform_4, window_bounds = array<i64: 1, 2, 160>}, {transform_indices = @transform_5, window_bounds = array<i64: 1, 2, 2>}]} {
    %cst = arith.constant 0.000000e+00 : f32
    %0 = vector.broadcast %cst : f32 to vector<1x160xf32>
    %cst_0 = arith.constant 0.000000e+00 : f32
    %1 = vector.broadcast %cst_0 : f32 to vector<1x160xf32>
    %c0 = arith.constant 0 : index
    %c0_1 = arith.constant 0 : index
    %c0_2 = arith.constant 0 : index
    %2 = vector.load %arg1[%c0, %c0_1, %c0_2] : memref<1x4x244xf32, #tpu.memory_space<vmem>>, vector<1x4x160xf32>
    %3 = vector.shape_cast %2 : vector<1x4x160xf32> to vector<4x160xf32>
    %4 = vector.extract_strided_slice %3 {offsets = [0, 0], sizes = [1, 160], strides = [1, 1]} : vector<4x160xf32> to vector<1x160xf32>
    %c0_3 = arith.constant 0 : index
    %5 = memref.load %arg2[%c0_3] : memref<200xf32, #tpu.memory_space<smem>>
    %6 = vector.broadcast %5 : f32 to vector<1x160xf32>
    %7 = arith.mulf %6, %4 : vector<1x160xf32>
    %8 = arith.addf %0, %7 : vector<1x160xf32>
    %c100 = arith.constant 100 : index
    %9 = memref.load %arg2[%c100] : memref<200xf32, #tpu.memory_space<smem>>
    %10 = vector.broadcast %9 : f32 to vector<1x160xf32>
    %11 = arith.mulf %10, %4 : vector<1x160xf32>
    %12 = arith.addf %1, %11 : vector<1x160xf32>
    %13 = vector.extract_strided_slice %3 {offsets = [1, 0], sizes = [1, 160], strides = [1, 1]} : vector<4x160xf32> to vector<1x160xf32>
    %c25 = arith.constant 25 : index
    %14 = memref.load %arg2[%c25] : memref<200xf32, #tpu.memory_space<smem>>
    %15 = vector.broadcast %14 : f32 to vector<1x160xf32>
    %16 = arith.mulf %15, %13 : vector<1x160xf32>
    %17 = arith.addf %8, %16 : vector<1x160xf32>
    %c125 = arith.constant 125 : index
    %18 = memref.load %arg2[%c125] : memref<200xf32, #tpu.memory_space<smem>>
    %19 = vector.broadcast %18 : f32 to vector<1x160xf32>
    %20 = arith.mulf %19, %13 : vector<1x160xf32>
    %21 = arith.addf %12, %20 : vector<1x160xf32>
    %22 = vector.extract_strided_slice %3 {offsets = [2, 0], sizes = [1, 160], strides = [1, 1]} : vector<4x160xf32> to vector<1x160xf32>
    %c50 = arith.constant 50 : index
    %23 = memref.load %arg2[%c50] : memref<200xf32, #tpu.memory_space<smem>>
    %24 = vector.broadcast %23 : f32 to vector<1x160xf32>
    %25 = arith.mulf %24, %22 : vector<1x160xf32>
    %26 = arith.addf %17, %25 : vector<1x160xf32>
    %c150 = arith.constant 150 : index
    %27 = memref.load %arg2[%c150] : memref<200xf32, #tpu.memory_space<smem>>
    %28 = vector.broadcast %27 : f32 to vector<1x160xf32>
    %29 = arith.mulf %28, %22 : vector<1x160xf32>
    %30 = arith.addf %21, %29 : vector<1x160xf32>
    %31 = vector.extract_strided_slice %3 {offsets = [3, 0], sizes = [1, 160], strides = [1, 1]} : vector<4x160xf32> to vector<1x160xf32>
    %c75 = arith.constant 75 : index
    %32 = memref.load %arg2[%c75] : memref<200xf32, #tpu.memory_space<smem>>
    %33 = vector.broadcast %32 : f32 to vector<1x160xf32>
    %34 = arith.mulf %33, %31 : vector<1x160xf32>
    %35 = arith.addf %26, %34 : vector<1x160xf32>
    %c175 = arith.constant 175 : index
    %36 = memref.load %arg2[%c175] : memref<200xf32, #tpu.memory_space<smem>>
    %37 = vector.broadcast %36 : f32 to vector<1x160xf32>
    %38 = arith.mulf %37, %31 : vector<1x160xf32>
    %39 = arith.addf %30, %38 : vector<1x160xf32>
    %c0_4 = arith.constant 0 : index
    %c0_5 = arith.constant 0 : index
    %c1 = arith.constant 1 : index
    %40 = vector.load %arg1[%c0_4, %c0_5, %c1] : memref<1x4x244xf32, #tpu.memory_space<vmem>>, vector<1x4x160xf32>
    %41 = vector.shape_cast %40 : vector<1x4x160xf32> to vector<4x160xf32>
    %42 = vector.extract_strided_slice %41 {offsets = [0, 0], sizes = [1, 160], strides = [1, 1]} : vector<4x160xf32> to vector<1x160xf32>
    %c1_6 = arith.constant 1 : index
    %43 = memref.load %arg2[%c1_6] : memref<200xf32, #tpu.memory_space<smem>>
    %44 = vector.broadcast %43 : f32 to vector<1x160xf32>
    %45 = arith.mulf %44, %42 : vector<1x160xf32>
    %46 = arith.addf %35, %45 : vector<1x160xf32>
    %c101 = arith.constant 101 : index
    %47 = memref.load %arg2[%c101] : memref<200xf32, #tpu.memory_space<smem>>
    %48 = vector.broadcast %47 : f32 to vector<1x160xf32>
    %49 = arith.mulf %48, %42 : vector<1x160xf32>
    %50 = arith.addf %39, %49 : vector<1x160xf32>
    %51 = vector.extract_strided_slice %41 {offsets = [1, 0], sizes = [1, 160], strides = [1, 1]} : vector<4x160xf32> to vector<1x160xf32>
    %c26 = arith.constant 26 : index
    %52 = memref.load %arg2[%c26] : memref<200xf32, #tpu.memory_space<smem>>
    %53 = vector.broadcast %52 : f32 to vector<1x160xf32>
    %54 = arith.mulf %53, %51 : vector<1x160xf32>
    %55 = arith.addf %46, %54 : vector<1x160xf32>
    %c126 = arith.constant 126 : index
    %56 = memref.load %arg2[%c126] : memref<200xf32, #tpu.memory_space<smem>>
    %57 = vector.broadcast %56 : f32 to vector<1x160xf32>
    %58 = arith.mulf %57, %51 : vector<1x160xf32>
    %59 = arith.addf %50, %58 : vector<1x160xf32>
    %60 = vector.extract_strided_slice %41 {offsets = [2, 0], sizes = [1, 160], strides = [1, 1]} : vector<4x160xf32> to vector<1x160xf32>
    %c51 = arith.constant 51 : index
    %61 = memref.load %arg2[%c51] : memref<200xf32, #tpu.memory_space<smem>>
    %62 = vector.broadcast %61 : f32 to vector<1x160xf32>
    %63 = arith.mulf %62, %60 : vector<1x160xf32>
    %64 = arith.addf %55, %63 : vector<1x160xf32>
    %c151 = arith.constant 151 : index
    %65 = memref.load %arg2[%c151] : memref<200xf32, #tpu.memory_space<smem>>
    %66 = vector.broadcast %65 : f32 to vector<1x160xf32>
    %67 = arith.mulf %66, %60 : vector<1x160xf32>
    %68 = arith.addf %59, %67 : vector<1x160xf32>
    %69 = vector.extract_strided_slice %41 {offsets = [3, 0], sizes = [1, 160], strides = [1, 1]} : vector<4x160xf32> to vector<1x160xf32>
    %c76 = arith.constant 76 : index
    %70 = memref.load %arg2[%c76] : memref<200xf32, #tpu.memory_space<smem>>
    %71 = vector.broadcast %70 : f32 to vector<1x160xf32>
    %72 = arith.mulf %71, %69 : vector<1x160xf32>
    %73 = arith.addf %64, %72 : vector<1x160xf32>
    %c176 = arith.constant 176 : index
    %74 = memref.load %arg2[%c176] : memref<200xf32, #tpu.memory_space<smem>>
    %75 = vector.broadcast %74 : f32 to vector<1x160xf32>
    %76 = arith.mulf %75, %69 : vector<1x160xf32>
    %77 = arith.addf %68, %76 : vector<1x160xf32>
    %c0_7 = arith.constant 0 : index
    %c0_8 = arith.constant 0 : index
    %c2 = arith.constant 2 : index
    %78 = vector.load %arg1[%c0_7, %c0_8, %c2] : memref<1x4x244xf32, #tpu.memory_space<vmem>>, vector<1x4x160xf32>
    %79 = vector.shape_cast %78 : vector<1x4x160xf32> to vector<4x160xf32>
    %80 = vector.extract_strided_slice %79 {offsets = [0, 0], sizes = [1, 160], strides = [1, 1]} : vector<4x160xf32> to vector<1x160xf32>
    %c2_9 = arith.constant 2 : index
    %81 = memref.load %arg2[%c2_9] : memref<200xf32, #tpu.memory_space<smem>>
    %82 = vector.broadcast %81 : f32 to vector<1x160xf32>
    %83 = arith.mulf %82, %80 : vector<1x160xf32>
    %84 = arith.addf %73, %83 : vector<1x160xf32>
    %c102 = arith.constant 102 : index
    %85 = memref.load %arg2[%c102] : memref<200xf32, #tpu.memory_space<smem>>
    %86 = vector.broadcast %85 : f32 to vector<1x160xf32>
    %87 = arith.mulf %86, %80 : vector<1x160xf32>
    %88 = arith.addf %77, %87 : vector<1x160xf32>
    %89 = vector.extract_strided_slice %79 {offsets = [1, 0], sizes = [1, 160], strides = [1, 1]} : vector<4x160xf32> to vector<1x160xf32>
    %c27 = arith.constant 27 : index
    %90 = memref.load %arg2[%c27] : memref<200xf32, #tpu.memory_space<smem>>
    %91 = vector.broadcast %90 : f32 to vector<1x160xf32>
    %92 = arith.mulf %91, %89 : vector<1x160xf32>
    %93 = arith.addf %84, %92 : vector<1x160xf32>
    %c127 = arith.constant 127 : index
    %94 = memref.load %arg2[%c127] : memref<200xf32, #tpu.memory_space<smem>>
    %95 = vector.broadcast %94 : f32 to vector<1x160xf32>
    %96 = arith.mulf %95, %89 : vector<1x160xf32>
    %97 = arith.addf %88, %96 : vector<1x160xf32>
    %98 = vector.extract_strided_slice %79 {offsets = [2, 0], sizes = [1, 160], strides = [1, 1]} : vector<4x160xf32> to vector<1x160xf32>
    %c52 = arith.constant 52 : index
    %99 = memref.load %arg2[%c52] : memref<200xf32, #tpu.memory_space<smem>>
    %100 = vector.broadcast %99 : f32 to vector<1x160xf32>
    %101 = arith.mulf %100, %98 : vector<1x160xf32>
    %102 = arith.addf %93, %101 : vector<1x160xf32>
    %c152 = arith.constant 152 : index
    %103 = memref.load %arg2[%c152] : memref<200xf32, #tpu.memory_space<smem>>
    %104 = vector.broadcast %103 : f32 to vector<1x160xf32>
    %105 = arith.mulf %104, %98 : vector<1x160xf32>
    %106 = arith.addf %97, %105 : vector<1x160xf32>
    %107 = vector.extract_strided_slice %79 {offsets = [3, 0], sizes = [1, 160], strides = [1, 1]} : vector<4x160xf32> to vector<1x160xf32>
    %c77 = arith.constant 77 : index
    %108 = memref.load %arg2[%c77] : memref<200xf32, #tpu.memory_space<smem>>
    %109 = vector.broadcast %108 : f32 to vector<1x160xf32>
    %110 = arith.mulf %109, %107 : vector<1x160xf32>
    %111 = arith.addf %102, %110 : vector<1x160xf32>
    %c177 = arith.constant 177 : index
    %112 = memref.load %arg2[%c177] : memref<200xf32, #tpu.memory_space<smem>>
    %113 = vector.broadcast %112 : f32 to vector<1x160xf32>
    %114 = arith.mulf %113, %107 : vector<1x160xf32>
    %115 = arith.addf %106, %114 : vector<1x160xf32>
    %c0_10 = arith.constant 0 : index
    %c0_11 = arith.constant 0 : index
    %c3 = arith.constant 3 : index
    %116 = vector.load %arg1[%c0_10, %c0_11, %c3] : memref<1x4x244xf32, #tpu.memory_space<vmem>>, vector<1x4x160xf32>
    %117 = vector.shape_cast %116 : vector<1x4x160xf32> to vector<4x160xf32>
    %118 = vector.extract_strided_slice %117 {offsets = [0, 0], sizes = [1, 160], strides = [1, 1]} : vector<4x160xf32> to vector<1x160xf32>
    %c3_12 = arith.constant 3 : index
    %119 = memref.load %arg2[%c3_12] : memref<200xf32, #tpu.memory_space<smem>>
    %120 = vector.broadcast %119 : f32 to vector<1x160xf32>
    %121 = arith.mulf %120, %118 : vector<1x160xf32>
    %122 = arith.addf %111, %121 : vector<1x160xf32>
    %c103 = arith.constant 103 : index
    %123 = memref.load %arg2[%c103] : memref<200xf32, #tpu.memory_space<smem>>
    %124 = vector.broadcast %123 : f32 to vector<1x160xf32>
    %125 = arith.mulf %124, %118 : vector<1x160xf32>
    %126 = arith.addf %115, %125 : vector<1x160xf32>
    %127 = vector.extract_strided_slice %117 {offsets = [1, 0], sizes = [1, 160], strides = [1, 1]} : vector<4x160xf32> to vector<1x160xf32>
    %c28 = arith.constant 28 : index
    %128 = memref.load %arg2[%c28] : memref<200xf32, #tpu.memory_space<smem>>
    %129 = vector.broadcast %128 : f32 to vector<1x160xf32>
    %130 = arith.mulf %129, %127 : vector<1x160xf32>
    %131 = arith.addf %122, %130 : vector<1x160xf32>
    %c128 = arith.constant 128 : index
    %132 = memref.load %arg2[%c128] : memref<200xf32, #tpu.memory_space<smem>>
    %133 = vector.broadcast %132 : f32 to vector<1x160xf32>
    %134 = arith.mulf %133, %127 : vector<1x160xf32>
    %135 = arith.addf %126, %134 : vector<1x160xf32>
    %136 = vector.extract_strided_slice %117 {offsets = [2, 0], sizes = [1, 160], strides = [1, 1]} : vector<4x160xf32> to vector<1x160xf32>
    %c53 = arith.constant 53 : index
    %137 = memref.load %arg2[%c53] : memref<200xf32, #tpu.memory_space<smem>>
    %138 = vector.broadcast %137 : f32 to vector<1x160xf32>
    %139 = arith.mulf %138, %136 : vector<1x160xf32>
    %140 = arith.addf %131, %139 : vector<1x160xf32>
    %c153 = arith.constant 153 : index
    %141 = memref.load %arg2[%c153] : memref<200xf32, #tpu.memory_space<smem>>
    %142 = vector.broadcast %141 : f32 to vector<1x160xf32>
    %143 = arith.mulf %142, %136 : vector<1x160xf32>
    %144 = arith.addf %135, %143 : vector<1x160xf32>
    %145 = vector.extract_strided_slice %117 {offsets = [3, 0], sizes = [1, 160], strides = [1, 1]} : vector<4x160xf32> to vector<1x160xf32>
    %c78 = arith.constant 78 : index
    %146 = memref.load %arg2[%c78] : memref<200xf32, #tpu.memory_space<smem>>
    %147 = vector.broadcast %146 : f32 to vector<1x160xf32>
    %148 = arith.mulf %147, %145 : vector<1x160xf32>
    %149 = arith.addf %140, %148 : vector<1x160xf32>
    %c178 = arith.constant 178 : index
    %150 = memref.load %arg2[%c178] : memref<200xf32, #tpu.memory_space<smem>>
    %151 = vector.broadcast %150 : f32 to vector<1x160xf32>
    %152 = arith.mulf %151, %145 : vector<1x160xf32>
    %153 = arith.addf %144, %152 : vector<1x160xf32>
    %c0_13 = arith.constant 0 : index
    %c0_14 = arith.constant 0 : index
    %c4 = arith.constant 4 : index
    %154 = vector.load %arg1[%c0_13, %c0_14, %c4] : memref<1x4x244xf32, #tpu.memory_space<vmem>>, vector<1x4x160xf32>
    %155 = vector.shape_cast %154 : vector<1x4x160xf32> to vector<4x160xf32>
    %156 = vector.extract_strided_slice %155 {offsets = [0, 0], sizes = [1, 160], strides = [1, 1]} : vector<4x160xf32> to vector<1x160xf32>
    %c4_15 = arith.constant 4 : index
    %157 = memref.load %arg2[%c4_15] : memref<200xf32, #tpu.memory_space<smem>>
    %158 = vector.broadcast %157 : f32 to vector<1x160xf32>
    %159 = arith.mulf %158, %156 : vector<1x160xf32>
    %160 = arith.addf %149, %159 : vector<1x160xf32>
    %c104 = arith.constant 104 : index
    %161 = memref.load %arg2[%c104] : memref<200xf32, #tpu.memory_space<smem>>
    %162 = vector.broadcast %161 : f32 to vector<1x160xf32>
    %163 = arith.mulf %162, %156 : vector<1x160xf32>
    %164 = arith.addf %153, %163 : vector<1x160xf32>
    %165 = vector.extract_strided_slice %155 {offsets = [1, 0], sizes = [1, 160], strides = [1, 1]} : vector<4x160xf32> to vector<1x160xf32>
    %c29 = arith.constant 29 : index
    %166 = memref.load %arg2[%c29] : memref<200xf32, #tpu.memory_space<smem>>
    %167 = vector.broadcast %166 : f32 to vector<1x160xf32>
    %168 = arith.mulf %167, %165 : vector<1x160xf32>
    %169 = arith.addf %160, %168 : vector<1x160xf32>
    %c129 = arith.constant 129 : index
    %170 = memref.load %arg2[%c129] : memref<200xf32, #tpu.memory_space<smem>>
    %171 = vector.broadcast %170 : f32 to vector<1x160xf32>
    %172 = arith.mulf %171, %165 : vector<1x160xf32>
    %173 = arith.addf %164, %172 : vector<1x160xf32>
    %174 = vector.extract_strided_slice %155 {offsets = [2, 0], sizes = [1, 160], strides = [1, 1]} : vector<4x160xf32> to vector<1x160xf32>
    %c54 = arith.constant 54 : index
    %175 = memref.load %arg2[%c54] : memref<200xf32, #tpu.memory_space<smem>>
    %176 = vector.broadcast %175 : f32 to vector<1x160xf32>
    %177 = arith.mulf %176, %174 : vector<1x160xf32>
    %178 = arith.addf %169, %177 : vector<1x160xf32>
    %c154 = arith.constant 154 : index
    %179 = memref.load %arg2[%c154] : memref<200xf32, #tpu.memory_space<smem>>
    %180 = vector.broadcast %179 : f32 to vector<1x160xf32>
    %181 = arith.mulf %180, %174 : vector<1x160xf32>
    %182 = arith.addf %173, %181 : vector<1x160xf32>
    %183 = vector.extract_strided_slice %155 {offsets = [3, 0], sizes = [1, 160], strides = [1, 1]} : vector<4x160xf32> to vector<1x160xf32>
    %c79 = arith.constant 79 : index
    %184 = memref.load %arg2[%c79] : memref<200xf32, #tpu.memory_space<smem>>
    %185 = vector.broadcast %184 : f32 to vector<1x160xf32>
    %186 = arith.mulf %185, %183 : vector<1x160xf32>
    %187 = arith.addf %178, %186 : vector<1x160xf32>
    %c179 = arith.constant 179 : index
    %188 = memref.load %arg2[%c179] : memref<200xf32, #tpu.memory_space<smem>>
    %189 = vector.broadcast %188 : f32 to vector<1x160xf32>
    %190 = arith.mulf %189, %183 : vector<1x160xf32>
    %191 = arith.addf %182, %190 : vector<1x160xf32>
    %c0_16 = arith.constant 0 : index
    %c0_17 = arith.constant 0 : index
    %c20 = arith.constant 20 : index
    %192 = vector.load %arg1[%c0_16, %c0_17, %c20] : memref<1x4x244xf32, #tpu.memory_space<vmem>>, vector<1x4x160xf32>
    %193 = vector.shape_cast %192 : vector<1x4x160xf32> to vector<4x160xf32>
    %194 = vector.extract_strided_slice %193 {offsets = [0, 0], sizes = [1, 160], strides = [1, 1]} : vector<4x160xf32> to vector<1x160xf32>
    %c5 = arith.constant 5 : index
    %195 = memref.load %arg2[%c5] : memref<200xf32, #tpu.memory_space<smem>>
    %196 = vector.broadcast %195 : f32 to vector<1x160xf32>
    %197 = arith.mulf %196, %194 : vector<1x160xf32>
    %198 = arith.addf %187, %197 : vector<1x160xf32>
    %c105 = arith.constant 105 : index
    %199 = memref.load %arg2[%c105] : memref<200xf32, #tpu.memory_space<smem>>
    %200 = vector.broadcast %199 : f32 to vector<1x160xf32>
    %201 = arith.mulf %200, %194 : vector<1x160xf32>
    %202 = arith.addf %191, %201 : vector<1x160xf32>
    %203 = vector.extract_strided_slice %193 {offsets = [1, 0], sizes = [1, 160], strides = [1, 1]} : vector<4x160xf32> to vector<1x160xf32>
    %c30 = arith.constant 30 : index
    %204 = memref.load %arg2[%c30] : memref<200xf32, #tpu.memory_space<smem>>
    %205 = vector.broadcast %204 : f32 to vector<1x160xf32>
    %206 = arith.mulf %205, %203 : vector<1x160xf32>
    %207 = arith.addf %198, %206 : vector<1x160xf32>
    %c130 = arith.constant 130 : index
    %208 = memref.load %arg2[%c130] : memref<200xf32, #tpu.memory_space<smem>>
    %209 = vector.broadcast %208 : f32 to vector<1x160xf32>
    %210 = arith.mulf %209, %203 : vector<1x160xf32>
    %211 = arith.addf %202, %210 : vector<1x160xf32>
    %212 = vector.extract_strided_slice %193 {offsets = [2, 0], sizes = [1, 160], strides = [1, 1]} : vector<4x160xf32> to vector<1x160xf32>
    %c55 = arith.constant 55 : index
    %213 = memref.load %arg2[%c55] : memref<200xf32, #tpu.memory_space<smem>>
    %214 = vector.broadcast %213 : f32 to vector<1x160xf32>
    %215 = arith.mulf %214, %212 : vector<1x160xf32>
    %216 = arith.addf %207, %215 : vector<1x160xf32>
    %c155 = arith.constant 155 : index
    %217 = memref.load %arg2[%c155] : memref<200xf32, #tpu.memory_space<smem>>
    %218 = vector.broadcast %217 : f32 to vector<1x160xf32>
    %219 = arith.mulf %218, %212 : vector<1x160xf32>
    %220 = arith.addf %211, %219 : vector<1x160xf32>
    %221 = vector.extract_strided_slice %193 {offsets = [3, 0], sizes = [1, 160], strides = [1, 1]} : vector<4x160xf32> to vector<1x160xf32>
    %c80 = arith.constant 80 : index
    %222 = memref.load %arg2[%c80] : memref<200xf32, #tpu.memory_space<smem>>
    %223 = vector.broadcast %222 : f32 to vector<1x160xf32>
    %224 = arith.mulf %223, %221 : vector<1x160xf32>
    %225 = arith.addf %216, %224 : vector<1x160xf32>
    %c180 = arith.constant 180 : index
    %226 = memref.load %arg2[%c180] : memref<200xf32, #tpu.memory_space<smem>>
    %227 = vector.broadcast %226 : f32 to vector<1x160xf32>
    %228 = arith.mulf %227, %221 : vector<1x160xf32>
    %229 = arith.addf %220, %228 : vector<1x160xf32>
    %c0_18 = arith.constant 0 : index
    %c0_19 = arith.constant 0 : index
    %c21 = arith.constant 21 : index
    %230 = vector.load %arg1[%c0_18, %c0_19, %c21] : memref<1x4x244xf32, #tpu.memory_space<vmem>>, vector<1x4x160xf32>
    %231 = vector.shape_cast %230 : vector<1x4x160xf32> to vector<4x160xf32>
    %232 = vector.extract_strided_slice %231 {offsets = [0, 0], sizes = [1, 160], strides = [1, 1]} : vector<4x160xf32> to vector<1x160xf32>
    %c6 = arith.constant 6 : index
    %233 = memref.load %arg2[%c6] : memref<200xf32, #tpu.memory_space<smem>>
    %234 = vector.broadcast %233 : f32 to vector<1x160xf32>
    %235 = arith.mulf %234, %232 : vector<1x160xf32>
    %236 = arith.addf %225, %235 : vector<1x160xf32>
    %c106 = arith.constant 106 : index
    %237 = memref.load %arg2[%c106] : memref<200xf32, #tpu.memory_space<smem>>
    %238 = vector.broadcast %237 : f32 to vector<1x160xf32>
    %239 = arith.mulf %238, %232 : vector<1x160xf32>
    %240 = arith.addf %229, %239 : vector<1x160xf32>
    %241 = vector.extract_strided_slice %231 {offsets = [1, 0], sizes = [1, 160], strides = [1, 1]} : vector<4x160xf32> to vector<1x160xf32>
    %c31 = arith.constant 31 : index
    %242 = memref.load %arg2[%c31] : memref<200xf32, #tpu.memory_space<smem>>
    %243 = vector.broadcast %242 : f32 to vector<1x160xf32>
    %244 = arith.mulf %243, %241 : vector<1x160xf32>
    %245 = arith.addf %236, %244 : vector<1x160xf32>
    %c131 = arith.constant 131 : index
    %246 = memref.load %arg2[%c131] : memref<200xf32, #tpu.memory_space<smem>>
    %247 = vector.broadcast %246 : f32 to vector<1x160xf32>
    %248 = arith.mulf %247, %241 : vector<1x160xf32>
    %249 = arith.addf %240, %248 : vector<1x160xf32>
    %250 = vector.extract_strided_slice %231 {offsets = [2, 0], sizes = [1, 160], strides = [1, 1]} : vector<4x160xf32> to vector<1x160xf32>
    %c56 = arith.constant 56 : index
    %251 = memref.load %arg2[%c56] : memref<200xf32, #tpu.memory_space<smem>>
    %252 = vector.broadcast %251 : f32 to vector<1x160xf32>
    %253 = arith.mulf %252, %250 : vector<1x160xf32>
    %254 = arith.addf %245, %253 : vector<1x160xf32>
    %c156 = arith.constant 156 : index
    %255 = memref.load %arg2[%c156] : memref<200xf32, #tpu.memory_space<smem>>
    %256 = vector.broadcast %255 : f32 to vector<1x160xf32>
    %257 = arith.mulf %256, %250 : vector<1x160xf32>
    %258 = arith.addf %249, %257 : vector<1x160xf32>
    %259 = vector.extract_strided_slice %231 {offsets = [3, 0], sizes = [1, 160], strides = [1, 1]} : vector<4x160xf32> to vector<1x160xf32>
    %c81 = arith.constant 81 : index
    %260 = memref.load %arg2[%c81] : memref<200xf32, #tpu.memory_space<smem>>
    %261 = vector.broadcast %260 : f32 to vector<1x160xf32>
    %262 = arith.mulf %261, %259 : vector<1x160xf32>
    %263 = arith.addf %254, %262 : vector<1x160xf32>
    %c181 = arith.constant 181 : index
    %264 = memref.load %arg2[%c181] : memref<200xf32, #tpu.memory_space<smem>>
    %265 = vector.broadcast %264 : f32 to vector<1x160xf32>
    %266 = arith.mulf %265, %259 : vector<1x160xf32>
    %267 = arith.addf %258, %266 : vector<1x160xf32>
    %c0_20 = arith.constant 0 : index
    %c0_21 = arith.constant 0 : index
    %c22 = arith.constant 22 : index
    %268 = vector.load %arg1[%c0_20, %c0_21, %c22] : memref<1x4x244xf32, #tpu.memory_space<vmem>>, vector<1x4x160xf32>
    %269 = vector.shape_cast %268 : vector<1x4x160xf32> to vector<4x160xf32>
    %270 = vector.extract_strided_slice %269 {offsets = [0, 0], sizes = [1, 160], strides = [1, 1]} : vector<4x160xf32> to vector<1x160xf32>
    %c7 = arith.constant 7 : index
    %271 = memref.load %arg2[%c7] : memref<200xf32, #tpu.memory_space<smem>>
    %272 = vector.broadcast %271 : f32 to vector<1x160xf32>
    %273 = arith.mulf %272, %270 : vector<1x160xf32>
    %274 = arith.addf %263, %273 : vector<1x160xf32>
    %c107 = arith.constant 107 : index
    %275 = memref.load %arg2[%c107] : memref<200xf32, #tpu.memory_space<smem>>
    %276 = vector.broadcast %275 : f32 to vector<1x160xf32>
    %277 = arith.mulf %276, %270 : vector<1x160xf32>
    %278 = arith.addf %267, %277 : vector<1x160xf32>
    %279 = vector.extract_strided_slice %269 {offsets = [1, 0], sizes = [1, 160], strides = [1, 1]} : vector<4x160xf32> to vector<1x160xf32>
    %c32 = arith.constant 32 : index
    %280 = memref.load %arg2[%c32] : memref<200xf32, #tpu.memory_space<smem>>
    %281 = vector.broadcast %280 : f32 to vector<1x160xf32>
    %282 = arith.mulf %281, %279 : vector<1x160xf32>
    %283 = arith.addf %274, %282 : vector<1x160xf32>
    %c132 = arith.constant 132 : index
    %284 = memref.load %arg2[%c132] : memref<200xf32, #tpu.memory_space<smem>>
    %285 = vector.broadcast %284 : f32 to vector<1x160xf32>
    %286 = arith.mulf %285, %279 : vector<1x160xf32>
    %287 = arith.addf %278, %286 : vector<1x160xf32>
    %288 = vector.extract_strided_slice %269 {offsets = [2, 0], sizes = [1, 160], strides = [1, 1]} : vector<4x160xf32> to vector<1x160xf32>
    %c57 = arith.constant 57 : index
    %289 = memref.load %arg2[%c57] : memref<200xf32, #tpu.memory_space<smem>>
    %290 = vector.broadcast %289 : f32 to vector<1x160xf32>
    %291 = arith.mulf %290, %288 : vector<1x160xf32>
    %292 = arith.addf %283, %291 : vector<1x160xf32>
    %c157 = arith.constant 157 : index
    %293 = memref.load %arg2[%c157] : memref<200xf32, #tpu.memory_space<smem>>
    %294 = vector.broadcast %293 : f32 to vector<1x160xf32>
    %295 = arith.mulf %294, %288 : vector<1x160xf32>
    %296 = arith.addf %287, %295 : vector<1x160xf32>
    %297 = vector.extract_strided_slice %269 {offsets = [3, 0], sizes = [1, 160], strides = [1, 1]} : vector<4x160xf32> to vector<1x160xf32>
    %c82 = arith.constant 82 : index
    %298 = memref.load %arg2[%c82] : memref<200xf32, #tpu.memory_space<smem>>
    %299 = vector.broadcast %298 : f32 to vector<1x160xf32>
    %300 = arith.mulf %299, %297 : vector<1x160xf32>
    %301 = arith.addf %292, %300 : vector<1x160xf32>
    %c182 = arith.constant 182 : index
    %302 = memref.load %arg2[%c182] : memref<200xf32, #tpu.memory_space<smem>>
    %303 = vector.broadcast %302 : f32 to vector<1x160xf32>
    %304 = arith.mulf %303, %297 : vector<1x160xf32>
    %305 = arith.addf %296, %304 : vector<1x160xf32>
    %c0_22 = arith.constant 0 : index
    %c0_23 = arith.constant 0 : index
    %c23 = arith.constant 23 : index
    %306 = vector.load %arg1[%c0_22, %c0_23, %c23] : memref<1x4x244xf32, #tpu.memory_space<vmem>>, vector<1x4x160xf32>
    %307 = vector.shape_cast %306 : vector<1x4x160xf32> to vector<4x160xf32>
    %308 = vector.extract_strided_slice %307 {offsets = [0, 0], sizes = [1, 160], strides = [1, 1]} : vector<4x160xf32> to vector<1x160xf32>
    %c8 = arith.constant 8 : index
    %309 = memref.load %arg2[%c8] : memref<200xf32, #tpu.memory_space<smem>>
    %310 = vector.broadcast %309 : f32 to vector<1x160xf32>
    %311 = arith.mulf %310, %308 : vector<1x160xf32>
    %312 = arith.addf %301, %311 : vector<1x160xf32>
    %c108 = arith.constant 108 : index
    %313 = memref.load %arg2[%c108] : memref<200xf32, #tpu.memory_space<smem>>
    %314 = vector.broadcast %313 : f32 to vector<1x160xf32>
    %315 = arith.mulf %314, %308 : vector<1x160xf32>
    %316 = arith.addf %305, %315 : vector<1x160xf32>
    %317 = vector.extract_strided_slice %307 {offsets = [1, 0], sizes = [1, 160], strides = [1, 1]} : vector<4x160xf32> to vector<1x160xf32>
    %c33 = arith.constant 33 : index
    %318 = memref.load %arg2[%c33] : memref<200xf32, #tpu.memory_space<smem>>
    %319 = vector.broadcast %318 : f32 to vector<1x160xf32>
    %320 = arith.mulf %319, %317 : vector<1x160xf32>
    %321 = arith.addf %312, %320 : vector<1x160xf32>
    %c133 = arith.constant 133 : index
    %322 = memref.load %arg2[%c133] : memref<200xf32, #tpu.memory_space<smem>>
    %323 = vector.broadcast %322 : f32 to vector<1x160xf32>
    %324 = arith.mulf %323, %317 : vector<1x160xf32>
    %325 = arith.addf %316, %324 : vector<1x160xf32>
    %326 = vector.extract_strided_slice %307 {offsets = [2, 0], sizes = [1, 160], strides = [1, 1]} : vector<4x160xf32> to vector<1x160xf32>
    %c58 = arith.constant 58 : index
    %327 = memref.load %arg2[%c58] : memref<200xf32, #tpu.memory_space<smem>>
    %328 = vector.broadcast %327 : f32 to vector<1x160xf32>
    %329 = arith.mulf %328, %326 : vector<1x160xf32>
    %330 = arith.addf %321, %329 : vector<1x160xf32>
    %c158 = arith.constant 158 : index
    %331 = memref.load %arg2[%c158] : memref<200xf32, #tpu.memory_space<smem>>
    %332 = vector.broadcast %331 : f32 to vector<1x160xf32>
    %333 = arith.mulf %332, %326 : vector<1x160xf32>
    %334 = arith.addf %325, %333 : vector<1x160xf32>
    %335 = vector.extract_strided_slice %307 {offsets = [3, 0], sizes = [1, 160], strides = [1, 1]} : vector<4x160xf32> to vector<1x160xf32>
    %c83 = arith.constant 83 : index
    %336 = memref.load %arg2[%c83] : memref<200xf32, #tpu.memory_space<smem>>
    %337 = vector.broadcast %336 : f32 to vector<1x160xf32>
    %338 = arith.mulf %337, %335 : vector<1x160xf32>
    %339 = arith.addf %330, %338 : vector<1x160xf32>
    %c183 = arith.constant 183 : index
    %340 = memref.load %arg2[%c183] : memref<200xf32, #tpu.memory_space<smem>>
    %341 = vector.broadcast %340 : f32 to vector<1x160xf32>
    %342 = arith.mulf %341, %335 : vector<1x160xf32>
    %343 = arith.addf %334, %342 : vector<1x160xf32>
    %c0_24 = arith.constant 0 : index
    %c0_25 = arith.constant 0 : index
    %c24 = arith.constant 24 : index
    %344 = vector.load %arg1[%c0_24, %c0_25, %c24] : memref<1x4x244xf32, #tpu.memory_space<vmem>>, vector<1x4x160xf32>
    %345 = vector.shape_cast %344 : vector<1x4x160xf32> to vector<4x160xf32>
    %346 = vector.extract_strided_slice %345 {offsets = [0, 0], sizes = [1, 160], strides = [1, 1]} : vector<4x160xf32> to vector<1x160xf32>
    %c9 = arith.constant 9 : index
    %347 = memref.load %arg2[%c9] : memref<200xf32, #tpu.memory_space<smem>>
    %348 = vector.broadcast %347 : f32 to vector<1x160xf32>
    %349 = arith.mulf %348, %346 : vector<1x160xf32>
    %350 = arith.addf %339, %349 : vector<1x160xf32>
    %c109 = arith.constant 109 : index
    %351 = memref.load %arg2[%c109] : memref<200xf32, #tpu.memory_space<smem>>
    %352 = vector.broadcast %351 : f32 to vector<1x160xf32>
    %353 = arith.mulf %352, %346 : vector<1x160xf32>
    %354 = arith.addf %343, %353 : vector<1x160xf32>
    %355 = vector.extract_strided_slice %345 {offsets = [1, 0], sizes = [1, 160], strides = [1, 1]} : vector<4x160xf32> to vector<1x160xf32>
    %c34 = arith.constant 34 : index
    %356 = memref.load %arg2[%c34] : memref<200xf32, #tpu.memory_space<smem>>
    %357 = vector.broadcast %356 : f32 to vector<1x160xf32>
    %358 = arith.mulf %357, %355 : vector<1x160xf32>
    %359 = arith.addf %350, %358 : vector<1x160xf32>
    %c134 = arith.constant 134 : index
    %360 = memref.load %arg2[%c134] : memref<200xf32, #tpu.memory_space<smem>>
    %361 = vector.broadcast %360 : f32 to vector<1x160xf32>
    %362 = arith.mulf %361, %355 : vector<1x160xf32>
    %363 = arith.addf %354, %362 : vector<1x160xf32>
    %364 = vector.extract_strided_slice %345 {offsets = [2, 0], sizes = [1, 160], strides = [1, 1]} : vector<4x160xf32> to vector<1x160xf32>
    %c59 = arith.constant 59 : index
    %365 = memref.load %arg2[%c59] : memref<200xf32, #tpu.memory_space<smem>>
    %366 = vector.broadcast %365 : f32 to vector<1x160xf32>
    %367 = arith.mulf %366, %364 : vector<1x160xf32>
    %368 = arith.addf %359, %367 : vector<1x160xf32>
    %c159 = arith.constant 159 : index
    %369 = memref.load %arg2[%c159] : memref<200xf32, #tpu.memory_space<smem>>
    %370 = vector.broadcast %369 : f32 to vector<1x160xf32>
    %371 = arith.mulf %370, %364 : vector<1x160xf32>
    %372 = arith.addf %363, %371 : vector<1x160xf32>
    %373 = vector.extract_strided_slice %345 {offsets = [3, 0], sizes = [1, 160], strides = [1, 1]} : vector<4x160xf32> to vector<1x160xf32>
    %c84 = arith.constant 84 : index
    %374 = memref.load %arg2[%c84] : memref<200xf32, #tpu.memory_space<smem>>
    %375 = vector.broadcast %374 : f32 to vector<1x160xf32>
    %376 = arith.mulf %375, %373 : vector<1x160xf32>
    %377 = arith.addf %368, %376 : vector<1x160xf32>
    %c184 = arith.constant 184 : index
    %378 = memref.load %arg2[%c184] : memref<200xf32, #tpu.memory_space<smem>>
    %379 = vector.broadcast %378 : f32 to vector<1x160xf32>
    %380 = arith.mulf %379, %373 : vector<1x160xf32>
    %381 = arith.addf %372, %380 : vector<1x160xf32>
    %c0_26 = arith.constant 0 : index
    %c0_27 = arith.constant 0 : index
    %c40 = arith.constant 40 : index
    %382 = vector.load %arg1[%c0_26, %c0_27, %c40] : memref<1x4x244xf32, #tpu.memory_space<vmem>>, vector<1x4x160xf32>
    %383 = vector.shape_cast %382 : vector<1x4x160xf32> to vector<4x160xf32>
    %384 = vector.extract_strided_slice %383 {offsets = [0, 0], sizes = [1, 160], strides = [1, 1]} : vector<4x160xf32> to vector<1x160xf32>
    %c10 = arith.constant 10 : index
    %385 = memref.load %arg2[%c10] : memref<200xf32, #tpu.memory_space<smem>>
    %386 = vector.broadcast %385 : f32 to vector<1x160xf32>
    %387 = arith.mulf %386, %384 : vector<1x160xf32>
    %388 = arith.addf %377, %387 : vector<1x160xf32>
    %c110 = arith.constant 110 : index
    %389 = memref.load %arg2[%c110] : memref<200xf32, #tpu.memory_space<smem>>
    %390 = vector.broadcast %389 : f32 to vector<1x160xf32>
    %391 = arith.mulf %390, %384 : vector<1x160xf32>
    %392 = arith.addf %381, %391 : vector<1x160xf32>
    %393 = vector.extract_strided_slice %383 {offsets = [1, 0], sizes = [1, 160], strides = [1, 1]} : vector<4x160xf32> to vector<1x160xf32>
    %c35 = arith.constant 35 : index
    %394 = memref.load %arg2[%c35] : memref<200xf32, #tpu.memory_space<smem>>
    %395 = vector.broadcast %394 : f32 to vector<1x160xf32>
    %396 = arith.mulf %395, %393 : vector<1x160xf32>
    %397 = arith.addf %388, %396 : vector<1x160xf32>
    %c135 = arith.constant 135 : index
    %398 = memref.load %arg2[%c135] : memref<200xf32, #tpu.memory_space<smem>>
    %399 = vector.broadcast %398 : f32 to vector<1x160xf32>
    %400 = arith.mulf %399, %393 : vector<1x160xf32>
    %401 = arith.addf %392, %400 : vector<1x160xf32>
    %402 = vector.extract_strided_slice %383 {offsets = [2, 0], sizes = [1, 160], strides = [1, 1]} : vector<4x160xf32> to vector<1x160xf32>
    %c60 = arith.constant 60 : index
    %403 = memref.load %arg2[%c60] : memref<200xf32, #tpu.memory_space<smem>>
    %404 = vector.broadcast %403 : f32 to vector<1x160xf32>
    %405 = arith.mulf %404, %402 : vector<1x160xf32>
    %406 = arith.addf %397, %405 : vector<1x160xf32>
    %c160 = arith.constant 160 : index
    %407 = memref.load %arg2[%c160] : memref<200xf32, #tpu.memory_space<smem>>
    %408 = vector.broadcast %407 : f32 to vector<1x160xf32>
    %409 = arith.mulf %408, %402 : vector<1x160xf32>
    %410 = arith.addf %401, %409 : vector<1x160xf32>
    %411 = vector.extract_strided_slice %383 {offsets = [3, 0], sizes = [1, 160], strides = [1, 1]} : vector<4x160xf32> to vector<1x160xf32>
    %c85 = arith.constant 85 : index
    %412 = memref.load %arg2[%c85] : memref<200xf32, #tpu.memory_space<smem>>
    %413 = vector.broadcast %412 : f32 to vector<1x160xf32>
    %414 = arith.mulf %413, %411 : vector<1x160xf32>
    %415 = arith.addf %406, %414 : vector<1x160xf32>
    %c185 = arith.constant 185 : index
    %416 = memref.load %arg2[%c185] : memref<200xf32, #tpu.memory_space<smem>>
    %417 = vector.broadcast %416 : f32 to vector<1x160xf32>
    %418 = arith.mulf %417, %411 : vector<1x160xf32>
    %419 = arith.addf %410, %418 : vector<1x160xf32>
    %c0_28 = arith.constant 0 : index
    %c0_29 = arith.constant 0 : index
    %c41 = arith.constant 41 : index
    %420 = vector.load %arg1[%c0_28, %c0_29, %c41] : memref<1x4x244xf32, #tpu.memory_space<vmem>>, vector<1x4x160xf32>
    %421 = vector.shape_cast %420 : vector<1x4x160xf32> to vector<4x160xf32>
    %422 = vector.extract_strided_slice %421 {offsets = [0, 0], sizes = [1, 160], strides = [1, 1]} : vector<4x160xf32> to vector<1x160xf32>
    %c11 = arith.constant 11 : index
    %423 = memref.load %arg2[%c11] : memref<200xf32, #tpu.memory_space<smem>>
    %424 = vector.broadcast %423 : f32 to vector<1x160xf32>
    %425 = arith.mulf %424, %422 : vector<1x160xf32>
    %426 = arith.addf %415, %425 : vector<1x160xf32>
    %c111 = arith.constant 111 : index
    %427 = memref.load %arg2[%c111] : memref<200xf32, #tpu.memory_space<smem>>
    %428 = vector.broadcast %427 : f32 to vector<1x160xf32>
    %429 = arith.mulf %428, %422 : vector<1x160xf32>
    %430 = arith.addf %419, %429 : vector<1x160xf32>
    %431 = vector.extract_strided_slice %421 {offsets = [1, 0], sizes = [1, 160], strides = [1, 1]} : vector<4x160xf32> to vector<1x160xf32>
    %c36 = arith.constant 36 : index
    %432 = memref.load %arg2[%c36] : memref<200xf32, #tpu.memory_space<smem>>
    %433 = vector.broadcast %432 : f32 to vector<1x160xf32>
    %434 = arith.mulf %433, %431 : vector<1x160xf32>
    %435 = arith.addf %426, %434 : vector<1x160xf32>
    %c136 = arith.constant 136 : index
    %436 = memref.load %arg2[%c136] : memref<200xf32, #tpu.memory_space<smem>>
    %437 = vector.broadcast %436 : f32 to vector<1x160xf32>
    %438 = arith.mulf %437, %431 : vector<1x160xf32>
    %439 = arith.addf %430, %438 : vector<1x160xf32>
    %440 = vector.extract_strided_slice %421 {offsets = [2, 0], sizes = [1, 160], strides = [1, 1]} : vector<4x160xf32> to vector<1x160xf32>
    %c61 = arith.constant 61 : index
    %441 = memref.load %arg2[%c61] : memref<200xf32, #tpu.memory_space<smem>>
    %442 = vector.broadcast %441 : f32 to vector<1x160xf32>
    %443 = arith.mulf %442, %440 : vector<1x160xf32>
    %444 = arith.addf %435, %443 : vector<1x160xf32>
    %c161 = arith.constant 161 : index
    %445 = memref.load %arg2[%c161] : memref<200xf32, #tpu.memory_space<smem>>
    %446 = vector.broadcast %445 : f32 to vector<1x160xf32>
    %447 = arith.mulf %446, %440 : vector<1x160xf32>
    %448 = arith.addf %439, %447 : vector<1x160xf32>
    %449 = vector.extract_strided_slice %421 {offsets = [3, 0], sizes = [1, 160], strides = [1, 1]} : vector<4x160xf32> to vector<1x160xf32>
    %c86 = arith.constant 86 : index
    %450 = memref.load %arg2[%c86] : memref<200xf32, #tpu.memory_space<smem>>
    %451 = vector.broadcast %450 : f32 to vector<1x160xf32>
    %452 = arith.mulf %451, %449 : vector<1x160xf32>
    %453 = arith.addf %444, %452 : vector<1x160xf32>
    %c186 = arith.constant 186 : index
    %454 = memref.load %arg2[%c186] : memref<200xf32, #tpu.memory_space<smem>>
    %455 = vector.broadcast %454 : f32 to vector<1x160xf32>
    %456 = arith.mulf %455, %449 : vector<1x160xf32>
    %457 = arith.addf %448, %456 : vector<1x160xf32>
    %c0_30 = arith.constant 0 : index
    %c0_31 = arith.constant 0 : index
    %c42 = arith.constant 42 : index
    %458 = vector.load %arg1[%c0_30, %c0_31, %c42] : memref<1x4x244xf32, #tpu.memory_space<vmem>>, vector<1x4x160xf32>
    %459 = vector.shape_cast %458 : vector<1x4x160xf32> to vector<4x160xf32>
    %460 = vector.extract_strided_slice %459 {offsets = [0, 0], sizes = [1, 160], strides = [1, 1]} : vector<4x160xf32> to vector<1x160xf32>
    %c12 = arith.constant 12 : index
    %461 = memref.load %arg2[%c12] : memref<200xf32, #tpu.memory_space<smem>>
    %462 = vector.broadcast %461 : f32 to vector<1x160xf32>
    %463 = arith.mulf %462, %460 : vector<1x160xf32>
    %464 = arith.addf %453, %463 : vector<1x160xf32>
    %c112 = arith.constant 112 : index
    %465 = memref.load %arg2[%c112] : memref<200xf32, #tpu.memory_space<smem>>
    %466 = vector.broadcast %465 : f32 to vector<1x160xf32>
    %467 = arith.mulf %466, %460 : vector<1x160xf32>
    %468 = arith.addf %457, %467 : vector<1x160xf32>
    %469 = vector.extract_strided_slice %459 {offsets = [1, 0], sizes = [1, 160], strides = [1, 1]} : vector<4x160xf32> to vector<1x160xf32>
    %c37 = arith.constant 37 : index
    %470 = memref.load %arg2[%c37] : memref<200xf32, #tpu.memory_space<smem>>
    %471 = vector.broadcast %470 : f32 to vector<1x160xf32>
    %472 = arith.mulf %471, %469 : vector<1x160xf32>
    %473 = arith.addf %464, %472 : vector<1x160xf32>
    %c137 = arith.constant 137 : index
    %474 = memref.load %arg2[%c137] : memref<200xf32, #tpu.memory_space<smem>>
    %475 = vector.broadcast %474 : f32 to vector<1x160xf32>
    %476 = arith.mulf %475, %469 : vector<1x160xf32>
    %477 = arith.addf %468, %476 : vector<1x160xf32>
    %478 = vector.extract_strided_slice %459 {offsets = [2, 0], sizes = [1, 160], strides = [1, 1]} : vector<4x160xf32> to vector<1x160xf32>
    %c62 = arith.constant 62 : index
    %479 = memref.load %arg2[%c62] : memref<200xf32, #tpu.memory_space<smem>>
    %480 = vector.broadcast %479 : f32 to vector<1x160xf32>
    %481 = arith.mulf %480, %478 : vector<1x160xf32>
    %482 = arith.addf %473, %481 : vector<1x160xf32>
    %c162 = arith.constant 162 : index
    %483 = memref.load %arg2[%c162] : memref<200xf32, #tpu.memory_space<smem>>
    %484 = vector.broadcast %483 : f32 to vector<1x160xf32>
    %485 = arith.mulf %484, %478 : vector<1x160xf32>
    %486 = arith.addf %477, %485 : vector<1x160xf32>
    %487 = vector.extract_strided_slice %459 {offsets = [3, 0], sizes = [1, 160], strides = [1, 1]} : vector<4x160xf32> to vector<1x160xf32>
    %c87 = arith.constant 87 : index
    %488 = memref.load %arg2[%c87] : memref<200xf32, #tpu.memory_space<smem>>
    %489 = vector.broadcast %488 : f32 to vector<1x160xf32>
    %490 = arith.mulf %489, %487 : vector<1x160xf32>
    %491 = arith.addf %482, %490 : vector<1x160xf32>
    %c187 = arith.constant 187 : index
    %492 = memref.load %arg2[%c187] : memref<200xf32, #tpu.memory_space<smem>>
    %493 = vector.broadcast %492 : f32 to vector<1x160xf32>
    %494 = arith.mulf %493, %487 : vector<1x160xf32>
    %495 = arith.addf %486, %494 : vector<1x160xf32>
    %c0_32 = arith.constant 0 : index
    %c0_33 = arith.constant 0 : index
    %c43 = arith.constant 43 : index
    %496 = vector.load %arg1[%c0_32, %c0_33, %c43] : memref<1x4x244xf32, #tpu.memory_space<vmem>>, vector<1x4x160xf32>
    %497 = vector.shape_cast %496 : vector<1x4x160xf32> to vector<4x160xf32>
    %498 = vector.extract_strided_slice %497 {offsets = [0, 0], sizes = [1, 160], strides = [1, 1]} : vector<4x160xf32> to vector<1x160xf32>
    %c13 = arith.constant 13 : index
    %499 = memref.load %arg2[%c13] : memref<200xf32, #tpu.memory_space<smem>>
    %500 = vector.broadcast %499 : f32 to vector<1x160xf32>
    %501 = arith.mulf %500, %498 : vector<1x160xf32>
    %502 = arith.addf %491, %501 : vector<1x160xf32>
    %c113 = arith.constant 113 : index
    %503 = memref.load %arg2[%c113] : memref<200xf32, #tpu.memory_space<smem>>
    %504 = vector.broadcast %503 : f32 to vector<1x160xf32>
    %505 = arith.mulf %504, %498 : vector<1x160xf32>
    %506 = arith.addf %495, %505 : vector<1x160xf32>
    %507 = vector.extract_strided_slice %497 {offsets = [1, 0], sizes = [1, 160], strides = [1, 1]} : vector<4x160xf32> to vector<1x160xf32>
    %c38 = arith.constant 38 : index
    %508 = memref.load %arg2[%c38] : memref<200xf32, #tpu.memory_space<smem>>
    %509 = vector.broadcast %508 : f32 to vector<1x160xf32>
    %510 = arith.mulf %509, %507 : vector<1x160xf32>
    %511 = arith.addf %502, %510 : vector<1x160xf32>
    %c138 = arith.constant 138 : index
    %512 = memref.load %arg2[%c138] : memref<200xf32, #tpu.memory_space<smem>>
    %513 = vector.broadcast %512 : f32 to vector<1x160xf32>
    %514 = arith.mulf %513, %507 : vector<1x160xf32>
    %515 = arith.addf %506, %514 : vector<1x160xf32>
    %516 = vector.extract_strided_slice %497 {offsets = [2, 0], sizes = [1, 160], strides = [1, 1]} : vector<4x160xf32> to vector<1x160xf32>
    %c63 = arith.constant 63 : index
    %517 = memref.load %arg2[%c63] : memref<200xf32, #tpu.memory_space<smem>>
    %518 = vector.broadcast %517 : f32 to vector<1x160xf32>
    %519 = arith.mulf %518, %516 : vector<1x160xf32>
    %520 = arith.addf %511, %519 : vector<1x160xf32>
    %c163 = arith.constant 163 : index
    %521 = memref.load %arg2[%c163] : memref<200xf32, #tpu.memory_space<smem>>
    %522 = vector.broadcast %521 : f32 to vector<1x160xf32>
    %523 = arith.mulf %522, %516 : vector<1x160xf32>
    %524 = arith.addf %515, %523 : vector<1x160xf32>
    %525 = vector.extract_strided_slice %497 {offsets = [3, 0], sizes = [1, 160], strides = [1, 1]} : vector<4x160xf32> to vector<1x160xf32>
    %c88 = arith.constant 88 : index
    %526 = memref.load %arg2[%c88] : memref<200xf32, #tpu.memory_space<smem>>
    %527 = vector.broadcast %526 : f32 to vector<1x160xf32>
    %528 = arith.mulf %527, %525 : vector<1x160xf32>
    %529 = arith.addf %520, %528 : vector<1x160xf32>
    %c188 = arith.constant 188 : index
    %530 = memref.load %arg2[%c188] : memref<200xf32, #tpu.memory_space<smem>>
    %531 = vector.broadcast %530 : f32 to vector<1x160xf32>
    %532 = arith.mulf %531, %525 : vector<1x160xf32>
    %533 = arith.addf %524, %532 : vector<1x160xf32>
    %c0_34 = arith.constant 0 : index
    %c0_35 = arith.constant 0 : index
    %c44 = arith.constant 44 : index
    %534 = vector.load %arg1[%c0_34, %c0_35, %c44] : memref<1x4x244xf32, #tpu.memory_space<vmem>>, vector<1x4x160xf32>
    %535 = vector.shape_cast %534 : vector<1x4x160xf32> to vector<4x160xf32>
    %536 = vector.extract_strided_slice %535 {offsets = [0, 0], sizes = [1, 160], strides = [1, 1]} : vector<4x160xf32> to vector<1x160xf32>
    %c14 = arith.constant 14 : index
    %537 = memref.load %arg2[%c14] : memref<200xf32, #tpu.memory_space<smem>>
    %538 = vector.broadcast %537 : f32 to vector<1x160xf32>
    %539 = arith.mulf %538, %536 : vector<1x160xf32>
    %540 = arith.addf %529, %539 : vector<1x160xf32>
    %c114 = arith.constant 114 : index
    %541 = memref.load %arg2[%c114] : memref<200xf32, #tpu.memory_space<smem>>
    %542 = vector.broadcast %541 : f32 to vector<1x160xf32>
    %543 = arith.mulf %542, %536 : vector<1x160xf32>
    %544 = arith.addf %533, %543 : vector<1x160xf32>
    %545 = vector.extract_strided_slice %535 {offsets = [1, 0], sizes = [1, 160], strides = [1, 1]} : vector<4x160xf32> to vector<1x160xf32>
    %c39 = arith.constant 39 : index
    %546 = memref.load %arg2[%c39] : memref<200xf32, #tpu.memory_space<smem>>
    %547 = vector.broadcast %546 : f32 to vector<1x160xf32>
    %548 = arith.mulf %547, %545 : vector<1x160xf32>
    %549 = arith.addf %540, %548 : vector<1x160xf32>
    %c139 = arith.constant 139 : index
    %550 = memref.load %arg2[%c139] : memref<200xf32, #tpu.memory_space<smem>>
    %551 = vector.broadcast %550 : f32 to vector<1x160xf32>
    %552 = arith.mulf %551, %545 : vector<1x160xf32>
    %553 = arith.addf %544, %552 : vector<1x160xf32>
    %554 = vector.extract_strided_slice %535 {offsets = [2, 0], sizes = [1, 160], strides = [1, 1]} : vector<4x160xf32> to vector<1x160xf32>
    %c64 = arith.constant 64 : index
    %555 = memref.load %arg2[%c64] : memref<200xf32, #tpu.memory_space<smem>>
    %556 = vector.broadcast %555 : f32 to vector<1x160xf32>
    %557 = arith.mulf %556, %554 : vector<1x160xf32>
    %558 = arith.addf %549, %557 : vector<1x160xf32>
    %c164 = arith.constant 164 : index
    %559 = memref.load %arg2[%c164] : memref<200xf32, #tpu.memory_space<smem>>
    %560 = vector.broadcast %559 : f32 to vector<1x160xf32>
    %561 = arith.mulf %560, %554 : vector<1x160xf32>
    %562 = arith.addf %553, %561 : vector<1x160xf32>
    %563 = vector.extract_strided_slice %535 {offsets = [3, 0], sizes = [1, 160], strides = [1, 1]} : vector<4x160xf32> to vector<1x160xf32>
    %c89 = arith.constant 89 : index
    %564 = memref.load %arg2[%c89] : memref<200xf32, #tpu.memory_space<smem>>
    %565 = vector.broadcast %564 : f32 to vector<1x160xf32>
    %566 = arith.mulf %565, %563 : vector<1x160xf32>
    %567 = arith.addf %558, %566 : vector<1x160xf32>
    %c189 = arith.constant 189 : index
    %568 = memref.load %arg2[%c189] : memref<200xf32, #tpu.memory_space<smem>>
    %569 = vector.broadcast %568 : f32 to vector<1x160xf32>
    %570 = arith.mulf %569, %563 : vector<1x160xf32>
    %571 = arith.addf %562, %570 : vector<1x160xf32>
    %c0_36 = arith.constant 0 : index
    %c0_37 = arith.constant 0 : index
    %c60_38 = arith.constant 60 : index
    %572 = vector.load %arg1[%c0_36, %c0_37, %c60_38] : memref<1x4x244xf32, #tpu.memory_space<vmem>>, vector<1x4x160xf32>
    %573 = vector.shape_cast %572 : vector<1x4x160xf32> to vector<4x160xf32>
    %574 = vector.extract_strided_slice %573 {offsets = [0, 0], sizes = [1, 160], strides = [1, 1]} : vector<4x160xf32> to vector<1x160xf32>
    %c15 = arith.constant 15 : index
    %575 = memref.load %arg2[%c15] : memref<200xf32, #tpu.memory_space<smem>>
    %576 = vector.broadcast %575 : f32 to vector<1x160xf32>
    %577 = arith.mulf %576, %574 : vector<1x160xf32>
    %578 = arith.addf %567, %577 : vector<1x160xf32>
    %c115 = arith.constant 115 : index
    %579 = memref.load %arg2[%c115] : memref<200xf32, #tpu.memory_space<smem>>
    %580 = vector.broadcast %579 : f32 to vector<1x160xf32>
    %581 = arith.mulf %580, %574 : vector<1x160xf32>
    %582 = arith.addf %571, %581 : vector<1x160xf32>
    %583 = vector.extract_strided_slice %573 {offsets = [1, 0], sizes = [1, 160], strides = [1, 1]} : vector<4x160xf32> to vector<1x160xf32>
    %c40_39 = arith.constant 40 : index
    %584 = memref.load %arg2[%c40_39] : memref<200xf32, #tpu.memory_space<smem>>
    %585 = vector.broadcast %584 : f32 to vector<1x160xf32>
    %586 = arith.mulf %585, %583 : vector<1x160xf32>
    %587 = arith.addf %578, %586 : vector<1x160xf32>
    %c140 = arith.constant 140 : index
    %588 = memref.load %arg2[%c140] : memref<200xf32, #tpu.memory_space<smem>>
    %589 = vector.broadcast %588 : f32 to vector<1x160xf32>
    %590 = arith.mulf %589, %583 : vector<1x160xf32>
    %591 = arith.addf %582, %590 : vector<1x160xf32>
    %592 = vector.extract_strided_slice %573 {offsets = [2, 0], sizes = [1, 160], strides = [1, 1]} : vector<4x160xf32> to vector<1x160xf32>
    %c65 = arith.constant 65 : index
    %593 = memref.load %arg2[%c65] : memref<200xf32, #tpu.memory_space<smem>>
    %594 = vector.broadcast %593 : f32 to vector<1x160xf32>
    %595 = arith.mulf %594, %592 : vector<1x160xf32>
    %596 = arith.addf %587, %595 : vector<1x160xf32>
    %c165 = arith.constant 165 : index
    %597 = memref.load %arg2[%c165] : memref<200xf32, #tpu.memory_space<smem>>
    %598 = vector.broadcast %597 : f32 to vector<1x160xf32>
    %599 = arith.mulf %598, %592 : vector<1x160xf32>
    %600 = arith.addf %591, %599 : vector<1x160xf32>
    %601 = vector.extract_strided_slice %573 {offsets = [3, 0], sizes = [1, 160], strides = [1, 1]} : vector<4x160xf32> to vector<1x160xf32>
    %c90 = arith.constant 90 : index
    %602 = memref.load %arg2[%c90] : memref<200xf32, #tpu.memory_space<smem>>
    %603 = vector.broadcast %602 : f32 to vector<1x160xf32>
    %604 = arith.mulf %603, %601 : vector<1x160xf32>
    %605 = arith.addf %596, %604 : vector<1x160xf32>
    %c190 = arith.constant 190 : index
    %606 = memref.load %arg2[%c190] : memref<200xf32, #tpu.memory_space<smem>>
    %607 = vector.broadcast %606 : f32 to vector<1x160xf32>
    %608 = arith.mulf %607, %601 : vector<1x160xf32>
    %609 = arith.addf %600, %608 : vector<1x160xf32>
    %c0_40 = arith.constant 0 : index
    %c0_41 = arith.constant 0 : index
    %c61_42 = arith.constant 61 : index
    %610 = vector.load %arg1[%c0_40, %c0_41, %c61_42] : memref<1x4x244xf32, #tpu.memory_space<vmem>>, vector<1x4x160xf32>
    %611 = vector.shape_cast %610 : vector<1x4x160xf32> to vector<4x160xf32>
    %612 = vector.extract_strided_slice %611 {offsets = [0, 0], sizes = [1, 160], strides = [1, 1]} : vector<4x160xf32> to vector<1x160xf32>
    %c16 = arith.constant 16 : index
    %613 = memref.load %arg2[%c16] : memref<200xf32, #tpu.memory_space<smem>>
    %614 = vector.broadcast %613 : f32 to vector<1x160xf32>
    %615 = arith.mulf %614, %612 : vector<1x160xf32>
    %616 = arith.addf %605, %615 : vector<1x160xf32>
    %c116 = arith.constant 116 : index
    %617 = memref.load %arg2[%c116] : memref<200xf32, #tpu.memory_space<smem>>
    %618 = vector.broadcast %617 : f32 to vector<1x160xf32>
    %619 = arith.mulf %618, %612 : vector<1x160xf32>
    %620 = arith.addf %609, %619 : vector<1x160xf32>
    %621 = vector.extract_strided_slice %611 {offsets = [1, 0], sizes = [1, 160], strides = [1, 1]} : vector<4x160xf32> to vector<1x160xf32>
    %c41_43 = arith.constant 41 : index
    %622 = memref.load %arg2[%c41_43] : memref<200xf32, #tpu.memory_space<smem>>
    %623 = vector.broadcast %622 : f32 to vector<1x160xf32>
    %624 = arith.mulf %623, %621 : vector<1x160xf32>
    %625 = arith.addf %616, %624 : vector<1x160xf32>
    %c141 = arith.constant 141 : index
    %626 = memref.load %arg2[%c141] : memref<200xf32, #tpu.memory_space<smem>>
    %627 = vector.broadcast %626 : f32 to vector<1x160xf32>
    %628 = arith.mulf %627, %621 : vector<1x160xf32>
    %629 = arith.addf %620, %628 : vector<1x160xf32>
    %630 = vector.extract_strided_slice %611 {offsets = [2, 0], sizes = [1, 160], strides = [1, 1]} : vector<4x160xf32> to vector<1x160xf32>
    %c66 = arith.constant 66 : index
    %631 = memref.load %arg2[%c66] : memref<200xf32, #tpu.memory_space<smem>>
    %632 = vector.broadcast %631 : f32 to vector<1x160xf32>
    %633 = arith.mulf %632, %630 : vector<1x160xf32>
    %634 = arith.addf %625, %633 : vector<1x160xf32>
    %c166 = arith.constant 166 : index
    %635 = memref.load %arg2[%c166] : memref<200xf32, #tpu.memory_space<smem>>
    %636 = vector.broadcast %635 : f32 to vector<1x160xf32>
    %637 = arith.mulf %636, %630 : vector<1x160xf32>
    %638 = arith.addf %629, %637 : vector<1x160xf32>
    %639 = vector.extract_strided_slice %611 {offsets = [3, 0], sizes = [1, 160], strides = [1, 1]} : vector<4x160xf32> to vector<1x160xf32>
    %c91 = arith.constant 91 : index
    %640 = memref.load %arg2[%c91] : memref<200xf32, #tpu.memory_space<smem>>
    %641 = vector.broadcast %640 : f32 to vector<1x160xf32>
    %642 = arith.mulf %641, %639 : vector<1x160xf32>
    %643 = arith.addf %634, %642 : vector<1x160xf32>
    %c191 = arith.constant 191 : index
    %644 = memref.load %arg2[%c191] : memref<200xf32, #tpu.memory_space<smem>>
    %645 = vector.broadcast %644 : f32 to vector<1x160xf32>
    %646 = arith.mulf %645, %639 : vector<1x160xf32>
    %647 = arith.addf %638, %646 : vector<1x160xf32>
    %c0_44 = arith.constant 0 : index
    %c0_45 = arith.constant 0 : index
    %c62_46 = arith.constant 62 : index
    %648 = vector.load %arg1[%c0_44, %c0_45, %c62_46] : memref<1x4x244xf32, #tpu.memory_space<vmem>>, vector<1x4x160xf32>
    %649 = vector.shape_cast %648 : vector<1x4x160xf32> to vector<4x160xf32>
    %650 = vector.extract_strided_slice %649 {offsets = [0, 0], sizes = [1, 160], strides = [1, 1]} : vector<4x160xf32> to vector<1x160xf32>
    %c17 = arith.constant 17 : index
    %651 = memref.load %arg2[%c17] : memref<200xf32, #tpu.memory_space<smem>>
    %652 = vector.broadcast %651 : f32 to vector<1x160xf32>
    %653 = arith.mulf %652, %650 : vector<1x160xf32>
    %654 = arith.addf %643, %653 : vector<1x160xf32>
    %c117 = arith.constant 117 : index
    %655 = memref.load %arg2[%c117] : memref<200xf32, #tpu.memory_space<smem>>
    %656 = vector.broadcast %655 : f32 to vector<1x160xf32>
    %657 = arith.mulf %656, %650 : vector<1x160xf32>
    %658 = arith.addf %647, %657 : vector<1x160xf32>
    %659 = vector.extract_strided_slice %649 {offsets = [1, 0], sizes = [1, 160], strides = [1, 1]} : vector<4x160xf32> to vector<1x160xf32>
    %c42_47 = arith.constant 42 : index
    %660 = memref.load %arg2[%c42_47] : memref<200xf32, #tpu.memory_space<smem>>
    %661 = vector.broadcast %660 : f32 to vector<1x160xf32>
    %662 = arith.mulf %661, %659 : vector<1x160xf32>
    %663 = arith.addf %654, %662 : vector<1x160xf32>
    %c142 = arith.constant 142 : index
    %664 = memref.load %arg2[%c142] : memref<200xf32, #tpu.memory_space<smem>>
    %665 = vector.broadcast %664 : f32 to vector<1x160xf32>
    %666 = arith.mulf %665, %659 : vector<1x160xf32>
    %667 = arith.addf %658, %666 : vector<1x160xf32>
    %668 = vector.extract_strided_slice %649 {offsets = [2, 0], sizes = [1, 160], strides = [1, 1]} : vector<4x160xf32> to vector<1x160xf32>
    %c67 = arith.constant 67 : index
    %669 = memref.load %arg2[%c67] : memref<200xf32, #tpu.memory_space<smem>>
    %670 = vector.broadcast %669 : f32 to vector<1x160xf32>
    %671 = arith.mulf %670, %668 : vector<1x160xf32>
    %672 = arith.addf %663, %671 : vector<1x160xf32>
    %c167 = arith.constant 167 : index
    %673 = memref.load %arg2[%c167] : memref<200xf32, #tpu.memory_space<smem>>
    %674 = vector.broadcast %673 : f32 to vector<1x160xf32>
    %675 = arith.mulf %674, %668 : vector<1x160xf32>
    %676 = arith.addf %667, %675 : vector<1x160xf32>
    %677 = vector.extract_strided_slice %649 {offsets = [3, 0], sizes = [1, 160], strides = [1, 1]} : vector<4x160xf32> to vector<1x160xf32>
    %c92 = arith.constant 92 : index
    %678 = memref.load %arg2[%c92] : memref<200xf32, #tpu.memory_space<smem>>
    %679 = vector.broadcast %678 : f32 to vector<1x160xf32>
    %680 = arith.mulf %679, %677 : vector<1x160xf32>
    %681 = arith.addf %672, %680 : vector<1x160xf32>
    %c192 = arith.constant 192 : index
    %682 = memref.load %arg2[%c192] : memref<200xf32, #tpu.memory_space<smem>>
    %683 = vector.broadcast %682 : f32 to vector<1x160xf32>
    %684 = arith.mulf %683, %677 : vector<1x160xf32>
    %685 = arith.addf %676, %684 : vector<1x160xf32>
    %c0_48 = arith.constant 0 : index
    %c0_49 = arith.constant 0 : index
    %c63_50 = arith.constant 63 : index
    %686 = vector.load %arg1[%c0_48, %c0_49, %c63_50] : memref<1x4x244xf32, #tpu.memory_space<vmem>>, vector<1x4x160xf32>
    %687 = vector.shape_cast %686 : vector<1x4x160xf32> to vector<4x160xf32>
    %688 = vector.extract_strided_slice %687 {offsets = [0, 0], sizes = [1, 160], strides = [1, 1]} : vector<4x160xf32> to vector<1x160xf32>
    %c18 = arith.constant 18 : index
    %689 = memref.load %arg2[%c18] : memref<200xf32, #tpu.memory_space<smem>>
    %690 = vector.broadcast %689 : f32 to vector<1x160xf32>
    %691 = arith.mulf %690, %688 : vector<1x160xf32>
    %692 = arith.addf %681, %691 : vector<1x160xf32>
    %c118 = arith.constant 118 : index
    %693 = memref.load %arg2[%c118] : memref<200xf32, #tpu.memory_space<smem>>
    %694 = vector.broadcast %693 : f32 to vector<1x160xf32>
    %695 = arith.mulf %694, %688 : vector<1x160xf32>
    %696 = arith.addf %685, %695 : vector<1x160xf32>
    %697 = vector.extract_strided_slice %687 {offsets = [1, 0], sizes = [1, 160], strides = [1, 1]} : vector<4x160xf32> to vector<1x160xf32>
    %c43_51 = arith.constant 43 : index
    %698 = memref.load %arg2[%c43_51] : memref<200xf32, #tpu.memory_space<smem>>
    %699 = vector.broadcast %698 : f32 to vector<1x160xf32>
    %700 = arith.mulf %699, %697 : vector<1x160xf32>
    %701 = arith.addf %692, %700 : vector<1x160xf32>
    %c143 = arith.constant 143 : index
    %702 = memref.load %arg2[%c143] : memref<200xf32, #tpu.memory_space<smem>>
    %703 = vector.broadcast %702 : f32 to vector<1x160xf32>
    %704 = arith.mulf %703, %697 : vector<1x160xf32>
    %705 = arith.addf %696, %704 : vector<1x160xf32>
    %706 = vector.extract_strided_slice %687 {offsets = [2, 0], sizes = [1, 160], strides = [1, 1]} : vector<4x160xf32> to vector<1x160xf32>
    %c68 = arith.constant 68 : index
    %707 = memref.load %arg2[%c68] : memref<200xf32, #tpu.memory_space<smem>>
    %708 = vector.broadcast %707 : f32 to vector<1x160xf32>
    %709 = arith.mulf %708, %706 : vector<1x160xf32>
    %710 = arith.addf %701, %709 : vector<1x160xf32>
    %c168 = arith.constant 168 : index
    %711 = memref.load %arg2[%c168] : memref<200xf32, #tpu.memory_space<smem>>
    %712 = vector.broadcast %711 : f32 to vector<1x160xf32>
    %713 = arith.mulf %712, %706 : vector<1x160xf32>
    %714 = arith.addf %705, %713 : vector<1x160xf32>
    %715 = vector.extract_strided_slice %687 {offsets = [3, 0], sizes = [1, 160], strides = [1, 1]} : vector<4x160xf32> to vector<1x160xf32>
    %c93 = arith.constant 93 : index
    %716 = memref.load %arg2[%c93] : memref<200xf32, #tpu.memory_space<smem>>
    %717 = vector.broadcast %716 : f32 to vector<1x160xf32>
    %718 = arith.mulf %717, %715 : vector<1x160xf32>
    %719 = arith.addf %710, %718 : vector<1x160xf32>
    %c193 = arith.constant 193 : index
    %720 = memref.load %arg2[%c193] : memref<200xf32, #tpu.memory_space<smem>>
    %721 = vector.broadcast %720 : f32 to vector<1x160xf32>
    %722 = arith.mulf %721, %715 : vector<1x160xf32>
    %723 = arith.addf %714, %722 : vector<1x160xf32>
    %c0_52 = arith.constant 0 : index
    %c0_53 = arith.constant 0 : index
    %c64_54 = arith.constant 64 : index
    %724 = vector.load %arg1[%c0_52, %c0_53, %c64_54] : memref<1x4x244xf32, #tpu.memory_space<vmem>>, vector<1x4x160xf32>
    %725 = vector.shape_cast %724 : vector<1x4x160xf32> to vector<4x160xf32>
    %726 = vector.extract_strided_slice %725 {offsets = [0, 0], sizes = [1, 160], strides = [1, 1]} : vector<4x160xf32> to vector<1x160xf32>
    %c19 = arith.constant 19 : index
    %727 = memref.load %arg2[%c19] : memref<200xf32, #tpu.memory_space<smem>>
    %728 = vector.broadcast %727 : f32 to vector<1x160xf32>
    %729 = arith.mulf %728, %726 : vector<1x160xf32>
    %730 = arith.addf %719, %729 : vector<1x160xf32>
    %c119 = arith.constant 119 : index
    %731 = memref.load %arg2[%c119] : memref<200xf32, #tpu.memory_space<smem>>
    %732 = vector.broadcast %731 : f32 to vector<1x160xf32>
    %733 = arith.mulf %732, %726 : vector<1x160xf32>
    %734 = arith.addf %723, %733 : vector<1x160xf32>
    %735 = vector.extract_strided_slice %725 {offsets = [1, 0], sizes = [1, 160], strides = [1, 1]} : vector<4x160xf32> to vector<1x160xf32>
    %c44_55 = arith.constant 44 : index
    %736 = memref.load %arg2[%c44_55] : memref<200xf32, #tpu.memory_space<smem>>
    %737 = vector.broadcast %736 : f32 to vector<1x160xf32>
    %738 = arith.mulf %737, %735 : vector<1x160xf32>
    %739 = arith.addf %730, %738 : vector<1x160xf32>
    %c144 = arith.constant 144 : index
    %740 = memref.load %arg2[%c144] : memref<200xf32, #tpu.memory_space<smem>>
    %741 = vector.broadcast %740 : f32 to vector<1x160xf32>
    %742 = arith.mulf %741, %735 : vector<1x160xf32>
    %743 = arith.addf %734, %742 : vector<1x160xf32>
    %744 = vector.extract_strided_slice %725 {offsets = [2, 0], sizes = [1, 160], strides = [1, 1]} : vector<4x160xf32> to vector<1x160xf32>
    %c69 = arith.constant 69 : index
    %745 = memref.load %arg2[%c69] : memref<200xf32, #tpu.memory_space<smem>>
    %746 = vector.broadcast %745 : f32 to vector<1x160xf32>
    %747 = arith.mulf %746, %744 : vector<1x160xf32>
    %748 = arith.addf %739, %747 : vector<1x160xf32>
    %c169 = arith.constant 169 : index
    %749 = memref.load %arg2[%c169] : memref<200xf32, #tpu.memory_space<smem>>
    %750 = vector.broadcast %749 : f32 to vector<1x160xf32>
    %751 = arith.mulf %750, %744 : vector<1x160xf32>
    %752 = arith.addf %743, %751 : vector<1x160xf32>
    %753 = vector.extract_strided_slice %725 {offsets = [3, 0], sizes = [1, 160], strides = [1, 1]} : vector<4x160xf32> to vector<1x160xf32>
    %c94 = arith.constant 94 : index
    %754 = memref.load %arg2[%c94] : memref<200xf32, #tpu.memory_space<smem>>
    %755 = vector.broadcast %754 : f32 to vector<1x160xf32>
    %756 = arith.mulf %755, %753 : vector<1x160xf32>
    %757 = arith.addf %748, %756 : vector<1x160xf32>
    %c194 = arith.constant 194 : index
    %758 = memref.load %arg2[%c194] : memref<200xf32, #tpu.memory_space<smem>>
    %759 = vector.broadcast %758 : f32 to vector<1x160xf32>
    %760 = arith.mulf %759, %753 : vector<1x160xf32>
    %761 = arith.addf %752, %760 : vector<1x160xf32>
    %c0_56 = arith.constant 0 : index
    %c0_57 = arith.constant 0 : index
    %c80_58 = arith.constant 80 : index
    %762 = vector.load %arg1[%c0_56, %c0_57, %c80_58] : memref<1x4x244xf32, #tpu.memory_space<vmem>>, vector<1x4x160xf32>
    %763 = vector.shape_cast %762 : vector<1x4x160xf32> to vector<4x160xf32>
    %764 = vector.extract_strided_slice %763 {offsets = [0, 0], sizes = [1, 160], strides = [1, 1]} : vector<4x160xf32> to vector<1x160xf32>
    %c20_59 = arith.constant 20 : index
    %765 = memref.load %arg2[%c20_59] : memref<200xf32, #tpu.memory_space<smem>>
    %766 = vector.broadcast %765 : f32 to vector<1x160xf32>
    %767 = arith.mulf %766, %764 : vector<1x160xf32>
    %768 = arith.addf %757, %767 : vector<1x160xf32>
    %c120 = arith.constant 120 : index
    %769 = memref.load %arg2[%c120] : memref<200xf32, #tpu.memory_space<smem>>
    %770 = vector.broadcast %769 : f32 to vector<1x160xf32>
    %771 = arith.mulf %770, %764 : vector<1x160xf32>
    %772 = arith.addf %761, %771 : vector<1x160xf32>
    %773 = vector.extract_strided_slice %763 {offsets = [1, 0], sizes = [1, 160], strides = [1, 1]} : vector<4x160xf32> to vector<1x160xf32>
    %c45 = arith.constant 45 : index
    %774 = memref.load %arg2[%c45] : memref<200xf32, #tpu.memory_space<smem>>
    %775 = vector.broadcast %774 : f32 to vector<1x160xf32>
    %776 = arith.mulf %775, %773 : vector<1x160xf32>
    %777 = arith.addf %768, %776 : vector<1x160xf32>
    %c145 = arith.constant 145 : index
    %778 = memref.load %arg2[%c145] : memref<200xf32, #tpu.memory_space<smem>>
    %779 = vector.broadcast %778 : f32 to vector<1x160xf32>
    %780 = arith.mulf %779, %773 : vector<1x160xf32>
    %781 = arith.addf %772, %780 : vector<1x160xf32>
    %782 = vector.extract_strided_slice %763 {offsets = [2, 0], sizes = [1, 160], strides = [1, 1]} : vector<4x160xf32> to vector<1x160xf32>
    %c70 = arith.constant 70 : index
    %783 = memref.load %arg2[%c70] : memref<200xf32, #tpu.memory_space<smem>>
    %784 = vector.broadcast %783 : f32 to vector<1x160xf32>
    %785 = arith.mulf %784, %782 : vector<1x160xf32>
    %786 = arith.addf %777, %785 : vector<1x160xf32>
    %c170 = arith.constant 170 : index
    %787 = memref.load %arg2[%c170] : memref<200xf32, #tpu.memory_space<smem>>
    %788 = vector.broadcast %787 : f32 to vector<1x160xf32>
    %789 = arith.mulf %788, %782 : vector<1x160xf32>
    %790 = arith.addf %781, %789 : vector<1x160xf32>
    %791 = vector.extract_strided_slice %763 {offsets = [3, 0], sizes = [1, 160], strides = [1, 1]} : vector<4x160xf32> to vector<1x160xf32>
    %c95 = arith.constant 95 : index
    %792 = memref.load %arg2[%c95] : memref<200xf32, #tpu.memory_space<smem>>
    %793 = vector.broadcast %792 : f32 to vector<1x160xf32>
    %794 = arith.mulf %793, %791 : vector<1x160xf32>
    %795 = arith.addf %786, %794 : vector<1x160xf32>
    %c195 = arith.constant 195 : index
    %796 = memref.load %arg2[%c195] : memref<200xf32, #tpu.memory_space<smem>>
    %797 = vector.broadcast %796 : f32 to vector<1x160xf32>
    %798 = arith.mulf %797, %791 : vector<1x160xf32>
    %799 = arith.addf %790, %798 : vector<1x160xf32>
    %c0_60 = arith.constant 0 : index
    %c0_61 = arith.constant 0 : index
    %c81_62 = arith.constant 81 : index
    %800 = vector.load %arg1[%c0_60, %c0_61, %c81_62] : memref<1x4x244xf32, #tpu.memory_space<vmem>>, vector<1x4x160xf32>
    %801 = vector.shape_cast %800 : vector<1x4x160xf32> to vector<4x160xf32>
    %802 = vector.extract_strided_slice %801 {offsets = [0, 0], sizes = [1, 160], strides = [1, 1]} : vector<4x160xf32> to vector<1x160xf32>
    %c21_63 = arith.constant 21 : index
    %803 = memref.load %arg2[%c21_63] : memref<200xf32, #tpu.memory_space<smem>>
    %804 = vector.broadcast %803 : f32 to vector<1x160xf32>
    %805 = arith.mulf %804, %802 : vector<1x160xf32>
    %806 = arith.addf %795, %805 : vector<1x160xf32>
    %c121 = arith.constant 121 : index
    %807 = memref.load %arg2[%c121] : memref<200xf32, #tpu.memory_space<smem>>
    %808 = vector.broadcast %807 : f32 to vector<1x160xf32>
    %809 = arith.mulf %808, %802 : vector<1x160xf32>
    %810 = arith.addf %799, %809 : vector<1x160xf32>
    %811 = vector.extract_strided_slice %801 {offsets = [1, 0], sizes = [1, 160], strides = [1, 1]} : vector<4x160xf32> to vector<1x160xf32>
    %c46 = arith.constant 46 : index
    %812 = memref.load %arg2[%c46] : memref<200xf32, #tpu.memory_space<smem>>
    %813 = vector.broadcast %812 : f32 to vector<1x160xf32>
    %814 = arith.mulf %813, %811 : vector<1x160xf32>
    %815 = arith.addf %806, %814 : vector<1x160xf32>
    %c146 = arith.constant 146 : index
    %816 = memref.load %arg2[%c146] : memref<200xf32, #tpu.memory_space<smem>>
    %817 = vector.broadcast %816 : f32 to vector<1x160xf32>
    %818 = arith.mulf %817, %811 : vector<1x160xf32>
    %819 = arith.addf %810, %818 : vector<1x160xf32>
    %820 = vector.extract_strided_slice %801 {offsets = [2, 0], sizes = [1, 160], strides = [1, 1]} : vector<4x160xf32> to vector<1x160xf32>
    %c71 = arith.constant 71 : index
    %821 = memref.load %arg2[%c71] : memref<200xf32, #tpu.memory_space<smem>>
    %822 = vector.broadcast %821 : f32 to vector<1x160xf32>
    %823 = arith.mulf %822, %820 : vector<1x160xf32>
    %824 = arith.addf %815, %823 : vector<1x160xf32>
    %c171 = arith.constant 171 : index
    %825 = memref.load %arg2[%c171] : memref<200xf32, #tpu.memory_space<smem>>
    %826 = vector.broadcast %825 : f32 to vector<1x160xf32>
    %827 = arith.mulf %826, %820 : vector<1x160xf32>
    %828 = arith.addf %819, %827 : vector<1x160xf32>
    %829 = vector.extract_strided_slice %801 {offsets = [3, 0], sizes = [1, 160], strides = [1, 1]} : vector<4x160xf32> to vector<1x160xf32>
    %c96 = arith.constant 96 : index
    %830 = memref.load %arg2[%c96] : memref<200xf32, #tpu.memory_space<smem>>
    %831 = vector.broadcast %830 : f32 to vector<1x160xf32>
    %832 = arith.mulf %831, %829 : vector<1x160xf32>
    %833 = arith.addf %824, %832 : vector<1x160xf32>
    %c196 = arith.constant 196 : index
    %834 = memref.load %arg2[%c196] : memref<200xf32, #tpu.memory_space<smem>>
    %835 = vector.broadcast %834 : f32 to vector<1x160xf32>
    %836 = arith.mulf %835, %829 : vector<1x160xf32>
    %837 = arith.addf %828, %836 : vector<1x160xf32>
    %c0_64 = arith.constant 0 : index
    %c0_65 = arith.constant 0 : index
    %c82_66 = arith.constant 82 : index
    %838 = vector.load %arg1[%c0_64, %c0_65, %c82_66] : memref<1x4x244xf32, #tpu.memory_space<vmem>>, vector<1x4x160xf32>
    %839 = vector.shape_cast %838 : vector<1x4x160xf32> to vector<4x160xf32>
    %840 = vector.extract_strided_slice %839 {offsets = [0, 0], sizes = [1, 160], strides = [1, 1]} : vector<4x160xf32> to vector<1x160xf32>
    %c22_67 = arith.constant 22 : index
    %841 = memref.load %arg2[%c22_67] : memref<200xf32, #tpu.memory_space<smem>>
    %842 = vector.broadcast %841 : f32 to vector<1x160xf32>
    %843 = arith.mulf %842, %840 : vector<1x160xf32>
    %844 = arith.addf %833, %843 : vector<1x160xf32>
    %c122 = arith.constant 122 : index
    %845 = memref.load %arg2[%c122] : memref<200xf32, #tpu.memory_space<smem>>
    %846 = vector.broadcast %845 : f32 to vector<1x160xf32>
    %847 = arith.mulf %846, %840 : vector<1x160xf32>
    %848 = arith.addf %837, %847 : vector<1x160xf32>
    %849 = vector.extract_strided_slice %839 {offsets = [1, 0], sizes = [1, 160], strides = [1, 1]} : vector<4x160xf32> to vector<1x160xf32>
    %c47 = arith.constant 47 : index
    %850 = memref.load %arg2[%c47] : memref<200xf32, #tpu.memory_space<smem>>
    %851 = vector.broadcast %850 : f32 to vector<1x160xf32>
    %852 = arith.mulf %851, %849 : vector<1x160xf32>
    %853 = arith.addf %844, %852 : vector<1x160xf32>
    %c147 = arith.constant 147 : index
    %854 = memref.load %arg2[%c147] : memref<200xf32, #tpu.memory_space<smem>>
    %855 = vector.broadcast %854 : f32 to vector<1x160xf32>
    %856 = arith.mulf %855, %849 : vector<1x160xf32>
    %857 = arith.addf %848, %856 : vector<1x160xf32>
    %858 = vector.extract_strided_slice %839 {offsets = [2, 0], sizes = [1, 160], strides = [1, 1]} : vector<4x160xf32> to vector<1x160xf32>
    %c72 = arith.constant 72 : index
    %859 = memref.load %arg2[%c72] : memref<200xf32, #tpu.memory_space<smem>>
    %860 = vector.broadcast %859 : f32 to vector<1x160xf32>
    %861 = arith.mulf %860, %858 : vector<1x160xf32>
    %862 = arith.addf %853, %861 : vector<1x160xf32>
    %c172 = arith.constant 172 : index
    %863 = memref.load %arg2[%c172] : memref<200xf32, #tpu.memory_space<smem>>
    %864 = vector.broadcast %863 : f32 to vector<1x160xf32>
    %865 = arith.mulf %864, %858 : vector<1x160xf32>
    %866 = arith.addf %857, %865 : vector<1x160xf32>
    %867 = vector.extract_strided_slice %839 {offsets = [3, 0], sizes = [1, 160], strides = [1, 1]} : vector<4x160xf32> to vector<1x160xf32>
    %c97 = arith.constant 97 : index
    %868 = memref.load %arg2[%c97] : memref<200xf32, #tpu.memory_space<smem>>
    %869 = vector.broadcast %868 : f32 to vector<1x160xf32>
    %870 = arith.mulf %869, %867 : vector<1x160xf32>
    %871 = arith.addf %862, %870 : vector<1x160xf32>
    %c197 = arith.constant 197 : index
    %872 = memref.load %arg2[%c197] : memref<200xf32, #tpu.memory_space<smem>>
    %873 = vector.broadcast %872 : f32 to vector<1x160xf32>
    %874 = arith.mulf %873, %867 : vector<1x160xf32>
    %875 = arith.addf %866, %874 : vector<1x160xf32>
    %c0_68 = arith.constant 0 : index
    %c0_69 = arith.constant 0 : index
    %c83_70 = arith.constant 83 : index
    %876 = vector.load %arg1[%c0_68, %c0_69, %c83_70] : memref<1x4x244xf32, #tpu.memory_space<vmem>>, vector<1x4x160xf32>
    %877 = vector.shape_cast %876 : vector<1x4x160xf32> to vector<4x160xf32>
    %878 = vector.extract_strided_slice %877 {offsets = [0, 0], sizes = [1, 160], strides = [1, 1]} : vector<4x160xf32> to vector<1x160xf32>
    %c23_71 = arith.constant 23 : index
    %879 = memref.load %arg2[%c23_71] : memref<200xf32, #tpu.memory_space<smem>>
    %880 = vector.broadcast %879 : f32 to vector<1x160xf32>
    %881 = arith.mulf %880, %878 : vector<1x160xf32>
    %882 = arith.addf %871, %881 : vector<1x160xf32>
    %c123 = arith.constant 123 : index
    %883 = memref.load %arg2[%c123] : memref<200xf32, #tpu.memory_space<smem>>
    %884 = vector.broadcast %883 : f32 to vector<1x160xf32>
    %885 = arith.mulf %884, %878 : vector<1x160xf32>
    %886 = arith.addf %875, %885 : vector<1x160xf32>
    %887 = vector.extract_strided_slice %877 {offsets = [1, 0], sizes = [1, 160], strides = [1, 1]} : vector<4x160xf32> to vector<1x160xf32>
    %c48 = arith.constant 48 : index
    %888 = memref.load %arg2[%c48] : memref<200xf32, #tpu.memory_space<smem>>
    %889 = vector.broadcast %888 : f32 to vector<1x160xf32>
    %890 = arith.mulf %889, %887 : vector<1x160xf32>
    %891 = arith.addf %882, %890 : vector<1x160xf32>
    %c148 = arith.constant 148 : index
    %892 = memref.load %arg2[%c148] : memref<200xf32, #tpu.memory_space<smem>>
    %893 = vector.broadcast %892 : f32 to vector<1x160xf32>
    %894 = arith.mulf %893, %887 : vector<1x160xf32>
    %895 = arith.addf %886, %894 : vector<1x160xf32>
    %896 = vector.extract_strided_slice %877 {offsets = [2, 0], sizes = [1, 160], strides = [1, 1]} : vector<4x160xf32> to vector<1x160xf32>
    %c73 = arith.constant 73 : index
    %897 = memref.load %arg2[%c73] : memref<200xf32, #tpu.memory_space<smem>>
    %898 = vector.broadcast %897 : f32 to vector<1x160xf32>
    %899 = arith.mulf %898, %896 : vector<1x160xf32>
    %900 = arith.addf %891, %899 : vector<1x160xf32>
    %c173 = arith.constant 173 : index
    %901 = memref.load %arg2[%c173] : memref<200xf32, #tpu.memory_space<smem>>
    %902 = vector.broadcast %901 : f32 to vector<1x160xf32>
    %903 = arith.mulf %902, %896 : vector<1x160xf32>
    %904 = arith.addf %895, %903 : vector<1x160xf32>
    %905 = vector.extract_strided_slice %877 {offsets = [3, 0], sizes = [1, 160], strides = [1, 1]} : vector<4x160xf32> to vector<1x160xf32>
    %c98 = arith.constant 98 : index
    %906 = memref.load %arg2[%c98] : memref<200xf32, #tpu.memory_space<smem>>
    %907 = vector.broadcast %906 : f32 to vector<1x160xf32>
    %908 = arith.mulf %907, %905 : vector<1x160xf32>
    %909 = arith.addf %900, %908 : vector<1x160xf32>
    %c198 = arith.constant 198 : index
    %910 = memref.load %arg2[%c198] : memref<200xf32, #tpu.memory_space<smem>>
    %911 = vector.broadcast %910 : f32 to vector<1x160xf32>
    %912 = arith.mulf %911, %905 : vector<1x160xf32>
    %913 = arith.addf %904, %912 : vector<1x160xf32>
    %c0_72 = arith.constant 0 : index
    %c0_73 = arith.constant 0 : index
    %c84_74 = arith.constant 84 : index
    %914 = vector.load %arg1[%c0_72, %c0_73, %c84_74] : memref<1x4x244xf32, #tpu.memory_space<vmem>>, vector<1x4x160xf32>
    %915 = vector.shape_cast %914 : vector<1x4x160xf32> to vector<4x160xf32>
    %916 = vector.extract_strided_slice %915 {offsets = [0, 0], sizes = [1, 160], strides = [1, 1]} : vector<4x160xf32> to vector<1x160xf32>
    %c24_75 = arith.constant 24 : index
    %917 = memref.load %arg2[%c24_75] : memref<200xf32, #tpu.memory_space<smem>>
    %918 = vector.broadcast %917 : f32 to vector<1x160xf32>
    %919 = arith.mulf %918, %916 : vector<1x160xf32>
    %920 = arith.addf %909, %919 : vector<1x160xf32>
    %c124 = arith.constant 124 : index
    %921 = memref.load %arg2[%c124] : memref<200xf32, #tpu.memory_space<smem>>
    %922 = vector.broadcast %921 : f32 to vector<1x160xf32>
    %923 = arith.mulf %922, %916 : vector<1x160xf32>
    %924 = arith.addf %913, %923 : vector<1x160xf32>
    %925 = vector.extract_strided_slice %915 {offsets = [1, 0], sizes = [1, 160], strides = [1, 1]} : vector<4x160xf32> to vector<1x160xf32>
    %c49 = arith.constant 49 : index
    %926 = memref.load %arg2[%c49] : memref<200xf32, #tpu.memory_space<smem>>
    %927 = vector.broadcast %926 : f32 to vector<1x160xf32>
    %928 = arith.mulf %927, %925 : vector<1x160xf32>
    %929 = arith.addf %920, %928 : vector<1x160xf32>
    %c149 = arith.constant 149 : index
    %930 = memref.load %arg2[%c149] : memref<200xf32, #tpu.memory_space<smem>>
    %931 = vector.broadcast %930 : f32 to vector<1x160xf32>
    %932 = arith.mulf %931, %925 : vector<1x160xf32>
    %933 = arith.addf %924, %932 : vector<1x160xf32>
    %934 = vector.extract_strided_slice %915 {offsets = [2, 0], sizes = [1, 160], strides = [1, 1]} : vector<4x160xf32> to vector<1x160xf32>
    %c74 = arith.constant 74 : index
    %935 = memref.load %arg2[%c74] : memref<200xf32, #tpu.memory_space<smem>>
    %936 = vector.broadcast %935 : f32 to vector<1x160xf32>
    %937 = arith.mulf %936, %934 : vector<1x160xf32>
    %938 = arith.addf %929, %937 : vector<1x160xf32>
    %c174 = arith.constant 174 : index
    %939 = memref.load %arg2[%c174] : memref<200xf32, #tpu.memory_space<smem>>
    %940 = vector.broadcast %939 : f32 to vector<1x160xf32>
    %941 = arith.mulf %940, %934 : vector<1x160xf32>
    %942 = arith.addf %933, %941 : vector<1x160xf32>
    %943 = vector.extract_strided_slice %915 {offsets = [3, 0], sizes = [1, 160], strides = [1, 1]} : vector<4x160xf32> to vector<1x160xf32>
    %c99 = arith.constant 99 : index
    %944 = memref.load %arg2[%c99] : memref<200xf32, #tpu.memory_space<smem>>
    %945 = vector.broadcast %944 : f32 to vector<1x160xf32>
    %946 = arith.mulf %945, %943 : vector<1x160xf32>
    %947 = arith.addf %938, %946 : vector<1x160xf32>
    %c199 = arith.constant 199 : index
    %948 = memref.load %arg2[%c199] : memref<200xf32, #tpu.memory_space<smem>>
    %949 = vector.broadcast %948 : f32 to vector<1x160xf32>
    %950 = arith.mulf %949, %943 : vector<1x160xf32>
    %951 = arith.addf %942, %950 : vector<1x160xf32>
    %c0_76 = arith.constant 0 : index
    %952 = memref.load %arg3[%c0_76] : memref<2xf32, #tpu.memory_space<smem>>
    %953 = vector.broadcast %952 : f32 to vector<1x160xf32>
    %954 = arith.addf %947, %953 : vector<1x160xf32>
    %cst_77 = arith.constant 0.000000e+00 : f32
    %955 = vector.broadcast %cst_77 : f32 to vector<1x160xf32>
    %956 = arith.cmpf ogt, %954, %955 : vector<1x160xf32>
    %957 = math.exp %954 : vector<1x160xf32>
    %cst_78 = arith.constant 1.000000e+00 : f32
    %958 = vector.broadcast %cst_78 : f32 to vector<1x160xf32>
    %959 = arith.subf %957, %958 : vector<1x160xf32>
    %960 = arith.select %956, %954, %959 : vector<1x160xi1>, vector<1x160xf32>
    %c0_79 = arith.constant 0 : index
    %c0_80 = arith.constant 0 : index
    %c0_81 = arith.constant 0 : index
    %961 = vector.load %arg5[%c0_79, %c0_80, %c0_81] : memref<1x2x160xf32, #tpu.memory_space<vmem>>, vector<1x1x160xf32>
    %962 = vector.shape_cast %961 : vector<1x1x160xf32> to vector<1x160xf32>
    %963 = vector.shape_cast %960 : vector<1x160xf32> to vector<1x1x160xf32>
    tpu.vector_store %arg5[%c0_79, %c0_80, %c0_81], %963 {strides = array<i32>} : memref<1x2x160xf32, #tpu.memory_space<vmem>>, vector<1x1x160xf32>,
    %c1_82 = arith.constant 1 : index
    %964 = memref.load %arg3[%c1_82] : memref<2xf32, #tpu.memory_space<smem>>
    %965 = vector.broadcast %964 : f32 to vector<1x160xf32>
    %966 = arith.addf %951, %965 : vector<1x160xf32>
    %cst_83 = arith.constant 0.000000e+00 : f32
    %967 = vector.broadcast %cst_83 : f32 to vector<1x160xf32>
    %968 = arith.cmpf ogt, %966, %967 : vector<1x160xf32>
    %969 = math.exp %966 : vector<1x160xf32>
    %cst_84 = arith.constant 1.000000e+00 : f32
    %970 = vector.broadcast %cst_84 : f32 to vector<1x160xf32>
    %971 = arith.subf %969, %970 : vector<1x160xf32>
    %972 = arith.select %968, %966, %971 : vector<1x160xi1>, vector<1x160xf32>
    %c0_85 = arith.constant 0 : index
    %c1_86 = arith.constant 1 : index
    %c0_87 = arith.constant 0 : index
    %973 = vector.load %arg5[%c0_85, %c1_86, %c0_87] : memref<1x2x160xf32, #tpu.memory_space<vmem>>, vector<1x1x160xf32>
    %974 = vector.shape_cast %973 : vector<1x1x160xf32> to vector<1x160xf32>
    %975 = vector.shape_cast %972 : vector<1x160xf32> to vector<1x1x160xf32>
    tpu.vector_store %arg5[%c0_85, %c1_86, %c0_87], %975 {strides = array<i32>} : memref<1x2x160xf32, #tpu.memory_space<vmem>>, vector<1x1x160xf32>,
    %c0_88 = arith.constant 0 : index
    %c0_89 = arith.constant 0 : index
    %c0_90 = arith.constant 0 : index
    %976 = vector.load %arg5[%c0_88, %c0_89, %c0_90] : memref<1x2x160xf32, #tpu.memory_space<vmem>>, vector<1x2x160xf32>
    %977 = vector.shape_cast %976 : vector<1x2x160xf32> to vector<2x160xf32>
    %c0_91 = arith.constant 0 : index
    %c0_92 = arith.constant 0 : index
    %978 = vector.load %arg4[%c0_91, %c0_92] : memref<1x160xf32, #tpu.memory_space<vmem>>, vector<1x160xf32>
    %979 = vector.broadcast %978 : vector<1x160xf32> to vector<2x160xf32>
    %980 = arith.mulf %977, %979 : vector<2x160xf32>
    %cst_93 = arith.constant dense<0.000000e+00> : vector<2xf32>
    %981 = vector.multi_reduction <add>, %980, %cst_93 [1] : vector<2x160xf32> to vector<2xf32>
    %982 = vector.shape_cast %981 : vector<2xf32> to vector<2x1xf32>
    %c0_94 = arith.constant 0 : index
    %c0_95 = arith.constant 0 : index
    %c0_96 = arith.constant 0 : index
    %983 = vector.load %arg6[%c0_94, %c0_95, %c0_96] : memref<1x2x2xf32, #tpu.memory_space<vmem>>, vector<1x2x1xf32>
    %984 = vector.shape_cast %983 : vector<1x2x1xf32> to vector<2x1xf32>
    %985 = vector.shape_cast %982 : vector<2x1xf32> to vector<1x2x1xf32>
    tpu.vector_store %arg6[%c0_94, %c0_95, %c0_96], %985 {strides = array<i32>} : memref<1x2x2xf32, #tpu.memory_space<vmem>>, vector<1x2x1xf32>,
    %986 = arith.mulf %980, %980 : vector<2x160xf32>
    %cst_97 = arith.constant dense<0.000000e+00> : vector<2xf32>
    %987 = vector.multi_reduction <add>, %986, %cst_97 [1] : vector<2x160xf32> to vector<2xf32>
    %988 = vector.shape_cast %987 : vector<2xf32> to vector<2x1xf32>
    %c0_98 = arith.constant 0 : index
    %c0_99 = arith.constant 0 : index
    %c1_100 = arith.constant 1 : index
    %989 = vector.load %arg6[%c0_98, %c0_99, %c1_100] : memref<1x2x2xf32, #tpu.memory_space<vmem>>, vector<1x2x1xf32>
    %990 = vector.shape_cast %989 : vector<1x2x1xf32> to vector<2x1xf32>
    %991 = vector.shape_cast %988 : vector<2x1xf32> to vector<1x2x1xf32>
    tpu.vector_store %arg6[%c0_98, %c0_99, %c1_100], %991 {strides = array<i32>} : memref<1x2x2xf32, #tpu.memory_space<vmem>>, vector<1x2x1xf32>,
    return
  }
  func.func @transform_0(%arg0: i32) -> (i32, i32, i32) {
    %c0_i32 = arith.constant 0 : i32
    %c0_i32_0 = arith.constant 0 : i32
    %c0_i32_1 = arith.constant 0 : i32
    return %arg0, %c0_i32, %c0_i32_0 : i32, i32, i32
  }
  func.func @transform_1(%arg0: i32) -> i32 {
    %c0_i32 = arith.constant 0 : i32
    %c0_i32_0 = arith.constant 0 : i32
    return %c0_i32 : i32
  }
  func.func @transform_2(%arg0: i32) -> i32 {
    %c0_i32 = arith.constant 0 : i32
    %c0_i32_0 = arith.constant 0 : i32
    return %c0_i32 : i32
  }
  func.func @transform_3(%arg0: i32) -> (i32, i32) {
    %c0_i32 = arith.constant 0 : i32
    %c0_i32_0 = arith.constant 0 : i32
    %c0_i32_1 = arith.constant 0 : i32
    return %c0_i32, %c0_i32_0 : i32, i32
  }
  func.func @transform_4(%arg0: i32) -> (i32, i32, i32) {
    %c0_i32 = arith.constant 0 : i32
    %c0_i32_0 = arith.constant 0 : i32
    %c0_i32_1 = arith.constant 0 : i32
    return %arg0, %c0_i32, %c0_i32_0 : i32, i32, i32
  }
  func.func @transform_5(%arg0: i32) -> (i32, i32, i32) {
    %c0_i32 = arith.constant 0 : i32
    %c0_i32_0 = arith.constant 0 : i32
    %c0_i32_1 = arith.constant 0 : i32
    return %arg0, %c0_i32, %c0_i32_0 : i32, i32, i32
  }
}

</mosaic_0001>

<llo_original>
// kernel: tpu_custom_call.1
$region0: #{tpu_custom_call.1}
  #allocation0 [shape = 'u32[]', space=smem, size = 0x4, offset = 0x4, fixed_abs, tag = 'smem constant byte address 0x4 - core index']
  #allocation1 [shape = 'u32[72,128]{1,0:T(1,128)}', space=vmem, size = 0x9000, scoped, tag = 'internal scratch']
  %s0 = inlined_call_operand.hbm [shape: f32[4,4,244], index: 0, kind: input, shape index: {}]
  %s1 = inlined_call_operand.hbm [shape: f32[200], index: 1, kind: input, shape index: {}]
  %s2 = inlined_call_operand.hbm [shape: f32[2], index: 2, kind: input, shape index: {}]
  %s3 = inlined_call_operand.vmem [shape: f32[1,160], index: 3, kind: input, shape index: {}]
  %s4 = inlined_call_operand.hbm [shape: f32[4,2,160], index: 4, kind: output, shape index: {0}]
  %s5 = inlined_call_operand.vmem [shape: f32[4,2,2], index: 5, kind: output, shape index: {1}]
  %6 = xla_tuple %s4, %s5
  %s7 = sld [smem:[#allocation0]]
  $region69: #{tpu_custom_call.1} parent=0
    _
  %s9 = ssub.s32 1, %s7
  %s10 = scalar_select 0, %s9, %s7
  $region1: #{tpu_custom_call.1} parent=0
    #allocation2 [shape = 'u8[8192]{0}', space=vmem, size = 0x2000, scoped, tag = 'input window, operand 0']
    #allocation3 [shape = 's32[2]{0}', space=sflag, size = 0x8, scoped, tag = 'scoped memory for tpu_custom_call.1']
    #allocation4 [shape = 's32[2]{0}', space=sflag, size = 0x8, scoped, tag = 'scoped memory for tpu_custom_call.1']
    #allocation5 [shape = 's32[2]{0}', space=sflag, size = 0x8, scoped, tag = 'scoped memory for tpu_custom_call.1']
    #allocation6 [shape = 'u8[1024]{0}', space=smem, size = 0x400, scoped, tag = 'input window, operand 1, single buffered']
    #allocation7 [shape = 'u8[512]{0}', space=smem, size = 0x200, scoped, tag = 'input window, operand 2, single buffered']
    #allocation8 [shape = 's32[1]{0}', space=sflag, size = 0x4, scoped, tag = 'scoped memory for tpu_custom_call.1']
    #allocation9 [shape = 'u8[4096]{0}', space=vmem, size = 0x1000, scoped, tag = 'output window, operand 0']
    %11 = vsyncpa [#allocation3], 0
    %s12 = scalar_lea.sflag [#allocation3], 1
    %13 = vsyncpa %s12, 0
    %14 = vsyncpa [#allocation5], 0
    %15 = vsyncpa [#allocation8], 0
    %16 = vsyncpa [#allocation4], 0
    %s17 = scalar_lea.sflag [#allocation4], 1
    %18 = vsyncpa %s17, 0
    loop: start=0, step=1, limit=6
    $region2: #{tpu_custom_call.1} parent=1 // loop_pre_header
      _
    $region3: #{tpu_custom_call.1} parent=1 // loop_header
      %s20 = sphi 0, %s24
      %p21 = scmp.ge.s32.totalorder %s20, 6
      %s30 = sphi 0, %s32
      %s33 = sphi 0, %s30
      %s34 = sphi 0, %s33
      %s50 = sphi 0, %s34
      %s54 = sphi 0, %s54
      %s56 = sphi 0, %s54
      %s57 = sphi 0, %s56
      %s71 = sphi 0, %s57
      %s75 = sphi 0, %s75
      %s77 = sphi 0, %s75
      %s78 = sphi 0, %s77
      %s92 = sphi 0, %s78
      %s96 = sphi 0, %s96
      %s98 = sphi 0, %s96
      %s99 = sphi 0, %s98
      %s113 = sphi 0, %s99
      %s119 = sphi 0, %s121
      %s122 = sphi 0, %s119
      %s123 = sphi 0, %s122
      %s139 = sphi 0, %s123
      %s145 = sphi 0, %s147
      %s148 = sphi 0, %s145
      %s149 = sphi 0, %s148
      %s165 = sphi 0, %s149
    $region4: #{tpu_custom_call.1} parent=1 // loop_header_branch
      %23 = sbr.rel (%p21) target = $region8
    $region5: #{tpu_custom_call.1} parent=1 // loop_body
      %s25 = ssub.s32 %s20, 1
      %s26 = ssub.s32 %s20, 2
      %s27 = sadd.s32 %s20, 1
      %s28 = ssub.s32 %s20, %s27
      %p29 = scmp.eq.s32.totalorder %s28, 0
      %s31 = sadd.s32 %s30, 1
      %s32 = scalar_select %p29, %s30, %s31
      %p35 = pneg %p29
      %p36 = scmp.eq.s32.totalorder %s20, 3
      %p37 = por %p35, %p36
      %p38 = scmp.ne.s32.totalorder %s30, %s33
      %p39 = scmp.eq.s32.totalorder %s20, 0
      %p40 = por %p38, %p39
      %p41 = scmp.ne.s32.totalorder %s30, %s33
      %p42 = scmp.eq.s32.totalorder %s25, 3
      %p43 = por %p41, %p42
      %p44 = scmp.ne.s32.totalorder %s33, %s34
      %p45 = scmp.eq.s32.totalorder %s25, 0
      %p46 = por %p44, %p45
      %p47 = scmp.ne.s32.totalorder %s33, %s34
      %p48 = scmp.eq.s32.totalorder %s26, 3
      %p49 = por %p47, %p48
      %p51 = scmp.ne.s32.totalorder %s34, %s50
      %p52 = scmp.eq.s32.totalorder %s26, 0
      %p53 = por %p51, %p52
      %s55 = sadd.s32 %s54, 1
      %p58 = scmp.eq.s32.totalorder %s20, 3
      %p59 = scmp.ne.s32.totalorder %s54, %s56
      %p60 = scmp.eq.s32.totalorder %s20, 0
      %p61 = por %p59, %p60
      %p62 = scmp.ne.s32.totalorder %s54, %s56
      %p63 = scmp.eq.s32.totalorder %s25, 3
      %p64 = por %p62, %p63
      %p65 = scmp.ne.s32.totalorder %s56, %s57
      %p66 = scmp.eq.s32.totalorder %s25, 0
      %p67 = por %p65, %p66
      %p68 = scmp.ne.s32.totalorder %s56, %s57
      %p69 = scmp.eq.s32.totalorder %s26, 3
      %p70 = por %p68, %p69
      %p72 = scmp.ne.s32.totalorder %s57, %s71
      %p73 = scmp.eq.s32.totalorder %s26, 0
      %p74 = por %p72, %p73
      %s76 = sadd.s32 %s75, 1
      %p79 = scmp.eq.s32.totalorder %s20, 3
      %p80 = scmp.ne.s32.totalorder %s75, %s77
      %p81 = scmp.eq.s32.totalorder %s20, 0
      %p82 = por %p80, %p81
      %p83 = scmp.ne.s32.totalorder %s75, %s77
      %p84 = scmp.eq.s32.totalorder %s25, 3
      %p85 = por %p83, %p84
      %p86 = scmp.ne.s32.totalorder %s77, %s78
      %p87 = scmp.eq.s32.totalorder %s25, 0
      %p88 = por %p86, %p87
      %p89 = scmp.ne.s32.totalorder %s77, %s78
      %p90 = scmp.eq.s32.totalorder %s26, 3
      %p91 = por %p89, %p90
      %p93 = scmp.ne.s32.totalorder %s78, %s92
      %p94 = scmp.eq.s32.totalorder %s26, 0
      %p95 = por %p93, %p94
      %s97 = sadd.s32 %s96, 1
      %p100 = scmp.eq.s32.totalorder %s20, 3
      %p101 = scmp.ne.s32.totalorder %s96, %s98
      %p102 = scmp.eq.s32.totalorder %s20, 0
      %p103 = por %p101, %p102
      %p104 = scmp.ne.s32.totalorder %s96, %s98
      %p105 = scmp.eq.s32.totalorder %s25, 3
      %p106 = por %p104, %p105
      %p107 = scmp.ne.s32.totalorder %s98, %s99
      %p108 = scmp.eq.s32.totalorder %s25, 0
      %p109 = por %p107, %p108
      %p110 = scmp.ne.s32.totalorder %s98, %s99
      %p111 = scmp.eq.s32.totalorder %s26, 3
      %p112 = por %p110, %p111
      %p114 = scmp.ne.s32.totalorder %s99, %s113
      %p115 = scmp.eq.s32.totalorder %s26, 0
      %p116 = por %p114, %p115
      %s117 = ssub.s32 %s20, %s27
      %p118 = scmp.eq.s32.totalorder %s117, 0
      %s120 = sadd.s32 %s119, 1
      %s121 = scalar_select %p118, %s119, %s120
      %p124 = pneg %p118
      %p125 = scmp.eq.s32.totalorder %s20, 3
      %p126 = por %p124, %p125
      %p127 = scmp.ne.s32.totalorder %s119, %s122
      %p128 = scmp.eq.s32.totalorder %s20, 0
      %p129 = por %p127, %p128
      %p130 = scmp.ne.s32.totalorder %s119, %s122
      %p131 = scmp.eq.s32.totalorder %s25, 3
      %p132 = por %p130, %p131
      %p133 = scmp.ne.s32.totalorder %s122, %s123
      %p134 = scmp.eq.s32.totalorder %s25, 0
      %p135 = por %p133, %p134
      %p136 = scmp.ne.s32.totalorder %s122, %s123
      %p137 = scmp.eq.s32.totalorder %s26, 3
      %p138 = por %p136, %p137
      %p140 = scmp.ne.s32.totalorder %s123, %s139
      %p141 = scmp.eq.s32.totalorder %s26, 0
      %p142 = por %p140, %p141
      %s143 = ssub.s32 %s20, %s27
      %p144 = scmp.eq.s32.totalorder %s143, 0
      %s146 = sadd.s32 %s145, 1
      %s147 = scalar_select %p144, %s145, %s146
      %p150 = pneg %p144
      %p151 = scmp.eq.s32.totalorder %s20, 3
      %p152 = por %p150, %p151
      %p153 = scmp.ne.s32.totalorder %s145, %s148
      %p154 = scmp.eq.s32.totalorder %s20, 0
      %p155 = por %p153, %p154
      %p156 = scmp.ne.s32.totalorder %s145, %s148
      %p157 = scmp.eq.s32.totalorder %s25, 3
      %p158 = por %p156, %p157
      %p159 = scmp.ne.s32.totalorder %s148, %s149
      %p160 = scmp.eq.s32.totalorder %s25, 0
      %p161 = por %p159, %p160
      %p162 = scmp.ne.s32.totalorder %s148, %s149
      %p163 = scmp.eq.s32.totalorder %s26, 3
      %p164 = por %p162, %p163
      %p166 = scmp.ne.s32.totalorder %s149, %s165
      %p167 = scmp.eq.s32.totalorder %s26, 0
      %p168 = por %p166, %p167
      %p169 = scmp.le.s32.totalorder 1, %s20
      %p170 = scmp.lt.s32.totalorder %s20, 5
      %p171 = pnand %p169, %p170
      %p172 = pneg %p171
      // Predicated region
      $region9: #{tpu_custom_call.1} parent=5 // pred_check
        _
      $region10: #{tpu_custom_call.1} parent=5 // pred_check_branch
        %174 = sbr.rel (%p171) target = $region12
      $region11: #{tpu_custom_call.1} parent=5 // pred_region
        %s175 = ssub.s32 %s20, 1
        // Predicated region
        $region13: #{tpu_custom_call.1} parent=11 // pred_check
          %p176 = pneg %p67
        $region14: #{tpu_custom_call.1} parent=11 // pred_check_branch
          %178 = sbr.rel (%p176) target = $region16
        $region15: #{tpu_custom_call.1} parent=11 // pred_region
          %180 = vsyncadd [#allocation5], 0
          %s182 = sshll.u32 %s1, 4
          %s183 = int_to_ptr.hbm [resolvable:$true] %s182
          %185 = dma.hbm_to_smem %s183, 32, [#allocation6], [#allocation5]
        $region16: #{tpu_custom_call.1} parent=11 // pred_fallthru
          _
        // Predicated region
        $region17: #{tpu_custom_call.1} parent=11 // pred_check
          %p186 = pneg %p88
        $region18: #{tpu_custom_call.1} parent=11 // pred_check_branch
          %188 = sbr.rel (%p186) target = $region20
        $region19: #{tpu_custom_call.1} parent=11 // pred_region
          %190 = vsyncadd [#allocation8], 0
          %s192 = sshll.u32 %s2, 4
          %s193 = int_to_ptr.hbm [resolvable:$true] %s192
          %195 = dma.hbm_to_smem %s193, 16, [#allocation7], [#allocation8]
        $region20: #{tpu_custom_call.1} parent=11 // pred_fallthru
          _
        // Predicated region
        $region21: #{tpu_custom_call.1} parent=11 // pred_check
          %p196 = pneg %p109
        $region22: #{tpu_custom_call.1} parent=11 // pred_check_branch
          %198 = sbr.rel (%p196) target = $region24
        $region23: #{tpu_custom_call.1} parent=11 // pred_region
          _
        $region24: #{tpu_custom_call.1} parent=11 // pred_fallthru
          _
      $region12: #{tpu_custom_call.1} parent=5 // pred_fallthru
        _
      %p199 = scmp.lt.s32.totalorder %s20, 4
      // Predicated region
      $region25: #{tpu_custom_call.1} parent=5 // pred_check
        %p200 = pneg %p199
      $region26: #{tpu_custom_call.1} parent=5 // pred_check_branch
        %202 = sbr.rel (%p200) target = $region28
      $region27: #{tpu_custom_call.1} parent=5 // pred_region
        // Predicated region
        $region29: #{tpu_custom_call.1} parent=27 // pred_check
          %p203 = pneg %p40
        $region30: #{tpu_custom_call.1} parent=27 // pred_check_branch
          %205 = sbr.rel (%p203) target = $region32
        $region31: #{tpu_custom_call.1} parent=27 // pred_region
          %s206 = sand.u32 %s30, 1
          %s207 = scalar_lea.sflag [#allocation3], %s206
          %s208 = sand.u32 %s30, 1
          %s209 = smul.addr %s208, 8
          %s210 = scalar_lea.vmem [#allocation2], %s209
          %212 = vsyncadd %s207, 0
          %s213 = smul.addr %s20, 2
          %s214 = smul.addr %s213, 4
          %s215 = scalar_lea.hbm %s0, %s214
          %s217 = sshll.u32 %s215, 4
          %s218 = int_to_ptr.hbm [resolvable:$true] %s217
          %s219 = sshll.u32 %s210, 4
          %s220 = int_to_ptr.vmem [resolvable:$true] %s219
          %222 = dma.hbm_to_vmem [thread:$0]  %s218, 128, %s220, %s207
        $region32: #{tpu_custom_call.1} parent=27 // pred_fallthru
          _
      $region28: #{tpu_custom_call.1} parent=5 // pred_fallthru
        _
      %p223 = scmp.le.s32.totalorder 1, %s20
      %p224 = scmp.lt.s32.totalorder %s20, 5
      %p225 = pnand %p223, %p224
      %p226 = pneg %p225
      // Predicated region
      $region33: #{tpu_custom_call.1} parent=5 // pred_check
        _
      $region34: #{tpu_custom_call.1} parent=5 // pred_check_branch
        %228 = sbr.rel (%p225) target = $region36
      $region35: #{tpu_custom_call.1} parent=5 // pred_region
        %s229 = ssub.s32 %s20, 1
        %s230 = sand.u32 %s33, 1
        %s231 = scalar_lea.sflag [#allocation3], %s230
        %s232 = sand.u32 %s33, 1
        %s233 = smul.addr %s232, 8
        %s234 = scalar_lea.vmem [#allocation2], %s233
        // Predicated region
        $region37: #{tpu_custom_call.1} parent=35 // pred_check
          %p235 = pneg %p46
        $region38: #{tpu_custom_call.1} parent=35 // pred_check_branch
          %237 = sbr.rel (%p235) target = $region40
        $region39: #{tpu_custom_call.1} parent=35 // pred_region
          %239 = dma.done %s231, 128
        $region40: #{tpu_custom_call.1} parent=35 // pred_fallthru
          _
        // Predicated region
        $region41: #{tpu_custom_call.1} parent=35 // pred_check
          %p240 = pneg %p67
        $region42: #{tpu_custom_call.1} parent=35 // pred_check_branch
          %242 = sbr.rel (%p240) target = $region44
        $region43: #{tpu_custom_call.1} parent=35 // pred_region
          %244 = dma.done [#allocation5], 32
        $region44: #{tpu_custom_call.1} parent=35 // pred_fallthru
          _
        // Predicated region
        $region45: #{tpu_custom_call.1} parent=35 // pred_check
          %p245 = pneg %p88
        $region46: #{tpu_custom_call.1} parent=35 // pred_check_branch
          %247 = sbr.rel (%p245) target = $region48
        $region47: #{tpu_custom_call.1} parent=35 // pred_region
          %249 = dma.done [#allocation8], 16
        $region48: #{tpu_custom_call.1} parent=35 // pred_fallthru
          _
        %250 = sfence
        %s251 = sand.u32 %s33, 1
        %s252 = scalar_lea.sflag [#allocation3], %s251
        %s253 = sand.u32 %s33, 1
        %s254 = smul.addr %s253, 8
        %s255 = scalar_lea.vmem [#allocation2], %s254
        %p256 = pneg %p46
        %p257 = pneg %p43
        %p258 = pneg %p67
        %p259 = pneg %p64
        %p260 = pneg %p88
        %p261 = pneg %p85
        %p262 = pneg %p109
        %p263 = pneg %p106
        %p264 = pneg %p135
        %p265 = pneg %p132
        %s266 = sand.u32 %s122, 1
        %s267 = scalar_lea.sflag [#allocation4], %s266
        %s268 = sand.u32 %s122, 1
        %s269 = smul.addr %s268, 4
        %s270 = scalar_lea.vmem [#allocation9], %s269
        %p271 = pneg %p161
        %p272 = pneg %p158
        %p273 = scmp.lt.s32.totalorder %s25, 3
        %s274 = scalar_select %p273, %s25, 3
        %s275 = smul.addr %s274, 2
        %s276 = scalar_lea.vmem %s5, %s275
        %p277 = scmp.lt.s32.totalorder %s25, 3
        %s278 = scalar_select %p277, %s25, 3
        %s279 = smul.addr %s278, 2
        %s280 = scalar_lea.vmem %s5, %s279
        %v281 = vld [vmem:[%s234] sm:$0xff]
        %s282 = sld [smem:[#allocation6]]
        %v283 = vstv %s282
        %v284 = vmul.f32 %v283, %v281
        %v285 = vadd.f32 %v284, 0.0
        %s286 = sld [smem:[#allocation6 + $0x64]]
        %v287 = vstv %s286
        %v288 = vmul.f32 %v287, %v281
        %v289 = vadd.f32 %v288, 0.0
        %s290 = sld [smem:[#allocation6 + $0x19]]
        %v291 = vstv %s290
        %v292 = vmul.f32 %v291, %v281
        %v294 = vrot.slane %v292, 5
        %v295 = vrot.slane %v294, 4
        %v297 = vadd.f32 %v285, %v295
        %s298 = sld [smem:[#allocation6 + $0x7d]]
        %v299 = vstv %s298
        %v300 = vmul.f32 %v299, %v281
        %v302 = vrot.slane %v300, 5
        %v303 = vrot.slane %v302, 4
        %v305 = vadd.f32 %v289, %v303
        %s306 = sld [smem:[#allocation6 + $0x32]]
        %v307 = vstv %s306
        %v308 = vmul.f32 %v307, %v281
        %v310 = vrot.slane %v308, 6
        %v311 = vrot.slane %v310, 4
        %v313 = vadd.f32 %v297, %v311
        %s314 = sld [smem:[#allocation6 + $0x96]]
        %v315 = vstv %s314
        %v316 = vmul.f32 %v315, %v281
        %v318 = vrot.slane %v316, 6
        %v319 = vrot.slane %v318, 4
        %v321 = vadd.f32 %v305, %v319
        %s322 = sld [smem:[#allocation6 + $0x4b]]
        %v323 = vstv %s322
        %v324 = vmul.f32 %v323, %v281
        %v326 = vrot.slane %v324, 7
        %v327 = vrot.slane %v326, 4
        %v329 = vadd.f32 %v313, %v327
        %s330 = sld [smem:[#allocation6 + $0xaf]]
        %v331 = vstv %s330
        %v332 = vmul.f32 %v331, %v281
        %v334 = vrot.slane %v332, 7
        %v335 = vrot.slane %v334, 4
        %v337 = vadd.f32 %v321, %v335
        %s338 = sld [smem:[#allocation6 + $0x1]]
        %v339 = vstv %s338
        %v340 = vmul.f32 %v339, %v281
        %342 = vrot.lane.b32.xlu0 %v340, 127
        %v343 = vpop.permute.xlu0 %342
        %v344 = vrot.slane %v343, 4
        %vm345 = vcmask 1039360
        %v346 = vsel %vm345, %v343, %v344
        %v348 = vadd.f32 %v329, %v346
        %s349 = sld [smem:[#allocation6 + $0x65]]
        %v350 = vstv %s349
        %v351 = vmul.f32 %v350, %v281
        %353 = vrot.lane.b32.xlu0 %v351, 127
        %v354 = vpop.permute.xlu0 %353
        %v355 = vrot.slane %v354, 4
        %v356 = vsel %vm345, %v354, %v355
        %v358 = vadd.f32 %v337, %v356
        %s359 = sld [smem:[#allocation6 + $0x1a]]
        %v360 = vstv %s359
        %v361 = vmul.f32 %v360, %v281
        %v363 = vrot.slane %v361, 5
        %v364 = vrot.slane %v363, 4
        %365 = vrot.lane.b32.xlu0 %v364, 127
        %v366 = vpop.permute.xlu0 %365
        %v367 = vrot.slane %v366, 4
        %v368 = vsel %vm345, %v366, %v367
        %v370 = vadd.f32 %v348, %v368
        %s371 = sld [smem:[#allocation6 + $0x7e]]
        %v372 = vstv %s371
        %v373 = vmul.f32 %v372, %v281
        %v375 = vrot.slane %v373, 5
        %v376 = vrot.slane %v375, 4
        %377 = vrot.lane.b32.xlu0 %v376, 127
        %v378 = vpop.permute.xlu0 %377
        %v379 = vrot.slane %v378, 4
        %v380 = vsel %vm345, %v378, %v379
        %v382 = vadd.f32 %v358, %v380
        %s383 = sld [smem:[#allocation6 + $0x33]]
        %v384 = vstv %s383
        %v385 = vmul.f32 %v384, %v281
        %v387 = vrot.slane %v385, 6
        %v388 = vrot.slane %v387, 4
        %389 = vrot.lane.b32.xlu0 %v388, 127
        %v390 = vpop.permute.xlu0 %389
        %v391 = vrot.slane %v390, 4
        %v392 = vsel %vm345, %v390, %v391
        %v394 = vadd.f32 %v370, %v392
        %s395 = sld [smem:[#allocation6 + $0x97]]
        %v396 = vstv %s395
        %v397 = vmul.f32 %v396, %v281
        %v399 = vrot.slane %v397, 6
        %v400 = vrot.slane %v399, 4
        %401 = vrot.lane.b32.xlu0 %v400, 127
        %v402 = vpop.permute.xlu0 %401
        %v403 = vrot.slane %v402, 4
        %v404 = vsel %vm345, %v402, %v403
        %v406 = vadd.f32 %v382, %v404
        %s407 = sld [smem:[#allocation6 + $0x4c]]
        %v408 = vstv %s407
        %v409 = vmul.f32 %v408, %v281
        %v411 = vrot.slane %v409, 7
        %v412 = vrot.slane %v411, 4
        %413 = vrot.lane.b32.xlu0 %v412, 127
        %v414 = vpop.permute.xlu0 %413
        %v415 = vrot.slane %v414, 4
        %v416 = vsel %vm345, %v414, %v415
        %v418 = vadd.f32 %v394, %v416
        %s419 = sld [smem:[#allocation6 + $0xb0]]
        %v420 = vstv %s419
        %v421 = vmul.f32 %v420, %v281
        %v423 = vrot.slane %v421, 7
        %v424 = vrot.slane %v423, 4
        %425 = vrot.lane.b32.xlu0 %v424, 127
        %v426 = vpop.permute.xlu0 %425
        %v427 = vrot.slane %v426, 4
        %v428 = vsel %vm345, %v426, %v427
        %v430 = vadd.f32 %v406, %v428
        %s431 = sld [smem:[#allocation6 + $0x2]]
        %v432 = vstv %s431
        %v433 = vmul.f32 %v432, %v281
        %435 = vrot.lane.b32.xlu0 %v433, 126
        %v436 = vpop.permute.xlu0 %435
        %v437 = vrot.slane %v436, 4
        %vm438 = vcmask 1031168
        %v439 = vsel %vm438, %v436, %v437
        %v441 = vadd.f32 %v418, %v439
        %s442 = sld [smem:[#allocation6 + $0x66]]
        %v443 = vstv %s442
        %v444 = vmul.f32 %v443, %v281
        %446 = vrot.lane.b32.xlu0 %v444, 126
        %v447 = vpop.permute.xlu0 %446
        %v448 = vrot.slane %v447, 4
        %v449 = vsel %vm438, %v447, %v448
        %v451 = vadd.f32 %v430, %v449
        %s452 = sld [smem:[#allocation6 + $0x1b]]
        %v453 = vstv %s452
        %v454 = vmul.f32 %v453, %v281
        %v456 = vrot.slane %v454, 5
        %v457 = vrot.slane %v456, 4
        %458 = vrot.lane.b32.xlu0 %v457, 126
        %v459 = vpop.permute.xlu0 %458
        %v460 = vrot.slane %v459, 4
        %v461 = vsel %vm438, %v459, %v460
        %v463 = vadd.f32 %v441, %v461
        %s464 = sld [smem:[#allocation6 + $0x7f]]
        %v465 = vstv %s464
        %v466 = vmul.f32 %v465, %v281
        %v468 = vrot.slane %v466, 5
        %v469 = vrot.slane %v468, 4
        %470 = vrot.lane.b32.xlu0 %v469, 126
        %v471 = vpop.permute.xlu0 %470
        %v472 = vrot.slane %v471, 4
        %v473 = vsel %vm438, %v471, %v472
        %v475 = vadd.f32 %v451, %v473
        %s476 = sld [smem:[#allocation6 + $0x34]]
        %v477 = vstv %s476
        %v478 = vmul.f32 %v477, %v281
        %v480 = vrot.slane %v478, 6
        %v481 = vrot.slane %v480, 4
        %482 = vrot.lane.b32.xlu0 %v481, 126
        %v483 = vpop.permute.xlu0 %482
        %v484 = vrot.slane %v483, 4
        %v485 = vsel %vm438, %v483, %v484
        %v487 = vadd.f32 %v463, %v485
        %s488 = sld [smem:[#allocation6 + $0x98]]
        %v489 = vstv %s488
        %v490 = vmul.f32 %v489, %v281
        %v492 = vrot.slane %v490, 6
        %v493 = vrot.slane %v492, 4
        %494 = vrot.lane.b32.xlu0 %v493, 126
        %v495 = vpop.permute.xlu0 %494
        %v496 = vrot.slane %v495, 4
        %v497 = vsel %vm438, %v495, %v496
        %v499 = vadd.f32 %v475, %v497
        %s500 = sld [smem:[#allocation6 + $0x4d]]
        %v501 = vstv %s500
        %v502 = vmul.f32 %v501, %v281
        %v504 = vrot.slane %v502, 7
        %v505 = vrot.slane %v504, 4
        %506 = vrot.lane.b32.xlu0 %v505, 126
        %v507 = vpop.permute.xlu0 %506
        %v508 = vrot.slane %v507, 4
        %v509 = vsel %vm438, %v507, %v508
        %v511 = vadd.f32 %v487, %v509
        %s512 = sld [smem:[#allocation6 + $0xb1]]
        %v513 = vstv %s512
        %v514 = vmul.f32 %v513, %v281
        %v516 = vrot.slane %v514, 7
        %v517 = vrot.slane %v516, 4
        %518 = vrot.lane.b32.xlu0 %v517, 126
        %v519 = vpop.permute.xlu0 %518
        %v520 = vrot.slane %v519, 4
        %v521 = vsel %vm438, %v519, %v520
        %v523 = vadd.f32 %v499, %v521
        %s524 = sld [smem:[#allocation6 + $0x3]]
        %v525 = vstv %s524
        %v526 = vmul.f32 %v525, %v281
        %528 = vrot.lane.b32.xlu0 %v526, 125
        %v529 = vpop.permute.xlu0 %528
        %v530 = vrot.slane %v529, 4
        %vm531 = vcmask 1022976
        %v532 = vsel %vm531, %v529, %v530
        %v534 = vadd.f32 %v511, %v532
        %s535 = sld [smem:[#allocation6 + $0x67]]
        %v536 = vstv %s535
        %v537 = vmul.f32 %v536, %v281
        %539 = vrot.lane.b32.xlu0 %v537, 125
        %v540 = vpop.permute.xlu0 %539
        %v541 = vrot.slane %v540, 4
        %v542 = vsel %vm531, %v540, %v541
        %v544 = vadd.f32 %v523, %v542
        %s545 = sld [smem:[#allocation6 + $0x1c]]
        %v546 = vstv %s545
        %v547 = vmul.f32 %v546, %v281
        %v549 = vrot.slane %v547, 5
        %v550 = vrot.slane %v549, 4
        %551 = vrot.lane.b32.xlu0 %v550, 125
        %v552 = vpop.permute.xlu0 %551
        %v553 = vrot.slane %v552, 4
        %v554 = vsel %vm531, %v552, %v553
        %v556 = vadd.f32 %v534, %v554
        %s557 = sld [smem:[#allocation6 + $0x80]]
        %v558 = vstv %s557
        %v559 = vmul.f32 %v558, %v281
        %v561 = vrot.slane %v559, 5
        %v562 = vrot.slane %v561, 4
        %563 = vrot.lane.b32.xlu0 %v562, 125
        %v564 = vpop.permute.xlu0 %563
        %v565 = vrot.slane %v564, 4
        %v566 = vsel %vm531, %v564, %v565
        %v568 = vadd.f32 %v544, %v566
        %s569 = sld [smem:[#allocation6 + $0x35]]
        %v570 = vstv %s569
        %v571 = vmul.f32 %v570, %v281
        %v573 = vrot.slane %v571, 6
        %v574 = vrot.slane %v573, 4
        %575 = vrot.lane.b32.xlu0 %v574, 125
        %v576 = vpop.permute.xlu0 %575
        %v577 = vrot.slane %v576, 4
        %v578 = vsel %vm531, %v576, %v577
        %v580 = vadd.f32 %v556, %v578
        %s581 = sld [smem:[#allocation6 + $0x99]]
        %v582 = vstv %s581
        %v583 = vmul.f32 %v582, %v281
        %v585 = vrot.slane %v583, 6
        %v586 = vrot.slane %v585, 4
        %587 = vrot.lane.b32.xlu0 %v586, 125
        %v588 = vpop.permute.xlu0 %587
        %v589 = vrot.slane %v588, 4
        %v590 = vsel %vm531, %v588, %v589
        %v592 = vadd.f32 %v568, %v590
        %s593 = sld [smem:[#allocation6 + $0x4e]]
        %v594 = vstv %s593
        %v595 = vmul.f32 %v594, %v281
        %v597 = vrot.slane %v595, 7
        %v598 = vrot.slane %v597, 4
        %599 = vrot.lane.b32.xlu0 %v598, 125
        %v600 = vpop.permute.xlu0 %599
        %v601 = vrot.slane %v600, 4
        %v602 = vsel %vm531, %v600, %v601
        %v604 = vadd.f32 %v580, %v602
        %s605 = sld [smem:[#allocation6 + $0xb2]]
        %v606 = vstv %s605
        %v607 = vmul.f32 %v606, %v281
        %v609 = vrot.slane %v607, 7
        %v610 = vrot.slane %v609, 4
        %611 = vrot.lane.b32.xlu0 %v610, 125
        %v612 = vpop.permute.xlu0 %611
        %v613 = vrot.slane %v612, 4
        %v614 = vsel %vm531, %v612, %v613
        %v616 = vadd.f32 %v592, %v614
        %s617 = sld [smem:[#allocation6 + $0x4]]
        %v618 = vstv %s617
        %v619 = vmul.f32 %v618, %v281
        %621 = vrot.lane.b32.xlu0 %v619, 124
        %v622 = vpop.permute.xlu0 %621
        %v623 = vrot.slane %v622, 4
        %vm624 = vcmask 1014784
        %v625 = vsel %vm624, %v622, %v623
        %v627 = vadd.f32 %v604, %v625
        %s628 = sld [smem:[#allocation6 + $0x68]]
        %v629 = vstv %s628
        %v630 = vmul.f32 %v629, %v281
        %632 = vrot.lane.b32.xlu0 %v630, 124
        %v633 = vpop.permute.xlu0 %632
        %v634 = vrot.slane %v633, 4
        %v635 = vsel %vm624, %v633, %v634
        %v637 = vadd.f32 %v616, %v635
        %s638 = sld [smem:[#allocation6 + $0x1d]]
        %v639 = vstv %s638
        %v640 = vmul.f32 %v639, %v281
        %v642 = vrot.slane %v640, 5
        %v643 = vrot.slane %v642, 4
        %644 = vrot.lane.b32.xlu0 %v643, 124
        %v645 = vpop.permute.xlu0 %644
        %v646 = vrot.slane %v645, 4
        %v647 = vsel %vm624, %v645, %v646
        %v649 = vadd.f32 %v627, %v647
        %s650 = sld [smem:[#allocation6 + $0x81]]
        %v651 = vstv %s650
        %v652 = vmul.f32 %v651, %v281
        %v654 = vrot.slane %v652, 5
        %v655 = vrot.slane %v654, 4
        %656 = vrot.lane.b32.xlu0 %v655, 124
        %v657 = vpop.permute.xlu0 %656
        %v658 = vrot.slane %v657, 4
        %v659 = vsel %vm624, %v657, %v658
        %v661 = vadd.f32 %v637, %v659
        %s662 = sld [smem:[#allocation6 + $0x36]]
        %v663 = vstv %s662
        %v664 = vmul.f32 %v663, %v281
        %v666 = vrot.slane %v664, 6
        %v667 = vrot.slane %v666, 4
        %668 = vrot.lane.b32.xlu0 %v667, 124
        %v669 = vpop.permute.xlu0 %668
        %v670 = vrot.slane %v669, 4
        %v671 = vsel %vm624, %v669, %v670
        %v673 = vadd.f32 %v649, %v671
        %s674 = sld [smem:[#allocation6 + $0x9a]]
        %v675 = vstv %s674
        %v676 = vmul.f32 %v675, %v281
        %v678 = vrot.slane %v676, 6
        %v679 = vrot.slane %v678, 4
        %680 = vrot.lane.b32.xlu0 %v679, 124
        %v681 = vpop.permute.xlu0 %680
        %v682 = vrot.slane %v681, 4
        %v683 = vsel %vm624, %v681, %v682
        %v685 = vadd.f32 %v661, %v683
        %s686 = sld [smem:[#allocation6 + $0x4f]]
        %v687 = vstv %s686
        %v688 = vmul.f32 %v687, %v281
        %v690 = vrot.slane %v688, 7
        %v691 = vrot.slane %v690, 4
        %692 = vrot.lane.b32.xlu0 %v691, 124
        %v693 = vpop.permute.xlu0 %692
        %v694 = vrot.slane %v693, 4
        %v695 = vsel %vm624, %v693, %v694
        %v697 = vadd.f32 %v673, %v695
        %s698 = sld [smem:[#allocation6 + $0xb3]]
        %v699 = vstv %s698
        %v700 = vmul.f32 %v699, %v281
        %v702 = vrot.slane %v700, 7
        %v703 = vrot.slane %v702, 4
        %704 = vrot.lane.b32.xlu0 %v703, 124
        %v705 = vpop.permute.xlu0 %704
        %v706 = vrot.slane %v705, 4
        %v707 = vsel %vm624, %v705, %v706
        %v709 = vadd.f32 %v685, %v707
        %s710 = sld [smem:[#allocation6 + $0x5]]
        %v711 = vstv %s710
        %v712 = vmul.f32 %v711, %v281
        %714 = vrot.lane.b32.xlu0 %v712, 108
        %v715 = vpop.permute.xlu0 %714
        %v716 = vrot.slane %v715, 4
        %vm717 = vcmask 883712
        %v718 = vsel %vm717, %v715, %v716
        %v720 = vadd.f32 %v697, %v718
        %s721 = sld [smem:[#allocation6 + $0x69]]
        %v722 = vstv %s721
        %v723 = vmul.f32 %v722, %v281
        %725 = vrot.lane.b32.xlu0 %v723, 108
        %v726 = vpop.permute.xlu0 %725
        %v727 = vrot.slane %v726, 4
        %v728 = vsel %vm717, %v726, %v727
        %v730 = vadd.f32 %v709, %v728
        %s731 = sld [smem:[#allocation6 + $0x1e]]
        %v732 = vstv %s731
        %v733 = vmul.f32 %v732, %v281
        %v735 = vrot.slane %v733, 5
        %v736 = vrot.slane %v735, 4
        %737 = vrot.lane.b32.xlu0 %v736, 108
        %v738 = vpop.permute.xlu0 %737
        %v739 = vrot.slane %v738, 4
        %v740 = vsel %vm717, %v738, %v739
        %v742 = vadd.f32 %v720, %v740
        %s743 = sld [smem:[#allocation6 + $0x82]]
        %v744 = vstv %s743
        %v745 = vmul.f32 %v744, %v281
        %v747 = vrot.slane %v745, 5
        %v748 = vrot.slane %v747, 4
        %749 = vrot.lane.b32.xlu0 %v748, 108
        %v750 = vpop.permute.xlu0 %749
        %v751 = vrot.slane %v750, 4
        %v752 = vsel %vm717, %v750, %v751
        %v754 = vadd.f32 %v730, %v752
        %s755 = sld [smem:[#allocation6 + $0x37]]
        %v756 = vstv %s755
        %v757 = vmul.f32 %v756, %v281
        %v759 = vrot.slane %v757, 6
        %v760 = vrot.slane %v759, 4
        %761 = vrot.lane.b32.xlu0 %v760, 108
        %v762 = vpop.permute.xlu0 %761
        %v763 = vrot.slane %v762, 4
        %v764 = vsel %vm717, %v762, %v763
        %v766 = vadd.f32 %v742, %v764
        %s767 = sld [smem:[#allocation6 + $0x9b]]
        %v768 = vstv %s767
        %v769 = vmul.f32 %v768, %v281
        %v771 = vrot.slane %v769, 6
        %v772 = vrot.slane %v771, 4
        %773 = vrot.lane.b32.xlu0 %v772, 108
        %v774 = vpop.permute.xlu0 %773
        %v775 = vrot.slane %v774, 4
        %v776 = vsel %vm717, %v774, %v775
        %v778 = vadd.f32 %v754, %v776
        %s779 = sld [smem:[#allocation6 + $0x50]]
        %v780 = vstv %s779
        %v781 = vmul.f32 %v780, %v281
        %v783 = vrot.slane %v781, 7
        %v784 = vrot.slane %v783, 4
        %785 = vrot.lane.b32.xlu0 %v784, 108
        %v786 = vpop.permute.xlu0 %785
        %v787 = vrot.slane %v786, 4
        %v788 = vsel %vm717, %v786, %v787
        %v790 = vadd.f32 %v766, %v788
        %s791 = sld [smem:[#allocation6 + $0xb4]]
        %v792 = vstv %s791
        %v793 = vmul.f32 %v792, %v281
        %v795 = vrot.slane %v793, 7
        %v796 = vrot.slane %v795, 4
        %797 = vrot.lane.b32.xlu0 %v796, 108
        %v798 = vpop.permute.xlu0 %797
        %v799 = vrot.slane %v798, 4
        %v800 = vsel %vm717, %v798, %v799
        %v802 = vadd.f32 %v778, %v800
        %s803 = sld [smem:[#allocation6 + $0x6]]
        %v804 = vstv %s803
        %v805 = vmul.f32 %v804, %v281
        %807 = vrot.lane.b32.xlu0 %v805, 107
        %v808 = vpop.permute.xlu0 %807
        %v809 = vrot.slane %v808, 4
        %vm810 = vcmask 875520
        %v811 = vsel %vm810, %v808, %v809
        %v813 = vadd.f32 %v790, %v811
        %s814 = sld [smem:[#allocation6 + $0x6a]]
        %v815 = vstv %s814
        %v816 = vmul.f32 %v815, %v281
        %818 = vrot.lane.b32.xlu0 %v816, 107
        %v819 = vpop.permute.xlu0 %818
        %v820 = vrot.slane %v819, 4
        %v821 = vsel %vm810, %v819, %v820
        %v823 = vadd.f32 %v802, %v821
        %s824 = sld [smem:[#allocation6 + $0x1f]]
        %v825 = vstv %s824
        %v826 = vmul.f32 %v825, %v281
        %v828 = vrot.slane %v826, 5
        %v829 = vrot.slane %v828, 4
        %830 = vrot.lane.b32.xlu0 %v829, 107
        %v831 = vpop.permute.xlu0 %830
        %v832 = vrot.slane %v831, 4
        %v833 = vsel %vm810, %v831, %v832
        %v835 = vadd.f32 %v813, %v833
        %s836 = sld [smem:[#allocation6 + $0x83]]
        %v837 = vstv %s836
        %v838 = vmul.f32 %v837, %v281
        %v840 = vrot.slane %v838, 5
        %v841 = vrot.slane %v840, 4
        %842 = vrot.lane.b32.xlu0 %v841, 107
        %v843 = vpop.permute.xlu0 %842
        %v844 = vrot.slane %v843, 4
        %v845 = vsel %vm810, %v843, %v844
        %v847 = vadd.f32 %v823, %v845
        %s848 = sld [smem:[#allocation6 + $0x38]]
        %v849 = vstv %s848
        %v850 = vmul.f32 %v849, %v281
        %v852 = vrot.slane %v850, 6
        %v853 = vrot.slane %v852, 4
        %854 = vrot.lane.b32.xlu0 %v853, 107
        %v855 = vpop.permute.xlu0 %854
        %v856 = vrot.slane %v855, 4
        %v857 = vsel %vm810, %v855, %v856
        %v859 = vadd.f32 %v835, %v857
        %s860 = sld [smem:[#allocation6 + $0x9c]]
        %v861 = vstv %s860
        %v862 = vmul.f32 %v861, %v281
        %v864 = vrot.slane %v862, 6
        %v865 = vrot.slane %v864, 4
        %866 = vrot.lane.b32.xlu0 %v865, 107
        %v867 = vpop.permute.xlu0 %866
        %v868 = vrot.slane %v867, 4
        %v869 = vsel %vm810, %v867, %v868
        %v871 = vadd.f32 %v847, %v869
        %s872 = sld [smem:[#allocation6 + $0x51]]
        %v873 = vstv %s872
        %v874 = vmul.f32 %v873, %v281
        %v876 = vrot.slane %v874, 7
        %v877 = vrot.slane %v876, 4
        %878 = vrot.lane.b32.xlu0 %v877, 107
        %v879 = vpop.permute.xlu0 %878
        %v880 = vrot.slane %v879, 4
        %v881 = vsel %vm810, %v879, %v880
        %v883 = vadd.f32 %v859, %v881
        %s884 = sld [smem:[#allocation6 + $0xb5]]
        %v885 = vstv %s884
        %v886 = vmul.f32 %v885, %v281
        %v888 = vrot.slane %v886, 7
        %v889 = vrot.slane %v888, 4
        %890 = vrot.lane.b32.xlu0 %v889, 107
        %v891 = vpop.permute.xlu0 %890
        %v892 = vrot.slane %v891, 4
        %v893 = vsel %vm810, %v891, %v892
        %v895 = vadd.f32 %v871, %v893
        %s896 = sld [smem:[#allocation6 + $0x7]]
        %v897 = vstv %s896
        %v898 = vmul.f32 %v897, %v281
        %900 = vrot.lane.b32.xlu0 %v898, 106
        %v901 = vpop.permute.xlu0 %900
        %v902 = vrot.slane %v901, 4
        %vm903 = vcmask 867328
        %v904 = vsel %vm903, %v901, %v902
        %v906 = vadd.f32 %v883, %v904
        %s907 = sld [smem:[#allocation6 + $0x6b]]
        %v908 = vstv %s907
        %v909 = vmul.f32 %v908, %v281
        %911 = vrot.lane.b32.xlu0 %v909, 106
        %v912 = vpop.permute.xlu0 %911
        %v913 = vrot.slane %v912, 4
        %v914 = vsel %vm903, %v912, %v913
        %v916 = vadd.f32 %v895, %v914
        %s917 = sld [smem:[#allocation6 + $0x20]]
        %v918 = vstv %s917
        %v919 = vmul.f32 %v918, %v281
        %v921 = vrot.slane %v919, 5
        %v922 = vrot.slane %v921, 4
        %923 = vrot.lane.b32.xlu0 %v922, 106
        %v924 = vpop.permute.xlu0 %923
        %v925 = vrot.slane %v924, 4
        %v926 = vsel %vm903, %v924, %v925
        %v928 = vadd.f32 %v906, %v926
        %s929 = sld [smem:[#allocation6 + $0x84]]
        %v930 = vstv %s929
        %v931 = vmul.f32 %v930, %v281
        %v933 = vrot.slane %v931, 5
        %v934 = vrot.slane %v933, 4
        %935 = vrot.lane.b32.xlu0 %v934, 106
        %v936 = vpop.permute.xlu0 %935
        %v937 = vrot.slane %v936, 4
        %v938 = vsel %vm903, %v936, %v937
        %v940 = vadd.f32 %v916, %v938
        %s941 = sld [smem:[#allocation6 + $0x39]]
        %v942 = vstv %s941
        %v943 = vmul.f32 %v942, %v281
        %v945 = vrot.slane %v943, 6
        %v946 = vrot.slane %v945, 4
        %947 = vrot.lane.b32.xlu0 %v946, 106
        %v948 = vpop.permute.xlu0 %947
        %v949 = vrot.slane %v948, 4
        %v950 = vsel %vm903, %v948, %v949
        %v952 = vadd.f32 %v928, %v950
        %s953 = sld [smem:[#allocation6 + $0x9d]]
        %v954 = vstv %s953
        %v955 = vmul.f32 %v954, %v281
        %v957 = vrot.slane %v955, 6
        %v958 = vrot.slane %v957, 4
        %959 = vrot.lane.b32.xlu0 %v958, 106
        %v960 = vpop.permute.xlu0 %959
        %v961 = vrot.slane %v960, 4
        %v962 = vsel %vm903, %v960, %v961
        %v964 = vadd.f32 %v940, %v962
        %s965 = sld [smem:[#allocation6 + $0x52]]
        %v966 = vstv %s965
        %v967 = vmul.f32 %v966, %v281
        %v969 = vrot.slane %v967, 7
        %v970 = vrot.slane %v969, 4
        %971 = vrot.lane.b32.xlu0 %v970, 106
        %v972 = vpop.permute.xlu0 %971
        %v973 = vrot.slane %v972, 4
        %v974 = vsel %vm903, %v972, %v973
        %v976 = vadd.f32 %v952, %v974
        %s977 = sld [smem:[#allocation6 + $0xb6]]
        %v978 = vstv %s977
        %v979 = vmul.f32 %v978, %v281
        %v981 = vrot.slane %v979, 7
        %v982 = vrot.slane %v981, 4
        %983 = vrot.lane.b32.xlu0 %v982, 106
        %v984 = vpop.permute.xlu0 %983
        %v985 = vrot.slane %v984, 4
        %v986 = vsel %vm903, %v984, %v985
        %v988 = vadd.f32 %v964, %v986
        %s989 = sld [smem:[#allocation6 + $0x8]]
        %v990 = vstv %s989
        %v991 = vmul.f32 %v990, %v281
        %993 = vrot.lane.b32.xlu0 %v991, 105
        %v994 = vpop.permute.xlu0 %993
        %v995 = vrot.slane %v994, 4
        %vm996 = vcmask 859136
        %v997 = vsel %vm996, %v994, %v995
        %v999 = vadd.f32 %v976, %v997
        %s1000 = sld [smem:[#allocation6 + $0x6c]]
        %v1001 = vstv %s1000
        %v1002 = vmul.f32 %v1001, %v281
        %1004 = vrot.lane.b32.xlu0 %v1002, 105
        %v1005 = vpop.permute.xlu0 %1004
        %v1006 = vrot.slane %v1005, 4
        %v1007 = vsel %vm996, %v1005, %v1006
        %v1009 = vadd.f32 %v988, %v1007
        %s1010 = sld [smem:[#allocation6 + $0x21]]
        %v1011 = vstv %s1010
        %v1012 = vmul.f32 %v1011, %v281
        %v1014 = vrot.slane %v1012, 5
        %v1015 = vrot.slane %v1014, 4
        %1016 = vrot.lane.b32.xlu0 %v1015, 105
        %v1017 = vpop.permute.xlu0 %1016
        %v1018 = vrot.slane %v1017, 4
        %v1019 = vsel %vm996, %v1017, %v1018
        %v1021 = vadd.f32 %v999, %v1019
        %s1022 = sld [smem:[#allocation6 + $0x85]]
        %v1023 = vstv %s1022
        %v1024 = vmul.f32 %v1023, %v281
        %v1026 = vrot.slane %v1024, 5
        %v1027 = vrot.slane %v1026, 4
        %1028 = vrot.lane.b32.xlu0 %v1027, 105
        %v1029 = vpop.permute.xlu0 %1028
        %v1030 = vrot.slane %v1029, 4
        %v1031 = vsel %vm996, %v1029, %v1030
        %v1033 = vadd.f32 %v1009, %v1031
        %s1034 = sld [smem:[#allocation6 + $0x3a]]
        %v1035 = vstv %s1034
        %v1036 = vmul.f32 %v1035, %v281
        %v1038 = vrot.slane %v1036, 6
        %v1039 = vrot.slane %v1038, 4
        %1040 = vrot.lane.b32.xlu0 %v1039, 105
        %v1041 = vpop.permute.xlu0 %1040
        %v1042 = vrot.slane %v1041, 4
        %v1043 = vsel %vm996, %v1041, %v1042
        %v1045 = vadd.f32 %v1021, %v1043
        %s1046 = sld [smem:[#allocation6 + $0x9e]]
        %v1047 = vstv %s1046
        %v1048 = vmul.f32 %v1047, %v281
        %v1050 = vrot.slane %v1048, 6
        %v1051 = vrot.slane %v1050, 4
        %1052 = vrot.lane.b32.xlu0 %v1051, 105
        %v1053 = vpop.permute.xlu0 %1052
        %v1054 = vrot.slane %v1053, 4
        %v1055 = vsel %vm996, %v1053, %v1054
        %v1057 = vadd.f32 %v1033, %v1055
        %s1058 = sld [smem:[#allocation6 + $0x53]]
        %v1059 = vstv %s1058
        %v1060 = vmul.f32 %v1059, %v281
        %v1062 = vrot.slane %v1060, 7
        %v1063 = vrot.slane %v1062, 4
        %1064 = vrot.lane.b32.xlu0 %v1063, 105
        %v1065 = vpop.permute.xlu0 %1064
        %v1066 = vrot.slane %v1065, 4
        %v1067 = vsel %vm996, %v1065, %v1066
        %v1069 = vadd.f32 %v1045, %v1067
        %s1070 = sld [smem:[#allocation6 + $0xb7]]
        %v1071 = vstv %s1070
        %v1072 = vmul.f32 %v1071, %v281
        %v1074 = vrot.slane %v1072, 7
        %v1075 = vrot.slane %v1074, 4
        %1076 = vrot.lane.b32.xlu0 %v1075, 105
        %v1077 = vpop.permute.xlu0 %1076
        %v1078 = vrot.slane %v1077, 4
        %v1079 = vsel %vm996, %v1077, %v1078
        %v1081 = vadd.f32 %v1057, %v1079
        %s1082 = sld [smem:[#allocation6 + $0x9]]
        %v1083 = vstv %s1082
        %v1084 = vmul.f32 %v1083, %v281
        %1086 = vrot.lane.b32.xlu0 %v1084, 104
        %v1087 = vpop.permute.xlu0 %1086
        %v1088 = vrot.slane %v1087, 4
        %vm1089 = vcmask 850944
        %v1090 = vsel %vm1089, %v1087, %v1088
        %v1092 = vadd.f32 %v1069, %v1090
        %s1093 = sld [smem:[#allocation6 + $0x6d]]
        %v1094 = vstv %s1093
        %v1095 = vmul.f32 %v1094, %v281
        %1097 = vrot.lane.b32.xlu0 %v1095, 104
        %v1098 = vpop.permute.xlu0 %1097
        %v1099 = vrot.slane %v1098, 4
        %v1100 = vsel %vm1089, %v1098, %v1099
        %v1102 = vadd.f32 %v1081, %v1100
        %s1103 = sld [smem:[#allocation6 + $0x22]]
        %v1104 = vstv %s1103
        %v1105 = vmul.f32 %v1104, %v281
        %v1107 = vrot.slane %v1105, 5
        %v1108 = vrot.slane %v1107, 4
        %1109 = vrot.lane.b32.xlu0 %v1108, 104
        %v1110 = vpop.permute.xlu0 %1109
        %v1111 = vrot.slane %v1110, 4
        %v1112 = vsel %vm1089, %v1110, %v1111
        %v1114 = vadd.f32 %v1092, %v1112
        %s1115 = sld [smem:[#allocation6 + $0x86]]
        %v1116 = vstv %s1115
        %v1117 = vmul.f32 %v1116, %v281
        %v1119 = vrot.slane %v1117, 5
        %v1120 = vrot.slane %v1119, 4
        %1121 = vrot.lane.b32.xlu0 %v1120, 104
        %v1122 = vpop.permute.xlu0 %1121
        %v1123 = vrot.slane %v1122, 4
        %v1124 = vsel %vm1089, %v1122, %v1123
        %v1126 = vadd.f32 %v1102, %v1124
        %s1127 = sld [smem:[#allocation6 + $0x3b]]
        %v1128 = vstv %s1127
        %v1129 = vmul.f32 %v1128, %v281
        %v1131 = vrot.slane %v1129, 6
        %v1132 = vrot.slane %v1131, 4
        %1133 = vrot.lane.b32.xlu0 %v1132, 104
        %v1134 = vpop.permute.xlu0 %1133
        %v1135 = vrot.slane %v1134, 4
        %v1136 = vsel %vm1089, %v1134, %v1135
        %v1138 = vadd.f32 %v1114, %v1136
        %s1139 = sld [smem:[#allocation6 + $0x9f]]
        %v1140 = vstv %s1139
        %v1141 = vmul.f32 %v1140, %v281
        %v1143 = vrot.slane %v1141, 6
        %v1144 = vrot.slane %v1143, 4
        %1145 = vrot.lane.b32.xlu0 %v1144, 104
        %v1146 = vpop.permute.xlu0 %1145
        %v1147 = vrot.slane %v1146, 4
        %v1148 = vsel %vm1089, %v1146, %v1147
        %v1150 = vadd.f32 %v1126, %v1148
        %s1151 = sld [smem:[#allocation6 + $0x54]]
        %v1152 = vstv %s1151
        %v1153 = vmul.f32 %v1152, %v281
        %v1155 = vrot.slane %v1153, 7
        %v1156 = vrot.slane %v1155, 4
        %1157 = vrot.lane.b32.xlu0 %v1156, 104
        %v1158 = vpop.permute.xlu0 %1157
        %v1159 = vrot.slane %v1158, 4
        %v1160 = vsel %vm1089, %v1158, %v1159
        %v1162 = vadd.f32 %v1138, %v1160
        %s1163 = sld [smem:[#allocation6 + $0xb8]]
        %v1164 = vstv %s1163
        %v1165 = vmul.f32 %v1164, %v281
        %v1167 = vrot.slane %v1165, 7
        %v1168 = vrot.slane %v1167, 4
        %1169 = vrot.lane.b32.xlu0 %v1168, 104
        %v1170 = vpop.permute.xlu0 %1169
        %v1171 = vrot.slane %v1170, 4
        %v1172 = vsel %vm1089, %v1170, %v1171
        %v1174 = vadd.f32 %v1150, %v1172
        %s1175 = sld [smem:[#allocation6 + $0xa]]
        %v1176 = vstv %s1175
        %v1177 = vmul.f32 %v1176, %v281
        %1179 = vrot.lane.b32.xlu0 %v1177, 88
        %v1180 = vpop.permute.xlu0 %1179
        %v1181 = vrot.slane %v1180, 4
        %vm1182 = vcmask 719872
        %v1183 = vsel %vm1182, %v1180, %v1181
        %v1185 = vadd.f32 %v1162, %v1183
        %s1186 = sld [smem:[#allocation6 + $0x6e]]
        %v1187 = vstv %s1186
        %v1188 = vmul.f32 %v1187, %v281
        %1190 = vrot.lane.b32.xlu0 %v1188, 88
        %v1191 = vpop.permute.xlu0 %1190
        %v1192 = vrot.slane %v1191, 4
        %v1193 = vsel %vm1182, %v1191, %v1192
        %v1195 = vadd.f32 %v1174, %v1193
        %s1196 = sld [smem:[#allocation6 + $0x23]]
        %v1197 = vstv %s1196
        %v1198 = vmul.f32 %v1197, %v281
        %v1200 = vrot.slane %v1198, 5
        %v1201 = vrot.slane %v1200, 4
        %1202 = vrot.lane.b32.xlu0 %v1201, 88
        %v1203 = vpop.permute.xlu0 %1202
        %v1204 = vrot.slane %v1203, 4
        %v1205 = vsel %vm1182, %v1203, %v1204
        %v1207 = vadd.f32 %v1185, %v1205
        %s1208 = sld [smem:[#allocation6 + $0x87]]
        %v1209 = vstv %s1208
        %v1210 = vmul.f32 %v1209, %v281
        %v1212 = vrot.slane %v1210, 5
        %v1213 = vrot.slane %v1212, 4
        %1214 = vrot.lane.b32.xlu0 %v1213, 88
        %v1215 = vpop.permute.xlu0 %1214
        %v1216 = vrot.slane %v1215, 4
        %v1217 = vsel %vm1182, %v1215, %v1216
        %v1219 = vadd.f32 %v1195, %v1217
        %s1220 = sld [smem:[#allocation6 + $0x3c]]
        %v1221 = vstv %s1220
        %v1222 = vmul.f32 %v1221, %v281
        %v1224 = vrot.slane %v1222, 6
        %v1225 = vrot.slane %v1224, 4
        %1226 = vrot.lane.b32.xlu0 %v1225, 88
        %v1227 = vpop.permute.xlu0 %1226
        %v1228 = vrot.slane %v1227, 4
        %v1229 = vsel %vm1182, %v1227, %v1228
        %v1231 = vadd.f32 %v1207, %v1229
        %s1232 = sld [smem:[#allocation6 + $0xa0]]
        %v1233 = vstv %s1232
        %v1234 = vmul.f32 %v1233, %v281
        %v1236 = vrot.slane %v1234, 6
        %v1237 = vrot.slane %v1236, 4
        %1238 = vrot.lane.b32.xlu0 %v1237, 88
        %v1239 = vpop.permute.xlu0 %1238
        %v1240 = vrot.slane %v1239, 4
        %v1241 = vsel %vm1182, %v1239, %v1240
        %v1243 = vadd.f32 %v1219, %v1241
        %s1244 = sld [smem:[#allocation6 + $0x55]]
        %v1245 = vstv %s1244
        %v1246 = vmul.f32 %v1245, %v281
        %v1248 = vrot.slane %v1246, 7
        %v1249 = vrot.slane %v1248, 4
        %1250 = vrot.lane.b32.xlu0 %v1249, 88
        %v1251 = vpop.permute.xlu0 %1250
        %v1252 = vrot.slane %v1251, 4
        %v1253 = vsel %vm1182, %v1251, %v1252
        %v1255 = vadd.f32 %v1231, %v1253
        %s1256 = sld [smem:[#allocation6 + $0xb9]]
        %v1257 = vstv %s1256
        %v1258 = vmul.f32 %v1257, %v281
        %v1260 = vrot.slane %v1258, 7
        %v1261 = vrot.slane %v1260, 4
        %1262 = vrot.lane.b32.xlu0 %v1261, 88
        %v1263 = vpop.permute.xlu0 %1262
        %v1264 = vrot.slane %v1263, 4
        %v1265 = vsel %vm1182, %v1263, %v1264
        %v1267 = vadd.f32 %v1243, %v1265
        %s1268 = sld [smem:[#allocation6 + $0xb]]
        %v1269 = vstv %s1268
        %v1270 = vmul.f32 %v1269, %v281
        %1272 = vrot.lane.b32.xlu0 %v1270, 87
        %v1273 = vpop.permute.xlu0 %1272
        %v1274 = vrot.slane %v1273, 4
        %vm1275 = vcmask 711680
        %v1276 = vsel %vm1275, %v1273, %v1274
        %v1278 = vadd.f32 %v1255, %v1276
        %s1279 = sld [smem:[#allocation6 + $0x6f]]
        %v1280 = vstv %s1279
        %v1281 = vmul.f32 %v1280, %v281
        %1283 = vrot.lane.b32.xlu0 %v1281, 87
        %v1284 = vpop.permute.xlu0 %1283
        %v1285 = vrot.slane %v1284, 4
        %v1286 = vsel %vm1275, %v1284, %v1285
        %v1288 = vadd.f32 %v1267, %v1286
        %s1289 = sld [smem:[#allocation6 + $0x24]]
        %v1290 = vstv %s1289
        %v1291 = vmul.f32 %v1290, %v281
        %v1293 = vrot.slane %v1291, 5
        %v1294 = vrot.slane %v1293, 4
        %1295 = vrot.lane.b32.xlu0 %v1294, 87
        %v1296 = vpop.permute.xlu0 %1295
        %v1297 = vrot.slane %v1296, 4
        %v1298 = vsel %vm1275, %v1296, %v1297
        %v1300 = vadd.f32 %v1278, %v1298
        %s1301 = sld [smem:[#allocation6 + $0x88]]
        %v1302 = vstv %s1301
        %v1303 = vmul.f32 %v1302, %v281
        %v1305 = vrot.slane %v1303, 5
        %v1306 = vrot.slane %v1305, 4
        %1307 = vrot.lane.b32.xlu0 %v1306, 87
        %v1308 = vpop.permute.xlu0 %1307
        %v1309 = vrot.slane %v1308, 4
        %v1310 = vsel %vm1275, %v1308, %v1309
        %v1312 = vadd.f32 %v1288, %v1310
        %s1313 = sld [smem:[#allocation6 + $0x3d]]
        %v1314 = vstv %s1313
        %v1315 = vmul.f32 %v1314, %v281
        %v1317 = vrot.slane %v1315, 6
        %v1318 = vrot.slane %v1317, 4
        %1319 = vrot.lane.b32.xlu0 %v1318, 87
        %v1320 = vpop.permute.xlu0 %1319
        %v1321 = vrot.slane %v1320, 4
        %v1322 = vsel %vm1275, %v1320, %v1321
        %v1324 = vadd.f32 %v1300, %v1322
        %s1325 = sld [smem:[#allocation6 + $0xa1]]
        %v1326 = vstv %s1325
        %v1327 = vmul.f32 %v1326, %v281
        %v1329 = vrot.slane %v1327, 6
        %v1330 = vrot.slane %v1329, 4
        %1331 = vrot.lane.b32.xlu0 %v1330, 87
        %v1332 = vpop.permute.xlu0 %1331
        %v1333 = vrot.slane %v1332, 4
        %v1334 = vsel %vm1275, %v1332, %v1333
        %v1336 = vadd.f32 %v1312, %v1334
        %s1337 = sld [smem:[#allocation6 + $0x56]]
        %v1338 = vstv %s1337
        %v1339 = vmul.f32 %v1338, %v281
        %v1341 = vrot.slane %v1339, 7
        %v1342 = vrot.slane %v1341, 4
        %1343 = vrot.lane.b32.xlu0 %v1342, 87
        %v1344 = vpop.permute.xlu0 %1343
        %v1345 = vrot.slane %v1344, 4
        %v1346 = vsel %vm1275, %v1344, %v1345
        %v1348 = vadd.f32 %v1324, %v1346
        %s1349 = sld [smem:[#allocation6 + $0xba]]
        %v1350 = vstv %s1349
        %v1351 = vmul.f32 %v1350, %v281
        %v1353 = vrot.slane %v1351, 7
        %v1354 = vrot.slane %v1353, 4
        %1355 = vrot.lane.b32.xlu0 %v1354, 87
        %v1356 = vpop.permute.xlu0 %1355
        %v1357 = vrot.slane %v1356, 4
        %v1358 = vsel %vm1275, %v1356, %v1357
        %v1360 = vadd.f32 %v1336, %v1358
        %s1361 = sld [smem:[#allocation6 + $0xc]]
        %v1362 = vstv %s1361
        %v1363 = vmul.f32 %v1362, %v281
        %1365 = vrot.lane.b32.xlu0 %v1363, 86
        %v1366 = vpop.permute.xlu0 %1365
        %v1367 = vrot.slane %v1366, 4
        %vm1368 = vcmask 703488
        %v1369 = vsel %vm1368, %v1366, %v1367
        %v1371 = vadd.f32 %v1348, %v1369
        %s1372 = sld [smem:[#allocation6 + $0x70]]
        %v1373 = vstv %s1372
        %v1374 = vmul.f32 %v1373, %v281
        %1376 = vrot.lane.b32.xlu0 %v1374, 86
        %v1377 = vpop.permute.xlu0 %1376
        %v1378 = vrot.slane %v1377, 4
        %v1379 = vsel %vm1368, %v1377, %v1378
        %v1381 = vadd.f32 %v1360, %v1379
        %s1382 = sld [smem:[#allocation6 + $0x25]]
        %v1383 = vstv %s1382
        %v1384 = vmul.f32 %v1383, %v281
        %v1386 = vrot.slane %v1384, 5
        %v1387 = vrot.slane %v1386, 4
        %1388 = vrot.lane.b32.xlu0 %v1387, 86
        %v1389 = vpop.permute.xlu0 %1388
        %v1390 = vrot.slane %v1389, 4
        %v1391 = vsel %vm1368, %v1389, %v1390
        %v1393 = vadd.f32 %v1371, %v1391
        %s1394 = sld [smem:[#allocation6 + $0x89]]
        %v1395 = vstv %s1394
        %v1396 = vmul.f32 %v1395, %v281
        %v1398 = vrot.slane %v1396, 5
        %v1399 = vrot.slane %v1398, 4
        %1400 = vrot.lane.b32.xlu0 %v1399, 86
        %v1401 = vpop.permute.xlu0 %1400
        %v1402 = vrot.slane %v1401, 4
        %v1403 = vsel %vm1368, %v1401, %v1402
        %v1405 = vadd.f32 %v1381, %v1403
        %s1406 = sld [smem:[#allocation6 + $0x3e]]
        %v1407 = vstv %s1406
        %v1408 = vmul.f32 %v1407, %v281
        %v1410 = vrot.slane %v1408, 6
        %v1411 = vrot.slane %v1410, 4
        %1412 = vrot.lane.b32.xlu0 %v1411, 86
        %v1413 = vpop.permute.xlu0 %1412
        %v1414 = vrot.slane %v1413, 4
        %v1415 = vsel %vm1368, %v1413, %v1414
        %v1417 = vadd.f32 %v1393, %v1415
        %s1418 = sld [smem:[#allocation6 + $0xa2]]
        %v1419 = vstv %s1418
        %v1420 = vmul.f32 %v1419, %v281
        %v1422 = vrot.slane %v1420, 6
        %v1423 = vrot.slane %v1422, 4
        %1424 = vrot.lane.b32.xlu0 %v1423, 86
        %v1425 = vpop.permute.xlu0 %1424
        %v1426 = vrot.slane %v1425, 4
        %v1427 = vsel %vm1368, %v1425, %v1426
        %v1429 = vadd.f32 %v1405, %v1427
        %s1430 = sld [smem:[#allocation6 + $0x57]]
        %v1431 = vstv %s1430
        %v1432 = vmul.f32 %v1431, %v281
        %v1434 = vrot.slane %v1432, 7
        %v1435 = vrot.slane %v1434, 4
        %1436 = vrot.lane.b32.xlu0 %v1435, 86
        %v1437 = vpop.permute.xlu0 %1436
        %v1438 = vrot.slane %v1437, 4
        %v1439 = vsel %vm1368, %v1437, %v1438
        %v1441 = vadd.f32 %v1417, %v1439
        %s1442 = sld [smem:[#allocation6 + $0xbb]]
        %v1443 = vstv %s1442
        %v1444 = vmul.f32 %v1443, %v281
        %v1446 = vrot.slane %v1444, 7
        %v1447 = vrot.slane %v1446, 4
        %1448 = vrot.lane.b32.xlu0 %v1447, 86
        %v1449 = vpop.permute.xlu0 %1448
        %v1450 = vrot.slane %v1449, 4
        %v1451 = vsel %vm1368, %v1449, %v1450
        %v1453 = vadd.f32 %v1429, %v1451
        %s1454 = sld [smem:[#allocation6 + $0xd]]
        %v1455 = vstv %s1454
        %v1456 = vmul.f32 %v1455, %v281
        %1458 = vrot.lane.b32.xlu0 %v1456, 85
        %v1459 = vpop.permute.xlu0 %1458
        %v1460 = vrot.slane %v1459, 4
        %vm1461 = vcmask 695296
        %v1462 = vsel %vm1461, %v1459, %v1460
        %v1464 = vadd.f32 %v1441, %v1462
        %s1465 = sld [smem:[#allocation6 + $0x71]]
        %v1466 = vstv %s1465
        %v1467 = vmul.f32 %v1466, %v281
        %1469 = vrot.lane.b32.xlu0 %v1467, 85
        %v1470 = vpop.permute.xlu0 %1469
        %v1471 = vrot.slane %v1470, 4
        %v1472 = vsel %vm1461, %v1470, %v1471
        %v1474 = vadd.f32 %v1453, %v1472
        %s1475 = sld [smem:[#allocation6 + $0x26]]
        %v1476 = vstv %s1475
        %v1477 = vmul.f32 %v1476, %v281
        %v1479 = vrot.slane %v1477, 5
        %v1480 = vrot.slane %v1479, 4
        %1481 = vrot.lane.b32.xlu0 %v1480, 85
        %v1482 = vpop.permute.xlu0 %1481
        %v1483 = vrot.slane %v1482, 4
        %v1484 = vsel %vm1461, %v1482, %v1483
        %v1486 = vadd.f32 %v1464, %v1484
        %s1487 = sld [smem:[#allocation6 + $0x8a]]
        %v1488 = vstv %s1487
        %v1489 = vmul.f32 %v1488, %v281
        %v1491 = vrot.slane %v1489, 5
        %v1492 = vrot.slane %v1491, 4
        %1493 = vrot.lane.b32.xlu0 %v1492, 85
        %v1494 = vpop.permute.xlu0 %1493
        %v1495 = vrot.slane %v1494, 4
        %v1496 = vsel %vm1461, %v1494, %v1495
        %v1498 = vadd.f32 %v1474, %v1496
        %s1499 = sld [smem:[#allocation6 + $0x3f]]
        %v1500 = vstv %s1499
        %v1501 = vmul.f32 %v1500, %v281
        %v1503 = vrot.slane %v1501, 6
        %v1504 = vrot.slane %v1503, 4
        %1505 = vrot.lane.b32.xlu0 %v1504, 85
        %v1506 = vpop.permute.xlu0 %1505
        %v1507 = vrot.slane %v1506, 4
        %v1508 = vsel %vm1461, %v1506, %v1507
        %v1510 = vadd.f32 %v1486, %v1508
        %s1511 = sld [smem:[#allocation6 + $0xa3]]
        %v1512 = vstv %s1511
        %v1513 = vmul.f32 %v1512, %v281
        %v1515 = vrot.slane %v1513, 6
        %v1516 = vrot.slane %v1515, 4
        %1517 = vrot.lane.b32.xlu0 %v1516, 85
        %v1518 = vpop.permute.xlu0 %1517
        %v1519 = vrot.slane %v1518, 4
        %v1520 = vsel %vm1461, %v1518, %v1519
        %v1522 = vadd.f32 %v1498, %v1520
        %s1523 = sld [smem:[#allocation6 + $0x58]]
        %v1524 = vstv %s1523
        %v1525 = vmul.f32 %v1524, %v281
        %v1527 = vrot.slane %v1525, 7
        %v1528 = vrot.slane %v1527, 4
        %1529 = vrot.lane.b32.xlu0 %v1528, 85
        %v1530 = vpop.permute.xlu0 %1529
        %v1531 = vrot.slane %v1530, 4
        %v1532 = vsel %vm1461, %v1530, %v1531
        %v1534 = vadd.f32 %v1510, %v1532
        %s1535 = sld [smem:[#allocation6 + $0xbc]]
        %v1536 = vstv %s1535
        %v1537 = vmul.f32 %v1536, %v281
        %v1539 = vrot.slane %v1537, 7
        %v1540 = vrot.slane %v1539, 4
        %1541 = vrot.lane.b32.xlu0 %v1540, 85
        %v1542 = vpop.permute.xlu0 %1541
        %v1543 = vrot.slane %v1542, 4
        %v1544 = vsel %vm1461, %v1542, %v1543
        %v1546 = vadd.f32 %v1522, %v1544
        %s1547 = sld [smem:[#allocation6 + $0xe]]
        %v1548 = vstv %s1547
        %v1549 = vmul.f32 %v1548, %v281
        %1551 = vrot.lane.b32.xlu0 %v1549, 84
        %v1552 = vpop.permute.xlu0 %1551
        %v1553 = vrot.slane %v1552, 4
        %vm1554 = vcmask 687104
        %v1555 = vsel %vm1554, %v1552, %v1553
        %v1557 = vadd.f32 %v1534, %v1555
        %s1558 = sld [smem:[#allocation6 + $0x72]]
        %v1559 = vstv %s1558
        %v1560 = vmul.f32 %v1559, %v281
        %1562 = vrot.lane.b32.xlu0 %v1560, 84
        %v1563 = vpop.permute.xlu0 %1562
        %v1564 = vrot.slane %v1563, 4
        %v1565 = vsel %vm1554, %v1563, %v1564
        %v1567 = vadd.f32 %v1546, %v1565
        %s1568 = sld [smem:[#allocation6 + $0x27]]
        %v1569 = vstv %s1568
        %v1570 = vmul.f32 %v1569, %v281
        %v1572 = vrot.slane %v1570, 5
        %v1573 = vrot.slane %v1572, 4
        %1574 = vrot.lane.b32.xlu0 %v1573, 84
        %v1575 = vpop.permute.xlu0 %1574
        %v1576 = vrot.slane %v1575, 4
        %v1577 = vsel %vm1554, %v1575, %v1576
        %v1579 = vadd.f32 %v1557, %v1577
        %s1580 = sld [smem:[#allocation6 + $0x8b]]
        %v1581 = vstv %s1580
        %v1582 = vmul.f32 %v1581, %v281
        %v1584 = vrot.slane %v1582, 5
        %v1585 = vrot.slane %v1584, 4
        %1586 = vrot.lane.b32.xlu0 %v1585, 84
        %v1587 = vpop.permute.xlu0 %1586
        %v1588 = vrot.slane %v1587, 4
        %v1589 = vsel %vm1554, %v1587, %v1588
        %v1591 = vadd.f32 %v1567, %v1589
        %s1592 = sld [smem:[#allocation6 + $0x40]]
        %v1593 = vstv %s1592
        %v1594 = vmul.f32 %v1593, %v281
        %v1596 = vrot.slane %v1594, 6
        %v1597 = vrot.slane %v1596, 4
        %1598 = vrot.lane.b32.xlu0 %v1597, 84
        %v1599 = vpop.permute.xlu0 %1598
        %v1600 = vrot.slane %v1599, 4
        %v1601 = vsel %vm1554, %v1599, %v1600
        %v1603 = vadd.f32 %v1579, %v1601
        %s1604 = sld [smem:[#allocation6 + $0xa4]]
        %v1605 = vstv %s1604
        %v1606 = vmul.f32 %v1605, %v281
        %v1608 = vrot.slane %v1606, 6
        %v1609 = vrot.slane %v1608, 4
        %1610 = vrot.lane.b32.xlu0 %v1609, 84
        %v1611 = vpop.permute.xlu0 %1610
        %v1612 = vrot.slane %v1611, 4
        %v1613 = vsel %vm1554, %v1611, %v1612
        %v1615 = vadd.f32 %v1591, %v1613
        %s1616 = sld [smem:[#allocation6 + $0x59]]
        %v1617 = vstv %s1616
        %v1618 = vmul.f32 %v1617, %v281
        %v1620 = vrot.slane %v1618, 7
        %v1621 = vrot.slane %v1620, 4
        %1622 = vrot.lane.b32.xlu0 %v1621, 84
        %v1623 = vpop.permute.xlu0 %1622
        %v1624 = vrot.slane %v1623, 4
        %v1625 = vsel %vm1554, %v1623, %v1624
        %v1627 = vadd.f32 %v1603, %v1625
        %s1628 = sld [smem:[#allocation6 + $0xbd]]
        %v1629 = vstv %s1628
        %v1630 = vmul.f32 %v1629, %v281
        %v1632 = vrot.slane %v1630, 7
        %v1633 = vrot.slane %v1632, 4
        %1634 = vrot.lane.b32.xlu0 %v1633, 84
        %v1635 = vpop.permute.xlu0 %1634
        %v1636 = vrot.slane %v1635, 4
        %v1637 = vsel %vm1554, %v1635, %v1636
        %v1639 = vadd.f32 %v1615, %v1637
        %s1640 = sld [smem:[#allocation6 + $0xf]]
        %v1641 = vstv %s1640
        %v1642 = vmul.f32 %v1641, %v281
        %1644 = vrot.lane.b32.xlu0 %v1642, 68
        %v1645 = vpop.permute.xlu0 %1644
        %v1646 = vrot.slane %v1645, 4
        %vm1647 = vcmask 556032
        %v1648 = vsel %vm1647, %v1645, %v1646
        %v1650 = vadd.f32 %v1627, %v1648
        %s1651 = sld [smem:[#allocation6 + $0x73]]
        %v1652 = vstv %s1651
        %v1653 = vmul.f32 %v1652, %v281
        %1655 = vrot.lane.b32.xlu0 %v1653, 68
        %v1656 = vpop.permute.xlu0 %1655
        %v1657 = vrot.slane %v1656, 4
        %v1658 = vsel %vm1647, %v1656, %v1657
        %v1660 = vadd.f32 %v1639, %v1658
        %s1661 = sld [smem:[#allocation6 + $0x28]]
        %v1662 = vstv %s1661
        %v1663 = vmul.f32 %v1662, %v281
        %v1665 = vrot.slane %v1663, 5
        %v1666 = vrot.slane %v1665, 4
        %1667 = vrot.lane.b32.xlu0 %v1666, 68
        %v1668 = vpop.permute.xlu0 %1667
        %v1669 = vrot.slane %v1668, 4
        %v1670 = vsel %vm1647, %v1668, %v1669
        %v1672 = vadd.f32 %v1650, %v1670
        %s1673 = sld [smem:[#allocation6 + $0x8c]]
        %v1674 = vstv %s1673
        %v1675 = vmul.f32 %v1674, %v281
        %v1677 = vrot.slane %v1675, 5
        %v1678 = vrot.slane %v1677, 4
        %1679 = vrot.lane.b32.xlu0 %v1678, 68
        %v1680 = vpop.permute.xlu0 %1679
        %v1681 = vrot.slane %v1680, 4
        %v1682 = vsel %vm1647, %v1680, %v1681
        %v1684 = vadd.f32 %v1660, %v1682
        %s1685 = sld [smem:[#allocation6 + $0x41]]
        %v1686 = vstv %s1685
        %v1687 = vmul.f32 %v1686, %v281
        %v1689 = vrot.slane %v1687, 6
        %v1690 = vrot.slane %v1689, 4
        %1691 = vrot.lane.b32.xlu0 %v1690, 68
        %v1692 = vpop.permute.xlu0 %1691
        %v1693 = vrot.slane %v1692, 4
        %v1694 = vsel %vm1647, %v1692, %v1693
        %v1696 = vadd.f32 %v1672, %v1694
        %s1697 = sld [smem:[#allocation6 + $0xa5]]
        %v1698 = vstv %s1697
        %v1699 = vmul.f32 %v1698, %v281
        %v1701 = vrot.slane %v1699, 6
        %v1702 = vrot.slane %v1701, 4
        %1703 = vrot.lane.b32.xlu0 %v1702, 68
        %v1704 = vpop.permute.xlu0 %1703
        %v1705 = vrot.slane %v1704, 4
        %v1706 = vsel %vm1647, %v1704, %v1705
        %v1708 = vadd.f32 %v1684, %v1706
        %s1709 = sld [smem:[#allocation6 + $0x5a]]
        %v1710 = vstv %s1709
        %v1711 = vmul.f32 %v1710, %v281
        %v1713 = vrot.slane %v1711, 7
        %v1714 = vrot.slane %v1713, 4
        %1715 = vrot.lane.b32.xlu0 %v1714, 68
        %v1716 = vpop.permute.xlu0 %1715
        %v1717 = vrot.slane %v1716, 4
        %v1718 = vsel %vm1647, %v1716, %v1717
        %v1720 = vadd.f32 %v1696, %v1718
        %s1721 = sld [smem:[#allocation6 + $0xbe]]
        %v1722 = vstv %s1721
        %v1723 = vmul.f32 %v1722, %v281
        %v1725 = vrot.slane %v1723, 7
        %v1726 = vrot.slane %v1725, 4
        %1727 = vrot.lane.b32.xlu0 %v1726, 68
        %v1728 = vpop.permute.xlu0 %1727
        %v1729 = vrot.slane %v1728, 4
        %v1730 = vsel %vm1647, %v1728, %v1729
        %v1732 = vadd.f32 %v1708, %v1730
        %s1733 = sld [smem:[#allocation6 + $0x10]]
        %v1734 = vstv %s1733
        %v1735 = vmul.f32 %v1734, %v281
        %1737 = vrot.lane.b32.xlu0 %v1735, 67
        %v1738 = vpop.permute.xlu0 %1737
        %v1739 = vrot.slane %v1738, 4
        %vm1740 = vcmask 547840
        %v1741 = vsel %vm1740, %v1738, %v1739
        %v1743 = vadd.f32 %v1720, %v1741
        %s1744 = sld [smem:[#allocation6 + $0x74]]
        %v1745 = vstv %s1744
        %v1746 = vmul.f32 %v1745, %v281
        %1748 = vrot.lane.b32.xlu0 %v1746, 67
        %v1749 = vpop.permute.xlu0 %1748
        %v1750 = vrot.slane %v1749, 4
        %v1751 = vsel %vm1740, %v1749, %v1750
        %v1753 = vadd.f32 %v1732, %v1751
        %s1754 = sld [smem:[#allocation6 + $0x29]]
        %v1755 = vstv %s1754
        %v1756 = vmul.f32 %v1755, %v281
        %v1758 = vrot.slane %v1756, 5
        %v1759 = vrot.slane %v1758, 4
        %1760 = vrot.lane.b32.xlu0 %v1759, 67
        %v1761 = vpop.permute.xlu0 %1760
        %v1762 = vrot.slane %v1761, 4
        %v1763 = vsel %vm1740, %v1761, %v1762
        %v1765 = vadd.f32 %v1743, %v1763
        %s1766 = sld [smem:[#allocation6 + $0x8d]]
        %v1767 = vstv %s1766
        %v1768 = vmul.f32 %v1767, %v281
        %v1770 = vrot.slane %v1768, 5
        %v1771 = vrot.slane %v1770, 4
        %1772 = vrot.lane.b32.xlu0 %v1771, 67
        %v1773 = vpop.permute.xlu0 %1772
        %v1774 = vrot.slane %v1773, 4
        %v1775 = vsel %vm1740, %v1773, %v1774
        %v1777 = vadd.f32 %v1753, %v1775
        %s1778 = sld [smem:[#allocation6 + $0x42]]
        %v1779 = vstv %s1778
        %v1780 = vmul.f32 %v1779, %v281
        %v1782 = vrot.slane %v1780, 6
        %v1783 = vrot.slane %v1782, 4
        %1784 = vrot.lane.b32.xlu0 %v1783, 67
        %v1785 = vpop.permute.xlu0 %1784
        %v1786 = vrot.slane %v1785, 4
        %v1787 = vsel %vm1740, %v1785, %v1786
        %v1789 = vadd.f32 %v1765, %v1787
        %s1790 = sld [smem:[#allocation6 + $0xa6]]
        %v1791 = vstv %s1790
        %v1792 = vmul.f32 %v1791, %v281
        %v1794 = vrot.slane %v1792, 6
        %v1795 = vrot.slane %v1794, 4
        %1796 = vrot.lane.b32.xlu0 %v1795, 67
        %v1797 = vpop.permute.xlu0 %1796
        %v1798 = vrot.slane %v1797, 4
        %v1799 = vsel %vm1740, %v1797, %v1798
        %v1801 = vadd.f32 %v1777, %v1799
        %s1802 = sld [smem:[#allocation6 + $0x5b]]
        %v1803 = vstv %s1802
        %v1804 = vmul.f32 %v1803, %v281
        %v1806 = vrot.slane %v1804, 7
        %v1807 = vrot.slane %v1806, 4
        %1808 = vrot.lane.b32.xlu0 %v1807, 67
        %v1809 = vpop.permute.xlu0 %1808
        %v1810 = vrot.slane %v1809, 4
        %v1811 = vsel %vm1740, %v1809, %v1810
        %v1813 = vadd.f32 %v1789, %v1811
        %s1814 = sld [smem:[#allocation6 + $0xbf]]
        %v1815 = vstv %s1814
        %v1816 = vmul.f32 %v1815, %v281
        %v1818 = vrot.slane %v1816, 7
        %v1819 = vrot.slane %v1818, 4
        %1820 = vrot.lane.b32.xlu0 %v1819, 67
        %v1821 = vpop.permute.xlu0 %1820
        %v1822 = vrot.slane %v1821, 4
        %v1823 = vsel %vm1740, %v1821, %v1822
        %v1825 = vadd.f32 %v1801, %v1823
        %s1826 = sld [smem:[#allocation6 + $0x11]]
        %v1827 = vstv %s1826
        %v1828 = vmul.f32 %v1827, %v281
        %1830 = vrot.lane.b32.xlu0 %v1828, 66
        %v1831 = vpop.permute.xlu0 %1830
        %v1832 = vrot.slane %v1831, 4
        %vm1833 = vcmask 539648
        %v1834 = vsel %vm1833, %v1831, %v1832
        %v1836 = vadd.f32 %v1813, %v1834
        %s1837 = sld [smem:[#allocation6 + $0x75]]
        %v1838 = vstv %s1837
        %v1839 = vmul.f32 %v1838, %v281
        %1841 = vrot.lane.b32.xlu0 %v1839, 66
        %v1842 = vpop.permute.xlu0 %1841
        %v1843 = vrot.slane %v1842, 4
        %v1844 = vsel %vm1833, %v1842, %v1843
        %v1846 = vadd.f32 %v1825, %v1844
        %s1847 = sld [smem:[#allocation6 + $0x2a]]
        %v1848 = vstv %s1847
        %v1849 = vmul.f32 %v1848, %v281
        %v1851 = vrot.slane %v1849, 5
        %v1852 = vrot.slane %v1851, 4
        %1853 = vrot.lane.b32.xlu0 %v1852, 66
        %v1854 = vpop.permute.xlu0 %1853
        %v1855 = vrot.slane %v1854, 4
        %v1856 = vsel %vm1833, %v1854, %v1855
        %v1858 = vadd.f32 %v1836, %v1856
        %s1859 = sld [smem:[#allocation6 + $0x8e]]
        %v1860 = vstv %s1859
        %v1861 = vmul.f32 %v1860, %v281
        %v1863 = vrot.slane %v1861, 5
        %v1864 = vrot.slane %v1863, 4
        %1865 = vrot.lane.b32.xlu0 %v1864, 66
        %v1866 = vpop.permute.xlu0 %1865
        %v1867 = vrot.slane %v1866, 4
        %v1868 = vsel %vm1833, %v1866, %v1867
        %v1870 = vadd.f32 %v1846, %v1868
        %s1871 = sld [smem:[#allocation6 + $0x43]]
        %v1872 = vstv %s1871
        %v1873 = vmul.f32 %v1872, %v281
        %v1875 = vrot.slane %v1873, 6
        %v1876 = vrot.slane %v1875, 4
        %1877 = vrot.lane.b32.xlu0 %v1876, 66
        %v1878 = vpop.permute.xlu0 %1877
        %v1879 = vrot.slane %v1878, 4
        %v1880 = vsel %vm1833, %v1878, %v1879
        %v1882 = vadd.f32 %v1858, %v1880
        %s1883 = sld [smem:[#allocation6 + $0xa7]]
        %v1884 = vstv %s1883
        %v1885 = vmul.f32 %v1884, %v281
        %v1887 = vrot.slane %v1885, 6
        %v1888 = vrot.slane %v1887, 4
        %1889 = vrot.lane.b32.xlu0 %v1888, 66
        %v1890 = vpop.permute.xlu0 %1889
        %v1891 = vrot.slane %v1890, 4
        %v1892 = vsel %vm1833, %v1890, %v1891
        %v1894 = vadd.f32 %v1870, %v1892
        %s1895 = sld [smem:[#allocation6 + $0x5c]]
        %v1896 = vstv %s1895
        %v1897 = vmul.f32 %v1896, %v281
        %v1899 = vrot.slane %v1897, 7
        %v1900 = vrot.slane %v1899, 4
        %1901 = vrot.lane.b32.xlu0 %v1900, 66
        %v1902 = vpop.permute.xlu0 %1901
        %v1903 = vrot.slane %v1902, 4
        %v1904 = vsel %vm1833, %v1902, %v1903
        %v1906 = vadd.f32 %v1882, %v1904
        %s1907 = sld [smem:[#allocation6 + $0xc0]]
        %v1908 = vstv %s1907
        %v1909 = vmul.f32 %v1908, %v281
        %v1911 = vrot.slane %v1909, 7
        %v1912 = vrot.slane %v1911, 4
        %1913 = vrot.lane.b32.xlu0 %v1912, 66
        %v1914 = vpop.permute.xlu0 %1913
        %v1915 = vrot.slane %v1914, 4
        %v1916 = vsel %vm1833, %v1914, %v1915
        %v1918 = vadd.f32 %v1894, %v1916
        %s1919 = sld [smem:[#allocation6 + $0x12]]
        %v1920 = vstv %s1919
        %v1921 = vmul.f32 %v1920, %v281
        %1923 = vrot.lane.b32.xlu0 %v1921, 65
        %v1924 = vpop.permute.xlu0 %1923
        %v1925 = vrot.slane %v1924, 4
        %vm1926 = vcmask 531456
        %v1927 = vsel %vm1926, %v1924, %v1925
        %v1929 = vadd.f32 %v1906, %v1927
        %s1930 = sld [smem:[#allocation6 + $0x76]]
        %v1931 = vstv %s1930
        %v1932 = vmul.f32 %v1931, %v281
        %1934 = vrot.lane.b32.xlu0 %v1932, 65
        %v1935 = vpop.permute.xlu0 %1934
        %v1936 = vrot.slane %v1935, 4
        %v1937 = vsel %vm1926, %v1935, %v1936
        %v1939 = vadd.f32 %v1918, %v1937
        %s1940 = sld [smem:[#allocation6 + $0x2b]]
        %v1941 = vstv %s1940
        %v1942 = vmul.f32 %v1941, %v281
        %v1944 = vrot.slane %v1942, 5
        %v1945 = vrot.slane %v1944, 4
        %1946 = vrot.lane.b32.xlu0 %v1945, 65
        %v1947 = vpop.permute.xlu0 %1946
        %v1948 = vrot.slane %v1947, 4
        %v1949 = vsel %vm1926, %v1947, %v1948
        %v1951 = vadd.f32 %v1929, %v1949
        %s1952 = sld [smem:[#allocation6 + $0x8f]]
        %v1953 = vstv %s1952
        %v1954 = vmul.f32 %v1953, %v281
        %v1956 = vrot.slane %v1954, 5
        %v1957 = vrot.slane %v1956, 4
        %1958 = vrot.lane.b32.xlu0 %v1957, 65
        %v1959 = vpop.permute.xlu0 %1958
        %v1960 = vrot.slane %v1959, 4
        %v1961 = vsel %vm1926, %v1959, %v1960
        %v1963 = vadd.f32 %v1939, %v1961
        %s1964 = sld [smem:[#allocation6 + $0x44]]
        %v1965 = vstv %s1964
        %v1966 = vmul.f32 %v1965, %v281
        %v1968 = vrot.slane %v1966, 6
        %v1969 = vrot.slane %v1968, 4
        %1970 = vrot.lane.b32.xlu0 %v1969, 65
        %v1971 = vpop.permute.xlu0 %1970
        %v1972 = vrot.slane %v1971, 4
        %v1973 = vsel %vm1926, %v1971, %v1972
        %v1975 = vadd.f32 %v1951, %v1973
        %s1976 = sld [smem:[#allocation6 + $0xa8]]
        %v1977 = vstv %s1976
        %v1978 = vmul.f32 %v1977, %v281
        %v1980 = vrot.slane %v1978, 6
        %v1981 = vrot.slane %v1980, 4
        %1982 = vrot.lane.b32.xlu0 %v1981, 65
        %v1983 = vpop.permute.xlu0 %1982
        %v1984 = vrot.slane %v1983, 4
        %v1985 = vsel %vm1926, %v1983, %v1984
        %v1987 = vadd.f32 %v1963, %v1985
        %s1988 = sld [smem:[#allocation6 + $0x5d]]
        %v1989 = vstv %s1988
        %v1990 = vmul.f32 %v1989, %v281
        %v1992 = vrot.slane %v1990, 7
        %v1993 = vrot.slane %v1992, 4
        %1994 = vrot.lane.b32.xlu0 %v1993, 65
        %v1995 = vpop.permute.xlu0 %1994
        %v1996 = vrot.slane %v1995, 4
        %v1997 = vsel %vm1926, %v1995, %v1996
        %v1999 = vadd.f32 %v1975, %v1997
        %s2000 = sld [smem:[#allocation6 + $0xc1]]
        %v2001 = vstv %s2000
        %v2002 = vmul.f32 %v2001, %v281
        %v2004 = vrot.slane %v2002, 7
        %v2005 = vrot.slane %v2004, 4
        %2006 = vrot.lane.b32.xlu0 %v2005, 65
        %v2007 = vpop.permute.xlu0 %2006
        %v2008 = vrot.slane %v2007, 4
        %v2009 = vsel %vm1926, %v2007, %v2008
        %v2011 = vadd.f32 %v1987, %v2009
        %s2012 = sld [smem:[#allocation6 + $0x13]]
        %v2013 = vstv %s2012
        %v2014 = vmul.f32 %v2013, %v281
        %2016 = vrot.lane.b32.xlu0 %v2014, 64
        %v2017 = vpop.permute.xlu0 %2016
        %v2018 = vrot.slane %v2017, 4
        %vm2019 = vcmask 523264
        %v2020 = vsel %vm2019, %v2017, %v2018
        %v2022 = vadd.f32 %v1999, %v2020
        %s2023 = sld [smem:[#allocation6 + $0x77]]
        %v2024 = vstv %s2023
        %v2025 = vmul.f32 %v2024, %v281
        %2027 = vrot.lane.b32.xlu0 %v2025, 64
        %v2028 = vpop.permute.xlu0 %2027
        %v2029 = vrot.slane %v2028, 4
        %v2030 = vsel %vm2019, %v2028, %v2029
        %v2032 = vadd.f32 %v2011, %v2030
        %s2033 = sld [smem:[#allocation6 + $0x2c]]
        %v2034 = vstv %s2033
        %v2035 = vmul.f32 %v2034, %v281
        %v2037 = vrot.slane %v2035, 5
        %v2038 = vrot.slane %v2037, 4
        %2039 = vrot.lane.b32.xlu0 %v2038, 64
        %v2040 = vpop.permute.xlu0 %2039
        %v2041 = vrot.slane %v2040, 4
        %v2042 = vsel %vm2019, %v2040, %v2041
        %v2044 = vadd.f32 %v2022, %v2042
        %s2045 = sld [smem:[#allocation6 + $0x90]]
        %v2046 = vstv %s2045
        %v2047 = vmul.f32 %v2046, %v281
        %v2049 = vrot.slane %v2047, 5
        %v2050 = vrot.slane %v2049, 4
        %2051 = vrot.lane.b32.xlu0 %v2050, 64
        %v2052 = vpop.permute.xlu0 %2051
        %v2053 = vrot.slane %v2052, 4
        %v2054 = vsel %vm2019, %v2052, %v2053
        %v2056 = vadd.f32 %v2032, %v2054
        %s2057 = sld [smem:[#allocation6 + $0x45]]
        %v2058 = vstv %s2057
        %v2059 = vmul.f32 %v2058, %v281
        %v2061 = vrot.slane %v2059, 6
        %v2062 = vrot.slane %v2061, 4
        %2063 = vrot.lane.b32.xlu0 %v2062, 64
        %v2064 = vpop.permute.xlu0 %2063
        %v2065 = vrot.slane %v2064, 4
        %v2066 = vsel %vm2019, %v2064, %v2065
        %v2068 = vadd.f32 %v2044, %v2066
        %s2069 = sld [smem:[#allocation6 + $0xa9]]
        %v2070 = vstv %s2069
        %v2071 = vmul.f32 %v2070, %v281
        %v2073 = vrot.slane %v2071, 6
        %v2074 = vrot.slane %v2073, 4
        %2075 = vrot.lane.b32.xlu0 %v2074, 64
        %v2076 = vpop.permute.xlu0 %2075
        %v2077 = vrot.slane %v2076, 4
        %v2078 = vsel %vm2019, %v2076, %v2077
        %v2080 = vadd.f32 %v2056, %v2078
        %s2081 = sld [smem:[#allocation6 + $0x5e]]
        %v2082 = vstv %s2081
        %v2083 = vmul.f32 %v2082, %v281
        %v2085 = vrot.slane %v2083, 7
        %v2086 = vrot.slane %v2085, 4
        %2087 = vrot.lane.b32.xlu0 %v2086, 64
        %v2088 = vpop.permute.xlu0 %2087
        %v2089 = vrot.slane %v2088, 4
        %v2090 = vsel %vm2019, %v2088, %v2089
        %v2092 = vadd.f32 %v2068, %v2090
        %s2093 = sld [smem:[#allocation6 + $0xc2]]
        %v2094 = vstv %s2093
        %v2095 = vmul.f32 %v2094, %v281
        %v2097 = vrot.slane %v2095, 7
        %v2098 = vrot.slane %v2097, 4
        %2099 = vrot.lane.b32.xlu0 %v2098, 64
        %v2100 = vpop.permute.xlu0 %2099
        %v2101 = vrot.slane %v2100, 4
        %v2102 = vsel %vm2019, %v2100, %v2101
        %v2104 = vadd.f32 %v2080, %v2102
        %s2105 = sld [smem:[#allocation6 + $0x14]]
        %v2106 = vstv %s2105
        %v2107 = vmul.f32 %v2106, %v281
        %2109 = vrot.lane.b32.xlu0 %v2107, 48
        %v2110 = vpop.permute.xlu0 %2109
        %v2111 = vrot.slane %v2110, 4
        %vm2112 = vcmask 392192
        %v2113 = vsel %vm2112, %v2110, %v2111
        %v2115 = vadd.f32 %v2092, %v2113
        %s2116 = sld [smem:[#allocation6 + $0x78]]
        %v2117 = vstv %s2116
        %v2118 = vmul.f32 %v2117, %v281
        %2120 = vrot.lane.b32.xlu0 %v2118, 48
        %v2121 = vpop.permute.xlu0 %2120
        %v2122 = vrot.slane %v2121, 4
        %v2123 = vsel %vm2112, %v2121, %v2122
        %v2125 = vadd.f32 %v2104, %v2123
        %s2126 = sld [smem:[#allocation6 + $0x2d]]
        %v2127 = vstv %s2126
        %v2128 = vmul.f32 %v2127, %v281
        %v2130 = vrot.slane %v2128, 5
        %v2131 = vrot.slane %v2130, 4
        %2132 = vrot.lane.b32.xlu0 %v2131, 48
        %v2133 = vpop.permute.xlu0 %2132
        %v2134 = vrot.slane %v2133, 4
        %v2135 = vsel %vm2112, %v2133, %v2134
        %v2137 = vadd.f32 %v2115, %v2135
        %s2138 = sld [smem:[#allocation6 + $0x91]]
        %v2139 = vstv %s2138
        %v2140 = vmul.f32 %v2139, %v281
        %v2142 = vrot.slane %v2140, 5
        %v2143 = vrot.slane %v2142, 4
        %2144 = vrot.lane.b32.xlu0 %v2143, 48
        %v2145 = vpop.permute.xlu0 %2144
        %v2146 = vrot.slane %v2145, 4
        %v2147 = vsel %vm2112, %v2145, %v2146
        %v2149 = vadd.f32 %v2125, %v2147
        %s2150 = sld [smem:[#allocation6 + $0x46]]
        %v2151 = vstv %s2150
        %v2152 = vmul.f32 %v2151, %v281
        %v2154 = vrot.slane %v2152, 6
        %v2155 = vrot.slane %v2154, 4
        %2156 = vrot.lane.b32.xlu0 %v2155, 48
        %v2157 = vpop.permute.xlu0 %2156
        %v2158 = vrot.slane %v2157, 4
        %v2159 = vsel %vm2112, %v2157, %v2158
        %v2161 = vadd.f32 %v2137, %v2159
        %s2162 = sld [smem:[#allocation6 + $0xaa]]
        %v2163 = vstv %s2162
        %v2164 = vmul.f32 %v2163, %v281
        %v2166 = vrot.slane %v2164, 6
        %v2167 = vrot.slane %v2166, 4
        %2168 = vrot.lane.b32.xlu0 %v2167, 48
        %v2169 = vpop.permute.xlu0 %2168
        %v2170 = vrot.slane %v2169, 4
        %v2171 = vsel %vm2112, %v2169, %v2170
        %v2173 = vadd.f32 %v2149, %v2171
        %s2174 = sld [smem:[#allocation6 + $0x5f]]
        %v2175 = vstv %s2174
        %v2176 = vmul.f32 %v2175, %v281
        %v2178 = vrot.slane %v2176, 7
        %v2179 = vrot.slane %v2178, 4
        %2180 = vrot.lane.b32.xlu0 %v2179, 48
        %v2181 = vpop.permute.xlu0 %2180
        %v2182 = vrot.slane %v2181, 4
        %v2183 = vsel %vm2112, %v2181, %v2182
        %v2185 = vadd.f32 %v2161, %v2183
        %s2186 = sld [smem:[#allocation6 + $0xc3]]
        %v2187 = vstv %s2186
        %v2188 = vmul.f32 %v2187, %v281
        %v2190 = vrot.slane %v2188, 7
        %v2191 = vrot.slane %v2190, 4
        %2192 = vrot.lane.b32.xlu0 %v2191, 48
        %v2193 = vpop.permute.xlu0 %2192
        %v2194 = vrot.slane %v2193, 4
        %v2195 = vsel %vm2112, %v2193, %v2194
        %v2197 = vadd.f32 %v2173, %v2195
        %s2198 = sld [smem:[#allocation6 + $0x15]]
        %v2199 = vstv %s2198
        %v2200 = vmul.f32 %v2199, %v281
        %2202 = vrot.lane.b32.xlu0 %v2200, 47
        %v2203 = vpop.permute.xlu0 %2202
        %v2204 = vrot.slane %v2203, 4
        %vm2205 = vcmask 384000
        %v2206 = vsel %vm2205, %v2203, %v2204
        %v2208 = vadd.f32 %v2185, %v2206
        %s2209 = sld [smem:[#allocation6 + $0x79]]
        %v2210 = vstv %s2209
        %v2211 = vmul.f32 %v2210, %v281
        %2213 = vrot.lane.b32.xlu0 %v2211, 47
        %v2214 = vpop.permute.xlu0 %2213
        %v2215 = vrot.slane %v2214, 4
        %v2216 = vsel %vm2205, %v2214, %v2215
        %v2218 = vadd.f32 %v2197, %v2216
        %s2219 = sld [smem:[#allocation6 + $0x2e]]
        %v2220 = vstv %s2219
        %v2221 = vmul.f32 %v2220, %v281
        %v2223 = vrot.slane %v2221, 5
        %v2224 = vrot.slane %v2223, 4
        %2225 = vrot.lane.b32.xlu0 %v2224, 47
        %v2226 = vpop.permute.xlu0 %2225
        %v2227 = vrot.slane %v2226, 4
        %v2228 = vsel %vm2205, %v2226, %v2227
        %v2230 = vadd.f32 %v2208, %v2228
        %s2231 = sld [smem:[#allocation6 + $0x92]]
        %v2232 = vstv %s2231
        %v2233 = vmul.f32 %v2232, %v281
        %v2235 = vrot.slane %v2233, 5
        %v2236 = vrot.slane %v2235, 4
        %2237 = vrot.lane.b32.xlu0 %v2236, 47
        %v2238 = vpop.permute.xlu0 %2237
        %v2239 = vrot.slane %v2238, 4
        %v2240 = vsel %vm2205, %v2238, %v2239
        %v2242 = vadd.f32 %v2218, %v2240
        %s2243 = sld [smem:[#allocation6 + $0x47]]
        %v2244 = vstv %s2243
        %v2245 = vmul.f32 %v2244, %v281
        %v2247 = vrot.slane %v2245, 6
        %v2248 = vrot.slane %v2247, 4
        %2249 = vrot.lane.b32.xlu0 %v2248, 47
        %v2250 = vpop.permute.xlu0 %2249
        %v2251 = vrot.slane %v2250, 4
        %v2252 = vsel %vm2205, %v2250, %v2251
        %v2254 = vadd.f32 %v2230, %v2252
        %s2255 = sld [smem:[#allocation6 + $0xab]]
        %v2256 = vstv %s2255
        %v2257 = vmul.f32 %v2256, %v281
        %v2259 = vrot.slane %v2257, 6
        %v2260 = vrot.slane %v2259, 4
        %2261 = vrot.lane.b32.xlu0 %v2260, 47
        %v2262 = vpop.permute.xlu0 %2261
        %v2263 = vrot.slane %v2262, 4
        %v2264 = vsel %vm2205, %v2262, %v2263
        %v2266 = vadd.f32 %v2242, %v2264
        %s2267 = sld [smem:[#allocation6 + $0x60]]
        %v2268 = vstv %s2267
        %v2269 = vmul.f32 %v2268, %v281
        %v2271 = vrot.slane %v2269, 7
        %v2272 = vrot.slane %v2271, 4
        %2273 = vrot.lane.b32.xlu0 %v2272, 47
        %v2274 = vpop.permute.xlu0 %2273
        %v2275 = vrot.slane %v2274, 4
        %v2276 = vsel %vm2205, %v2274, %v2275
        %v2278 = vadd.f32 %v2254, %v2276
        %s2279 = sld [smem:[#allocation6 + $0xc4]]
        %v2280 = vstv %s2279
        %v2281 = vmul.f32 %v2280, %v281
        %v2283 = vrot.slane %v2281, 7
        %v2284 = vrot.slane %v2283, 4
        %2285 = vrot.lane.b32.xlu0 %v2284, 47
        %v2286 = vpop.permute.xlu0 %2285
        %v2287 = vrot.slane %v2286, 4
        %v2288 = vsel %vm2205, %v2286, %v2287
        %v2290 = vadd.f32 %v2266, %v2288
        %s2291 = sld [smem:[#allocation6 + $0x16]]
        %v2292 = vstv %s2291
        %v2293 = vmul.f32 %v2292, %v281
        %2295 = vrot.lane.b32.xlu0 %v2293, 46
        %v2296 = vpop.permute.xlu0 %2295
        %v2297 = vrot.slane %v2296, 4
        %vm2298 = vcmask 375808
        %v2299 = vsel %vm2298, %v2296, %v2297
        %v2301 = vadd.f32 %v2278, %v2299
        %s2302 = sld [smem:[#allocation6 + $0x7a]]
        %v2303 = vstv %s2302
        %v2304 = vmul.f32 %v2303, %v281
        %2306 = vrot.lane.b32.xlu0 %v2304, 46
        %v2307 = vpop.permute.xlu0 %2306
        %v2308 = vrot.slane %v2307, 4
        %v2309 = vsel %vm2298, %v2307, %v2308
        %v2311 = vadd.f32 %v2290, %v2309
        %s2312 = sld [smem:[#allocation6 + $0x2f]]
        %v2313 = vstv %s2312
        %v2314 = vmul.f32 %v2313, %v281
        %v2316 = vrot.slane %v2314, 5
        %v2317 = vrot.slane %v2316, 4
        %2318 = vrot.lane.b32.xlu0 %v2317, 46
        %v2319 = vpop.permute.xlu0 %2318
        %v2320 = vrot.slane %v2319, 4
        %v2321 = vsel %vm2298, %v2319, %v2320
        %v2323 = vadd.f32 %v2301, %v2321
        %s2324 = sld [smem:[#allocation6 + $0x93]]
        %v2325 = vstv %s2324
        %v2326 = vmul.f32 %v2325, %v281
        %v2328 = vrot.slane %v2326, 5
        %v2329 = vrot.slane %v2328, 4
        %2330 = vrot.lane.b32.xlu0 %v2329, 46
        %v2331 = vpop.permute.xlu0 %2330
        %v2332 = vrot.slane %v2331, 4
        %v2333 = vsel %vm2298, %v2331, %v2332
        %v2335 = vadd.f32 %v2311, %v2333
        %s2336 = sld [smem:[#allocation6 + $0x48]]
        %v2337 = vstv %s2336
        %v2338 = vmul.f32 %v2337, %v281
        %v2340 = vrot.slane %v2338, 6
        %v2341 = vrot.slane %v2340, 4
        %2342 = vrot.lane.b32.xlu0 %v2341, 46
        %v2343 = vpop.permute.xlu0 %2342
        %v2344 = vrot.slane %v2343, 4
        %v2345 = vsel %vm2298, %v2343, %v2344
        %v2347 = vadd.f32 %v2323, %v2345
        %s2348 = sld [smem:[#allocation6 + $0xac]]
        %v2349 = vstv %s2348
        %v2350 = vmul.f32 %v2349, %v281
        %v2352 = vrot.slane %v2350, 6
        %v2353 = vrot.slane %v2352, 4
        %2354 = vrot.lane.b32.xlu0 %v2353, 46
        %v2355 = vpop.permute.xlu0 %2354
        %v2356 = vrot.slane %v2355, 4
        %v2357 = vsel %vm2298, %v2355, %v2356
        %v2359 = vadd.f32 %v2335, %v2357
        %s2360 = sld [smem:[#allocation6 + $0x61]]
        %v2361 = vstv %s2360
        %v2362 = vmul.f32 %v2361, %v281
        %v2364 = vrot.slane %v2362, 7
        %v2365 = vrot.slane %v2364, 4
        %2366 = vrot.lane.b32.xlu0 %v2365, 46
        %v2367 = vpop.permute.xlu0 %2366
        %v2368 = vrot.slane %v2367, 4
        %v2369 = vsel %vm2298, %v2367, %v2368
        %v2371 = vadd.f32 %v2347, %v2369
        %s2372 = sld [smem:[#allocation6 + $0xc5]]
        %v2373 = vstv %s2372
        %v2374 = vmul.f32 %v2373, %v281
        %v2376 = vrot.slane %v2374, 7
        %v2377 = vrot.slane %v2376, 4
        %2378 = vrot.lane.b32.xlu0 %v2377, 46
        %v2379 = vpop.permute.xlu0 %2378
        %v2380 = vrot.slane %v2379, 4
        %v2381 = vsel %vm2298, %v2379, %v2380
        %v2383 = vadd.f32 %v2359, %v2381
        %s2384 = sld [smem:[#allocation6 + $0x17]]
        %v2385 = vstv %s2384
        %v2386 = vmul.f32 %v2385, %v281
        %2388 = vrot.lane.b32.xlu0 %v2386, 45
        %v2389 = vpop.permute.xlu0 %2388
        %v2390 = vrot.slane %v2389, 4
        %vm2391 = vcmask 367616
        %v2392 = vsel %vm2391, %v2389, %v2390
        %v2394 = vadd.f32 %v2371, %v2392
        %s2395 = sld [smem:[#allocation6 + $0x7b]]
        %v2396 = vstv %s2395
        %v2397 = vmul.f32 %v2396, %v281
        %2399 = vrot.lane.b32.xlu0 %v2397, 45
        %v2400 = vpop.permute.xlu0 %2399
        %v2401 = vrot.slane %v2400, 4
        %v2402 = vsel %vm2391, %v2400, %v2401
        %v2404 = vadd.f32 %v2383, %v2402
        %s2405 = sld [smem:[#allocation6 + $0x30]]
        %v2406 = vstv %s2405
        %v2407 = vmul.f32 %v2406, %v281
        %v2409 = vrot.slane %v2407, 5
        %v2410 = vrot.slane %v2409, 4
        %2411 = vrot.lane.b32.xlu0 %v2410, 45
        %v2412 = vpop.permute.xlu0 %2411
        %v2413 = vrot.slane %v2412, 4
        %v2414 = vsel %vm2391, %v2412, %v2413
        %v2416 = vadd.f32 %v2394, %v2414
        %s2417 = sld [smem:[#allocation6 + $0x94]]
        %v2418 = vstv %s2417
        %v2419 = vmul.f32 %v2418, %v281
        %v2421 = vrot.slane %v2419, 5
        %v2422 = vrot.slane %v2421, 4
        %2423 = vrot.lane.b32.xlu0 %v2422, 45
        %v2424 = vpop.permute.xlu0 %2423
        %v2425 = vrot.slane %v2424, 4
        %v2426 = vsel %vm2391, %v2424, %v2425
        %v2428 = vadd.f32 %v2404, %v2426
        %s2429 = sld [smem:[#allocation6 + $0x49]]
        %v2430 = vstv %s2429
        %v2431 = vmul.f32 %v2430, %v281
        %v2433 = vrot.slane %v2431, 6
        %v2434 = vrot.slane %v2433, 4
        %2435 = vrot.lane.b32.xlu0 %v2434, 45
        %v2436 = vpop.permute.xlu0 %2435
        %v2437 = vrot.slane %v2436, 4
        %v2438 = vsel %vm2391, %v2436, %v2437
        %v2440 = vadd.f32 %v2416, %v2438
        %s2441 = sld [smem:[#allocation6 + $0xad]]
        %v2442 = vstv %s2441
        %v2443 = vmul.f32 %v2442, %v281
        %v2445 = vrot.slane %v2443, 6
        %v2446 = vrot.slane %v2445, 4
        %2447 = vrot.lane.b32.xlu0 %v2446, 45
        %v2448 = vpop.permute.xlu0 %2447
        %v2449 = vrot.slane %v2448, 4
        %v2450 = vsel %vm2391, %v2448, %v2449
        %v2452 = vadd.f32 %v2428, %v2450
        %s2453 = sld [smem:[#allocation6 + $0x62]]
        %v2454 = vstv %s2453
        %v2455 = vmul.f32 %v2454, %v281
        %v2457 = vrot.slane %v2455, 7
        %v2458 = vrot.slane %v2457, 4
        %2459 = vrot.lane.b32.xlu0 %v2458, 45
        %v2460 = vpop.permute.xlu0 %2459
        %v2461 = vrot.slane %v2460, 4
        %v2462 = vsel %vm2391, %v2460, %v2461
        %v2464 = vadd.f32 %v2440, %v2462
        %s2465 = sld [smem:[#allocation6 + $0xc6]]
        %v2466 = vstv %s2465
        %v2467 = vmul.f32 %v2466, %v281
        %v2469 = vrot.slane %v2467, 7
        %v2470 = vrot.slane %v2469, 4
        %2471 = vrot.lane.b32.xlu0 %v2470, 45
        %v2472 = vpop.permute.xlu0 %2471
        %v2473 = vrot.slane %v2472, 4
        %v2474 = vsel %vm2391, %v2472, %v2473
        %v2476 = vadd.f32 %v2452, %v2474
        %s2477 = sld [smem:[#allocation6 + $0x18]]
        %v2478 = vstv %s2477
        %v2479 = vmul.f32 %v2478, %v281
        %2481 = vrot.lane.b32.xlu0 %v2479, 44
        %v2482 = vpop.permute.xlu0 %2481
        %v2483 = vrot.slane %v2482, 4
        %vm2484 = vcmask 359424
        %v2485 = vsel %vm2484, %v2482, %v2483
        %v2487 = vadd.f32 %v2464, %v2485
        %s2488 = sld [smem:[#allocation6 + $0x7c]]
        %v2489 = vstv %s2488
        %v2490 = vmul.f32 %v2489, %v281
        %2492 = vrot.lane.b32.xlu0 %v2490, 44
        %v2493 = vpop.permute.xlu0 %2492
        %v2494 = vrot.slane %v2493, 4
        %v2495 = vsel %vm2484, %v2493, %v2494
        %v2497 = vadd.f32 %v2476, %v2495
        %s2498 = sld [smem:[#allocation6 + $0x31]]
        %v2499 = vstv %s2498
        %v2500 = vmul.f32 %v2499, %v281
        %v2502 = vrot.slane %v2500, 5
        %v2503 = vrot.slane %v2502, 4
        %2504 = vrot.lane.b32.xlu0 %v2503, 44
        %v2505 = vpop.permute.xlu0 %2504
        %v2506 = vrot.slane %v2505, 4
        %v2507 = vsel %vm2484, %v2505, %v2506
        %v2509 = vadd.f32 %v2487, %v2507
        %s2510 = sld [smem:[#allocation6 + $0x95]]
        %v2511 = vstv %s2510
        %v2512 = vmul.f32 %v2511, %v281
        %v2514 = vrot.slane %v2512, 5
        %v2515 = vrot.slane %v2514, 4
        %2516 = vrot.lane.b32.xlu0 %v2515, 44
        %v2517 = vpop.permute.xlu0 %2516
        %v2518 = vrot.slane %v2517, 4
        %v2519 = vsel %vm2484, %v2517, %v2518
        %v2521 = vadd.f32 %v2497, %v2519
        %s2522 = sld [smem:[#allocation6 + $0x4a]]
        %v2523 = vstv %s2522
        %v2524 = vmul.f32 %v2523, %v281
        %v2526 = vrot.slane %v2524, 6
        %v2527 = vrot.slane %v2526, 4
        %2528 = vrot.lane.b32.xlu0 %v2527, 44
        %v2529 = vpop.permute.xlu0 %2528
        %v2530 = vrot.slane %v2529, 4
        %v2531 = vsel %vm2484, %v2529, %v2530
        %v2533 = vadd.f32 %v2509, %v2531
        %s2534 = sld [smem:[#allocation6 + $0xae]]
        %v2535 = vstv %s2534
        %v2536 = vmul.f32 %v2535, %v281
        %v2538 = vrot.slane %v2536, 6
        %v2539 = vrot.slane %v2538, 4
        %2540 = vrot.lane.b32.xlu0 %v2539, 44
        %v2541 = vpop.permute.xlu0 %2540
        %v2542 = vrot.slane %v2541, 4
        %v2543 = vsel %vm2484, %v2541, %v2542
        %v2545 = vadd.f32 %v2521, %v2543
        %s2546 = sld [smem:[#allocation6 + $0x63]]
        %v2547 = vstv %s2546
        %v2548 = vmul.f32 %v2547, %v281
        %v2550 = vrot.slane %v2548, 7
        %v2551 = vrot.slane %v2550, 4
        %2552 = vrot.lane.b32.xlu0 %v2551, 44
        %v2553 = vpop.permute.xlu0 %2552
        %v2554 = vrot.slane %v2553, 4
        %v2555 = vsel %vm2484, %v2553, %v2554
        %v2557 = vadd.f32 %v2533, %v2555
        %s2558 = sld [smem:[#allocation6 + $0xc7]]
        %v2559 = vstv %s2558
        %v2560 = vmul.f32 %v2559, %v281
        %v2562 = vrot.slane %v2560, 7
        %v2563 = vrot.slane %v2562, 4
        %2564 = vrot.lane.b32.xlu0 %v2563, 44
        %v2565 = vpop.permute.xlu0 %2564
        %v2566 = vrot.slane %v2565, 4
        %v2567 = vsel %vm2484, %v2565, %v2566
        %v2569 = vadd.f32 %v2545, %v2567
        %s2570 = sld [smem:[#allocation7]]
        %v2571 = vstv %s2570
        %v2572 = vadd.f32 %v2557, %v2571
        %vm2573 = vcmp.gt.f32.partialorder %v2572, 0.0
        %v2574 = vmul.f32 %v2572, 1.442695
        %v2575 = vpow.pop %v2574
        %v2576 = vsub.f32 %v2575, 1.0
        %v2577 = vsel %vm2573, %v2572, %v2576
        %v2579 = vrot.slane %v2577, 3
        %vm2580 = vcmask 1040384
        %v2581 = vsel %vm2580, %v2577, %v2579
        %v2583 = vlaneseq
        %vm2584 = vcmp.ge.s32.totalorder %v2583, 0
        %vm2585 = vcmp.lt.s32.totalorder %v2583, 160
        %vm2586 = vmand %vm2584, %vm2585
        %2587 = vst.msk [vmem:[%s270] ss:$2 sm:$0x3] %vm2586, %v2581
        %s2588 = sld [smem:[#allocation7 + $0x1]]
        %v2589 = vstv %s2588
        %v2590 = vadd.f32 %v2569, %v2589
        %vm2591 = vcmp.gt.f32.partialorder %v2590, 0.0
        %v2592 = vmul.f32 %v2590, 1.442695
        %v2593 = vpow.pop %v2592
        %v2594 = vsub.f32 %v2593, 1.0
        %v2595 = vsel %vm2591, %v2590, %v2594
        %v2597 = vrot.slane %v2595, 3
        %v2598 = vsel %vm2580, %v2595, %v2597
        %s2600 = scalar_lea.vmem %s270, 1 [#allocation9]
        %2601 = vst.msk [vmem:[%s2600] ss:$2 sm:$0x3] %vm2586, %v2598
        %v2602 = vld [vmem:[%s270] sm:$0xf]
        %v2603 = vld [vmem:[%s3] sm:$0x3]
        %v2605 = vperm.slane %v2603, 0
        %v2606 = vperm.slane %v2603, 1
        %v2607 = vrot.slane %v2606, 6
        %vm2608 = vcmask 1041408
        %v2609 = vsel %vm2608, %v2605, %v2607
        %v2611 = vmul.f32 %v2602, %v2609
        %2613 = vst [vmem:[#allocation1] ss:$4 sm:$0xff] %v2611
        %v2614 = vld.sshfl [vmem:[#allocation1] sm:$0xff pattern:$0x73625140]
        %v2615 = vld.sshfl [vmem:[#allocation1 + $0x8] sm:$0xff pattern:$0x73625140]
        %v2618 = vsel %vm2608, %v2614, 0.0
        %vm2619 = vcmask 254976
        %v2620 = vsel %vm2619, %v2615, 0.0
        %v2621 = vadd.f32 %v2618, %v2620
        %2622 = vadd.xlane.f32.xlu0 %v2621
        %v2623 = vpop.xlane.xlu0 %2622
        %vm2624 = vcmask 1024
        %2625 = vst.msk [vmem:[%s280] sm:$0x3] %vm2624, %v2623
        %v2626 = vmul.f32 %v2611, %v2611
        %2628 = vst [vmem:[#allocation1] ss:$4 sm:$0xff] %v2626
        %v2629 = vld.sshfl [vmem:[#allocation1] sm:$0xff pattern:$0x73625140]
        %v2630 = vld.sshfl [vmem:[#allocation1 + $0x8] sm:$0xff pattern:$0x73625140]
        %v2633 = vsel %vm2608, %v2629, 0.0
        %v2634 = vsel %vm2619, %v2630, 0.0
        %v2635 = vadd.f32 %v2633, %v2634
        %2636 = vadd.xlane.f32.xlu0 %v2635
        %v2637 = vpop.xlane.xlu0 %2636
        %vm2638 = vcmask 9224
        %2639 = vst.msk [vmem:[%s280] sm:$0x3] %vm2638, %v2637
        %s2640 = sand.u32 %s122, 1
        %s2641 = scalar_lea.sflag [#allocation4], %s2640
        %s2642 = sand.u32 %s122, 1
        %s2643 = smul.addr %s2642, 4
        %s2644 = scalar_lea.vmem [#allocation9], %s2643
        %p2645 = scmp.lt.s32.totalorder %s25, 3
        %s2646 = scalar_select %p2645, %s25, 3
        %s2647 = smul.addr %s2646, 2
        %s2648 = scalar_lea.vmem %s5, %s2647
        // Predicated region
        $region49: #{tpu_custom_call.1} parent=35 // pred_check
          %p2649 = pneg %p132
        $region50: #{tpu_custom_call.1} parent=35 // pred_check_branch
          %2651 = sbr.rel (%p2649) target = $region52
        $region51: #{tpu_custom_call.1} parent=35 // pred_region
          %2653 = vsyncadd %s2641, 0
          %s2654 = smul.addr %s25, 2
          %s2655 = smul.addr %s2654, 2
          %s2656 = scalar_lea.hbm %s4, %s2655
          %s2658 = sshll.u32 %s2644, 4
          %s2659 = int_to_ptr.vmem [resolvable:$true] %s2658
          %s2660 = sshll.u32 %s2656, 4
          %s2661 = int_to_ptr.hbm [resolvable:$true] %s2660
          %2663 = dma.vmem_to_hbm [thread:$0]  %s2659, 64, %s2661, %s2641
        $region52: #{tpu_custom_call.1} parent=35 // pred_fallthru
          _
        // Predicated region
        $region53: #{tpu_custom_call.1} parent=35 // pred_check
          %p2664 = pneg %p158
        $region54: #{tpu_custom_call.1} parent=35 // pred_check_branch
          %2666 = sbr.rel (%p2664) target = $region56
        $region55: #{tpu_custom_call.1} parent=35 // pred_region
          _
        $region56: #{tpu_custom_call.1} parent=35 // pred_fallthru
          _
      $region36: #{tpu_custom_call.1} parent=5 // pred_fallthru
        _
      %p2667 = scmp.le.s32.totalorder 2, %s20
      // Predicated region
      $region57: #{tpu_custom_call.1} parent=5 // pred_check
        %p2668 = pneg %p2667
      $region58: #{tpu_custom_call.1} parent=5 // pred_check_branch
        %2670 = sbr.rel (%p2668) target = $region60
      $region59: #{tpu_custom_call.1} parent=5 // pred_region
        %s2671 = ssub.s32 %s20, 2
        // Predicated region
        $region61: #{tpu_custom_call.1} parent=59 // pred_check
          %p2672 = pneg %p138
        $region62: #{tpu_custom_call.1} parent=59 // pred_check_branch
          %2674 = sbr.rel (%p2672) target = $region64
        $region63: #{tpu_custom_call.1} parent=59 // pred_region
          %s2675 = sand.u32 %s123, 1
          %s2676 = scalar_lea.sflag [#allocation4], %s2675
          %s2677 = sand.u32 %s123, 1
          %s2678 = smul.addr %s2677, 4
          %s2679 = scalar_lea.vmem [#allocation9], %s2678
          %2681 = dma.done %s2676, 64
        $region64: #{tpu_custom_call.1} parent=59 // pred_fallthru
          _
        // Predicated region
        $region65: #{tpu_custom_call.1} parent=59 // pred_check
          %p2682 = pneg %p164
        $region66: #{tpu_custom_call.1} parent=59 // pred_check_branch
          %2684 = sbr.rel (%p2682) target = $region68
        $region67: #{tpu_custom_call.1} parent=59 // pred_region
          %p2685 = scmp.lt.s32.totalorder %s26, 3
          %s2686 = scalar_select %p2685, %s26, 3
          %s2687 = smul.addr %s2686, 2
          %s2688 = scalar_lea.vmem %s5, %s2687
        $region68: #{tpu_custom_call.1} parent=59 // pred_fallthru
          _
      $region60: #{tpu_custom_call.1} parent=5 // pred_fallthru
        _
    $region6: #{tpu_custom_call.1} parent=1 // loop_footer
      %s24 = sadd.s32 1, %s20
    $region7: #{tpu_custom_call.1} parent=1 // loop_footer_branch
      %19 = sbr.rel target = $region3
    $region8: #{tpu_custom_call.1} parent=1 // loop_exit
      _
    %2689 = vsyncpa [#allocation3], 1
    %s2690 = scalar_lea.sflag [#allocation3], 1
    %2691 = vsyncpa %s2690, 1
    %2692 = vsyncpa [#allocation4], 1
    %s2693 = scalar_lea.sflag [#allocation4], 1
    %2694 = vsyncpa %s2693, 1
    %2695 = vsyncpa [#allocation5], 1
    %s2696 = scalar_lea.sflag [#allocation5], 1
    %2697 = vsyncpa %s2696, 1
    %2698 = vsyncpa [#allocation8], 1

</llo_original>
